<compile_context>
chip_gen: v7x
topology: tpu7x:2x2x1
jax: 0.10.0
libtpu: 0.0.40
codegen_flags: <defaults>
</compile_context>

<pallas_src>
import functools

import numpy as np
import jax
import jax.numpy as jnp
from jax import lax
from jax.experimental import pallas as pl
from jax.experimental.pallas import tpu as pltpu

F32 = jnp.float32
BF16 = jnp.bfloat16


# ------------------------------- fused kernel ------------------------------- #

def _lenet5_32_kernel(a1_ref, w1_ref, b1_ref, w2_ref, b2_ref, w3_ref, b3_ref,
                      wf1_ref, bf1_ref, wf2_ref, bf2_ref, o_ref,
                      p1_ref, p2h_ref, p2_ref, p3_ref):
    """Whole LeNet5_32 forward for one batch tile (grid iterates over batch tiles)."""
    B = a1_ref.shape[0]          # batch tile
    M1 = B * 32                  # conv1 rows  (img, h)   h in 0..31 (parity-split order)
    M2 = B * 16                  # pooled rows (img, u)   u in 0..15

    # ---- conv1: one MXU matmul over the host-built Toeplitz im2col ----------
    # output lanes n = (w%2)*128 + (w//2)*8 + a  (a = conv1 out channel)
    a1 = a1_ref[...].reshape(M1, 544)                                   # bf16
    acc1 = jnp.dot(a1, w1_ref[...], preferred_element_type=F32)         # (M1, 256)

    # ---- maxpool1 (2x2), then bias + ReLU on the pooled tensor --------------
    hp1 = jnp.maximum(acc1[:, 0:128], acc1[:, 128:256])                 # w pairs
    hp1 = hp1.reshape(B, 32, 128)                                       # rows parity-split
    vp1 = jnp.maximum(hp1[:, 0:16, :], hp1[:, 16:32, :])                # h pairs
    p1 = jnp.maximum(vp1.reshape(M2, 128) + b1_ref[...], 0.0)           # (M2, 128)
    p1_ref[0:M2, :] = p1                                                 # lanes = v*8 + a
    p1_ref[M2:M2 + 8, :] = jnp.zeros((8, 128), F32)                     # halo only

    # ---- conv2: 5 kh taps, kw folded into Toeplitz weights ------------------
    # output lanes n = (q%2)*128 + (q//2)*16 + e
    acc2 = jnp.zeros((M2, 256), F32)
    for i in range(5):
        lhs = p1_ref[i:i + M2, :].astype(BF16)
        acc2 += jnp.dot(lhs, w2_ref[i], preferred_element_type=F32)
    y2 = jnp.maximum(acc2 + b2_ref[...], 0.0)                           # (M2, 256)

    # ---- maxpool2 (2x2) ------------------------------------------------------
    hp2 = jnp.maximum(y2[:, 0:128], y2[:, 128:256])                     # q pairs
    p2h_ref[0:M2, :] = hp2
    p2h_ref[M2:M2 + 8, :] = jnp.zeros((8, 128), F32)
    vp2 = jnp.maximum(p2h_ref[0:M2, :], p2h_ref[1:M2 + 1, :])           # p pairs
    p2_ref[0:M2, :] = vp2                                                # valid at even rows
    p2_ref[M2:M2 + 8, :] = jnp.zeros((8, 128), F32)

    # ---- conv3: 5 kh taps (row stride 2), kw folded --------------------------
    # output lanes n = z*128 + f  (valid output rows: img*16 + {0, 2})
    acc3 = jnp.zeros((M2, 256), F32)
    for i in range(5):
        lhs = p2_ref[2 * i:2 * i + M2, :].astype(BF16)
        acc3 += jnp.dot(lhs, w3_ref[i], preferred_element_type=F32)
    y3 = jnp.maximum(acc3 + b3_ref[...], 0.0)
    p3_ref[0:M2, :] = y3
    p3_ref[M2:M2 + 8, :] = jnp.zeros((8, 256), F32)

    # ---- fc1 + ReLU: two y-taps (PyTorch NCHW flatten folded into the weights)
    h1 = jnp.zeros((M2, 128), F32)
    for y in range(2):
        lhs = p3_ref[2 * y:2 * y + M2, :].astype(BF16)
        h1 += jnp.dot(lhs, wf1_ref[y], preferred_element_type=F32)
    h1 = jnp.maximum(h1 + bf1_ref[...], 0.0)                            # (M2, 128)

    # dropout(p=0.2) is identity at inference.
    # TODO(synk): training-mode dropout (stateful PRNG mask) not implemented.

    # ---- fc2 ------------------------------------------------------------------
    logits = jnp.dot(h1.astype(BF16), wf2_ref[...], preferred_element_type=F32)
    logits = logits + bf2_ref[...]                                      # (M2, 128)
    # valid logits for image `img` live at row img*16
    o_ref[...] = logits.reshape(B, 16, 128)[:, 0:1, :]


# ------------------------------ host-side wrapper ---------------------------- #

def lenet5_32_forward(packed, x_nchw, *, num_classes=3, batch_tile=4):
    """x_nchw: [N, 3, 32, 32] float32 (PyTorch NCHW) -> logits [N, num_classes]."""
    n = x_nchw.shape[0]
    bt = batch_tile
    n_pad = ((n + bt - 1) // bt) * bt

    # NCHW -> NHWC, spatial pad 2 (conv1 padding).
    x = jnp.transpose(x_nchw, (0, 2, 3, 1)).astype(F32)
    if n_pad != n:
        x = jnp.pad(x, ((0, n_pad - n), (0, 0), (0, 0), (0, 0)))
    xp = jnp.pad(x, ((0, 0), (2, 2), (2, 2), (0, 0)))                   # (N, 36, 36, 3)

    # kh-band Toeplitz im2col: row h carries padded input rows h..h+4 flattened
    # (K index = i*108 + wp*3 + ci).  Then parity-split rows (even h first) so the
    # in-kernel vertical pool is an aligned 16-row slice max.  Cast to bf16 once.
    bands = [xp[:, i:i + 32, :, :].reshape(n_pad, 32, 108) for i in range(5)]
    a1 = jnp.concatenate(bands, axis=-1)                                # (N, 32, 540)
    a1 = jnp.concatenate([a1[:, 0::2, :], a1[:, 1::2, :]], axis=1)      # parity-split
    a1 = jnp.pad(a1, ((0, 0), (0, 0), (0, 4))).astype(BF16)             # (N, 32, 544)

    res2 = lambda b: (0, 0)
    res3 = lambda b: (0, 0, 0)

    out = pl.pallas_call(
        _lenet5_32_kernel,
        out_shape=jax.ShapeDtypeStruct((n_pad, 1, 128), F32),
        grid_spec=pltpu.PrefetchScalarGridSpec(
            num_scalar_prefetch=0,
            grid=(n_pad // bt,),
            in_specs=[
                pl.BlockSpec((bt, 32, 544), lambda b: (b, 0, 0)),  # conv1 im2col rows
                pl.BlockSpec((544, 256), res2),                    # conv1 Toeplitz weight
                pl.BlockSpec((1, 128), res2),                      # conv1 bias (lanes v*8+a)
                pl.BlockSpec((5, 128, 256), res3),                 # conv2 kw-folded taps
                pl.BlockSpec((1, 256), res2),                      # conv2 bias
                pl.BlockSpec((5, 128, 256), res3),                 # conv3 kw-folded taps
                pl.BlockSpec((1, 256), res2),                      # conv3 bias
                pl.BlockSpec((2, 256, 128), res3),                 # fc1 y-taps (flatten folded)
                pl.BlockSpec((1, 128), res2),                      # fc1 bias
                pl.BlockSpec((128, 128), res2),                    # fc2 weight
                pl.BlockSpec((1, 128), res2),                      # fc2 bias
            ],
            out_specs=pl.BlockSpec((bt, 1, 128), lambda b: (b, 0, 0)),
            scratch_shapes=[
                pltpu.VMEM((bt * 16 + 8, 128), F32),   # p1   (pooled conv1 + halo)
                pltpu.VMEM((bt * 16 + 8, 128), F32),   # p2h  (pool2 horizontal stage)
                pltpu.VMEM((bt * 16 + 8, 128), F32),   # p2   (pooled conv2 + halo)
                pltpu.VMEM((bt * 16 + 8, 256), F32),   # p3   (conv3 output + halo)
            ],
        ),
        compiler_params=pltpu.CompilerParams(
            dimension_semantics=("parallel",),
            vmem_limit_bytes=32 * 1024 * 1024,
        ),
    )(a1,
      packed["w1"], packed["b1"], packed["w2"], packed["b2"],
      packed["w3"], packed["b3"], packed["wf1"], packed["bf1"],
      packed["wf2"], packed["bf2"])
    return out.reshape(n_pad, 128)[:n, :num_classes]


# --------------------------- parameters & packing ---------------------------- #

def init_params(key, num_classes=3):
    """PyTorch-default-style (uniform +/- 1/sqrt(fan_in)) init, PyTorch layouts."""
    def uni(k, shape, fan_in):
        bound = 1.0 / jnp.sqrt(jnp.float32(fan_in))
        return jax.random.uniform(k, shape, F32, -bound, bound)

    ks = jax.random.split(key, 10)
    return {
        "conv1_w": uni(ks[0], (6, 3, 5, 5), 3 * 5 * 5),
        "conv1_b": uni(ks[1], (6,), 3 * 5 * 5),
        "conv2_w": uni(ks[2], (16, 6, 5, 5), 6 * 5 * 5),
        "conv2_b": uni(ks[3], (16,), 6 * 5 * 5),
        "conv3_w": uni(ks[4], (120, 16, 5, 5), 16 * 5 * 5),
        "conv3_b": uni(ks[5], (120,), 16 * 5 * 5),
        "fc1_w": uni(ks[6], (84, 480), 480),
        "fc1_b": uni(ks[7], (84,), 480),
        "fc2_w": uni(ks[8], (num_classes, 84), 84),
        "fc2_b": uni(ks[9], (num_classes,), 84),
    }


def pack_params(params, num_classes=3):
    """One-time (numpy, off the hot path) packing into Toeplitz/kw-folded bf16 weights.

    Lane layouts (pool partners are exactly 128 lanes apart):
      conv1 out: n = (w%2)*128 + (w//2)*8 + a        -> pooled p1 lanes  v*8  + a
      conv2 out: n = (q%2)*128 + (q//2)*16 + e       -> pooled p2 lanes  t*16 + e
      conv3 out: n = z*128 + f
    """
    w1 = np.asarray(params["conv1_w"], np.float32)   # (6,3,5,5)   [a, ci, i, j]
    b1 = np.asarray(params["conv1_b"], np.float32)
    w2 = np.asarray(params["conv2_w"], np.float32)   # (16,6,5,5)  [e, a, i, j]
    b2 = np.asarray(params["conv2_b"], np.float32)
    w3 = np.asarray(params["conv3_w"], np.float32)   # (120,16,5,5)[f, e, i, j]
    b3 = np.asarray(params["conv3_b"], np.float32)
    f1 = np.asarray(params["fc1_w"], np.float32)     # (84, 480)
    g1 = np.asarray(params["fc1_b"], np.float32)
    f2 = np.asarray(params["fc2_w"], np.float32)     # (nc, 84)
    g2 = np.asarray(params["fc2_b"], np.float32)

    # conv1 Toeplitz: rows k = i*108 + wp*3 + ci, cols n = (w%2)*128 + (w//2)*8 + a
    w1p = np.zeros((544, 256), np.float32)
    for i in range(5):
        for j in range(5):
            for w in range(32):
                wp = w + j
                col = (w % 2) * 128 + (w // 2) * 8
                row = i * 108 + wp * 3
                for a in range(6):
                    w1p[row:row + 3, col + a] = w1[a, :, i, j]
    b1l = np.zeros((1, 128), np.float32)
    for v in range(16):
        b1l[0, v * 8:v * 8 + 6] = b1

    # conv2 kw-folded taps: rows v*8 + a, cols (q%2)*128 + (q//2)*16 + e
    w2t = np.zeros((5, 128, 256), np.float32)
    for i in range(5):
        for q in range(12):
            col = (q % 2) * 128 + (q // 2) * 16
            for j in range(5):
                v = q + j
                w2t[i, v * 8:v * 8 + 6, col:col + 16] = w2[:, :, i, j].T
    b2l = np.zeros((1, 256), np.float32)
    for q in range(12):
        col = (q % 2) * 128 + (q // 2) * 16
        b2l[0, col:col + 16] = b2

    # conv3 kw-folded taps: rows t*16 + e, cols z*128 + f
    w3t = np.zeros((5, 128, 256), np.float32)
    for i in range(5):
        for z in range(2):
            for j in range(5):
                t = z + j
                w3t[i, t * 16:t * 16 + 16, z * 128:z * 128 + 120] = w3[:, :, i, j].T
    b3l = np.zeros((1, 256), np.float32)
    b3l[0, 0:120] = b3
    b3l[0, 128:248] = b3

    # fc1 y-taps: rows z*128 + f, cols o ; PyTorch flatten index = f*4 + y*2 + z
    wf1 = np.zeros((2, 256, 128), np.float32)
    for y in range(2):
        for z in range(2):
            cols = np.arange(120) * 4 + y * 2 + z
            wf1[y, z * 128:z * 128 + 120, 0:84] = f1[:, cols].T
    bf1l = np.zeros((1, 128), np.float32)
    bf1l[0, :84] = g1

    wf2 = np.zeros((128, 128), np.float32)
    wf2[0:84, 0:num_classes] = f2.T
    bf2l = np.zeros((1, 128), np.float32)
    bf2l[0, :num_classes] = g2

    return {
        "w1": jnp.asarray(w1p, BF16), "b1": jnp.asarray(b1l, F32),
        "w2": jnp.asarray(w2t, BF16), "b2": jnp.asarray(b2l, F32),
        "w3": jnp.asarray(w3t, BF16), "b3": jnp.asarray(b3l, F32),
        "wf1": jnp.asarray(wf1, BF16), "bf1": jnp.asarray(bf1l, F32),
        "wf2": jnp.asarray(wf2, BF16), "bf2": jnp.asarray(bf2l, F32),
    }


# ------------------------------ f32 reference -------------------------------- #

def reference_forward(p, x):
    """Plain-JAX f32 replica of the PyTorch module (eval mode)."""
    dn = ("NCHW", "OIHW", "NCHW")
    y = lax.conv_general_dilated(x, p["conv1_w"], (1, 1), ((2, 2), (2, 2)),
                                 dimension_numbers=dn)
    y = jax.nn.relu(y + p["conv1_b"][None, :, None, None])
    y = lax.reduce_window(y, -jnp.inf, lax.max, (1, 1, 2, 2), (1, 1, 2, 2), "VALID")
    y = lax.conv_general_dilated(y, p["conv2_w"], (1, 1), "VALID", dimension_numbers=dn)
    y = jax.nn.relu(y + p["conv2_b"][None, :, None, None])
    y = lax.reduce_window(y, -jnp.inf, lax.max, (1, 1, 2, 2), (1, 1, 2, 2), "VALID")
    y = lax.conv_general_dilated(y, p["conv3_w"], (1, 1), "VALID", dimension_numbers=dn)
    y = jax.nn.relu(y + p["conv3_b"][None, :, None, None])
    y = y.reshape(y.shape[0], -1)                      # (N, 480), (C, H, W) order
    y = jax.nn.relu(y @ p["fc1_w"].T + p["fc1_b"])
    # dropout: identity at inference
    return y @ p["fc2_w"].T + p["fc2_b"]


# ----------------------------------- main ------------------------------------ #

if __name__ == "__main__":
    key = jax.random.PRNGKey(0)
    pkey, xkey = jax.random.split(key)
    num_classes = 3

    params = init_params(pkey, num_classes)
    packed = pack_params(params, num_classes)
    x = jax.random.normal(xkey, (8, 3, 32, 32), F32)   # batch=8, LeNet5_32 input

    fwd = jax.jit(functools.partial(lenet5_32_forward,
                                    num_classes=num_classes, batch_tile=4))
    out = jax.block_until_ready(fwd(packed, x))

    assert out.shape == (8, num_classes) and out.dtype == F32
    assert bool(jnp.all(jnp.isfinite(out)))

    ref = reference_forward(params, x)
    assert bool(jnp.allclose(out, ref, atol=3e-2, rtol=3e-2)), (out, ref)

    print("KERNEL_OK")
</pallas_src>

<mosaic_0001>
module attributes {stable_mosaic.version = 11 : i64} {
  func.func @_lenet5_32_kernel(%arg0: i32, %arg1: memref<4x32x544xbf16, #tpu.memory_space<vmem>>, %arg2: memref<544x256xbf16, #tpu.memory_space<vmem>>, %arg3: memref<1x128xf32, #tpu.memory_space<vmem>>, %arg4: memref<5x128x256xbf16, #tpu.memory_space<vmem>>, %arg5: memref<1x256xf32, #tpu.memory_space<vmem>>, %arg6: memref<5x128x256xbf16, #tpu.memory_space<vmem>>, %arg7: memref<1x256xf32, #tpu.memory_space<vmem>>, %arg8: memref<2x256x128xbf16, #tpu.memory_space<vmem>>, %arg9: memref<1x128xf32, #tpu.memory_space<vmem>>, %arg10: memref<128x128xbf16, #tpu.memory_space<vmem>>, %arg11: memref<1x128xf32, #tpu.memory_space<vmem>>, %arg12: memref<4x1x128xf32, #tpu.memory_space<vmem>>, %arg13: memref<72x128xf32, #tpu.memory_space<vmem>>, %arg14: memref<72x128xf32, #tpu.memory_space<vmem>>, %arg15: memref<72x128xf32, #tpu.memory_space<vmem>>, %arg16: memref<72x256xf32, #tpu.memory_space<vmem>>) attributes {dimension_semantics = [#tpu.dimension_semantics<parallel>], iteration_bounds = array<i64: 2>, scalar_prefetch = 0 : i64, scratch_operands = 4 : i64, tpu.core_type = #tpu.core_type<tc>, window_params = [{transform_indices = @transform_0, window_bounds = array<i64: 4, 32, 544>}, {pipeline_mode = #tpu.pipeline_mode<synchronous>, transform_indices = @transform_1, window_bounds = array<i64: 544, 256>}, {pipeline_mode = #tpu.pipeline_mode<synchronous>, transform_indices = @transform_2, window_bounds = array<i64: 1, 128>}, {pipeline_mode = #tpu.pipeline_mode<synchronous>, transform_indices = @transform_3, window_bounds = array<i64: 5, 128, 256>}, {pipeline_mode = #tpu.pipeline_mode<synchronous>, transform_indices = @transform_4, window_bounds = array<i64: 1, 256>}, {pipeline_mode = #tpu.pipeline_mode<synchronous>, transform_indices = @transform_5, window_bounds = array<i64: 5, 128, 256>}, {pipeline_mode = #tpu.pipeline_mode<synchronous>, transform_indices = @transform_6, window_bounds = array<i64: 1, 256>}, {pipeline_mode = #tpu.pipeline_mode<synchronous>, transform_indices = @transform_7, window_bounds = array<i64: 2, 256, 128>}, {pipeline_mode = #tpu.pipeline_mode<synchronous>, transform_indices = @transform_8, window_bounds = array<i64: 1, 128>}, {pipeline_mode = #tpu.pipeline_mode<synchronous>, transform_indices = @transform_9, window_bounds = array<i64: 128, 128>}, {pipeline_mode = #tpu.pipeline_mode<synchronous>, transform_indices = @transform_10, window_bounds = array<i64: 1, 128>}, {transform_indices = @transform_11, window_bounds = array<i64: 4, 1, 128>}]} {
    %c0 = arith.constant 0 : index
    %c0_0 = arith.constant 0 : index
    %c0_1 = arith.constant 0 : index
    %0 = vector.load %arg1[%c0, %c0_0, %c0_1] : memref<4x32x544xbf16, #tpu.memory_space<vmem>>, vector<4x32x544xbf16>
    %1 = vector.shape_cast %0 : vector<4x32x544xbf16> to vector<128x544xbf16>
    %c0_2 = arith.constant 0 : index
    %c0_3 = arith.constant 0 : index
    %2 = vector.load %arg2[%c0_2, %c0_3] : memref<544x256xbf16, #tpu.memory_space<vmem>>, vector<544x256xbf16>
    %cst = arith.constant dense<0.000000e+00> : vector<128x256xf32>
    %3 = tpu.matmul %1, %2, %cst {dimension_numbers = #tpu.dot_dimension_numbers<[1], [0], [0], [1], [0, 0, 1, 1], [], []>} : vector<128x544xbf16>, vector<544x256xbf16>, vector<128x256xf32> -> vector<128x256xf32>
    %4 = vector.extract_strided_slice %3 {offsets = [0, 0], sizes = [128, 128], strides = [1, 1]} : vector<128x256xf32> to vector<128x128xf32>
    %5 = vector.extract_strided_slice %3 {offsets = [0, 128], sizes = [128, 128], strides = [1, 1]} : vector<128x256xf32> to vector<128x128xf32>
    %6 = arith.maximumf %4, %5 : vector<128x128xf32>
    %7 = vector.shape_cast %6 : vector<128x128xf32> to vector<4x32x128xf32>
    %8 = vector.extract_strided_slice %7 {offsets = [0, 0, 0], sizes = [4, 16, 128], strides = [1, 1, 1]} : vector<4x32x128xf32> to vector<4x16x128xf32>
    %9 = vector.extract_strided_slice %7 {offsets = [0, 16, 0], sizes = [4, 16, 128], strides = [1, 1, 1]} : vector<4x32x128xf32> to vector<4x16x128xf32>
    %10 = arith.maximumf %8, %9 : vector<4x16x128xf32>
    %11 = vector.shape_cast %10 : vector<4x16x128xf32> to vector<64x128xf32>
    %c0_4 = arith.constant 0 : index
    %c0_5 = arith.constant 0 : index
    %12 = vector.load %arg3[%c0_4, %c0_5] : memref<1x128xf32, #tpu.memory_space<vmem>>, vector<1x128xf32>
    %13 = vector.broadcast %12 : vector<1x128xf32> to vector<64x128xf32>
    %14 = arith.addf %11, %13 : vector<64x128xf32>
    %cst_6 = arith.constant 0.000000e+00 : f32
    %15 = vector.broadcast %cst_6 : f32 to vector<64x128xf32>
    %16 = arith.maximumf %14, %15 : vector<64x128xf32>
    %c0_7 = arith.constant 0 : index
    %c0_8 = arith.constant 0 : index
    %17 = vector.load %arg13[%c0_7, %c0_8] : memref<72x128xf32, #tpu.memory_space<vmem>>, vector<64x128xf32>
    tpu.vector_store %arg13[%c0_7, %c0_8], %16 {strides = array<i32>} : memref<72x128xf32, #tpu.memory_space<vmem>>, vector<64x128xf32>,
    %cst_9 = arith.constant 0.000000e+00 : f32
    %18 = vector.broadcast %cst_9 : f32 to vector<8x128xf32>
    %c64 = arith.constant 64 : index
    %c0_10 = arith.constant 0 : index
    %19 = vector.load %arg13[%c64, %c0_10] : memref<72x128xf32, #tpu.memory_space<vmem>>, vector<8x128xf32>
    tpu.vector_store %arg13[%c64, %c0_10], %18 {strides = array<i32>} : memref<72x128xf32, #tpu.memory_space<vmem>>, vector<8x128xf32>,
    %cst_11 = arith.constant 0.000000e+00 : f32
    %20 = vector.broadcast %cst_11 : f32 to vector<64x256xf32>
    %c0_12 = arith.constant 0 : index
    %c0_13 = arith.constant 0 : index
    %21 = vector.load %arg13[%c0_12, %c0_13] : memref<72x128xf32, #tpu.memory_space<vmem>>, vector<64x128xf32>
    %22 = arith.truncf %21 : vector<64x128xf32> to vector<64x128xbf16>
    %c0_14 = arith.constant 0 : index
    %c0_15 = arith.constant 0 : index
    %c0_16 = arith.constant 0 : index
    %23 = vector.load %arg4[%c0_14, %c0_15, %c0_16] : memref<5x128x256xbf16, #tpu.memory_space<vmem>>, vector<1x128x256xbf16>
    %24 = vector.shape_cast %23 : vector<1x128x256xbf16> to vector<128x256xbf16>
    %cst_17 = arith.constant dense<0.000000e+00> : vector<64x256xf32>
    %25 = tpu.matmul %22, %24, %cst_17 {dimension_numbers = #tpu.dot_dimension_numbers<[1], [0], [0], [1], [0, 0, 1, 1], [], []>} : vector<64x128xbf16>, vector<128x256xbf16>, vector<64x256xf32> -> vector<64x256xf32>
    %26 = arith.addf %20, %25 : vector<64x256xf32>
    %c1 = arith.constant 1 : index
    %c0_18 = arith.constant 0 : index
    %27 = vector.load %arg13[%c1, %c0_18] : memref<72x128xf32, #tpu.memory_space<vmem>>, vector<64x128xf32>
    %28 = arith.truncf %27 : vector<64x128xf32> to vector<64x128xbf16>
    %c1_19 = arith.constant 1 : index
    %c0_20 = arith.constant 0 : index
    %c0_21 = arith.constant 0 : index
    %29 = vector.load %arg4[%c1_19, %c0_20, %c0_21] : memref<5x128x256xbf16, #tpu.memory_space<vmem>>, vector<1x128x256xbf16>
    %30 = vector.shape_cast %29 : vector<1x128x256xbf16> to vector<128x256xbf16>
    %cst_22 = arith.constant dense<0.000000e+00> : vector<64x256xf32>
    %31 = tpu.matmul %28, %30, %cst_22 {dimension_numbers = #tpu.dot_dimension_numbers<[1], [0], [0], [1], [0, 0, 1, 1], [], []>} : vector<64x128xbf16>, vector<128x256xbf16>, vector<64x256xf32> -> vector<64x256xf32>
    %32 = arith.addf %26, %31 : vector<64x256xf32>
    %c2 = arith.constant 2 : index
    %c0_23 = arith.constant 0 : index
    %33 = vector.load %arg13[%c2, %c0_23] : memref<72x128xf32, #tpu.memory_space<vmem>>, vector<64x128xf32>
    %34 = arith.truncf %33 : vector<64x128xf32> to vector<64x128xbf16>
    %c2_24 = arith.constant 2 : index
    %c0_25 = arith.constant 0 : index
    %c0_26 = arith.constant 0 : index
    %35 = vector.load %arg4[%c2_24, %c0_25, %c0_26] : memref<5x128x256xbf16, #tpu.memory_space<vmem>>, vector<1x128x256xbf16>
    %36 = vector.shape_cast %35 : vector<1x128x256xbf16> to vector<128x256xbf16>
    %cst_27 = arith.constant dense<0.000000e+00> : vector<64x256xf32>
    %37 = tpu.matmul %34, %36, %cst_27 {dimension_numbers = #tpu.dot_dimension_numbers<[1], [0], [0], [1], [0, 0, 1, 1], [], []>} : vector<64x128xbf16>, vector<128x256xbf16>, vector<64x256xf32> -> vector<64x256xf32>
    %38 = arith.addf %32, %37 : vector<64x256xf32>
    %c3 = arith.constant 3 : index
    %c0_28 = arith.constant 0 : index
    %39 = vector.load %arg13[%c3, %c0_28] : memref<72x128xf32, #tpu.memory_space<vmem>>, vector<64x128xf32>
    %40 = arith.truncf %39 : vector<64x128xf32> to vector<64x128xbf16>
    %c3_29 = arith.constant 3 : index
    %c0_30 = arith.constant 0 : index
    %c0_31 = arith.constant 0 : index
    %41 = vector.load %arg4[%c3_29, %c0_30, %c0_31] : memref<5x128x256xbf16, #tpu.memory_space<vmem>>, vector<1x128x256xbf16>
    %42 = vector.shape_cast %41 : vector<1x128x256xbf16> to vector<128x256xbf16>
    %cst_32 = arith.constant dense<0.000000e+00> : vector<64x256xf32>
    %43 = tpu.matmul %40, %42, %cst_32 {dimension_numbers = #tpu.dot_dimension_numbers<[1], [0], [0], [1], [0, 0, 1, 1], [], []>} : vector<64x128xbf16>, vector<128x256xbf16>, vector<64x256xf32> -> vector<64x256xf32>
    %44 = arith.addf %38, %43 : vector<64x256xf32>
    %c4 = arith.constant 4 : index
    %c0_33 = arith.constant 0 : index
    %45 = vector.load %arg13[%c4, %c0_33] : memref<72x128xf32, #tpu.memory_space<vmem>>, vector<64x128xf32>
    %46 = arith.truncf %45 : vector<64x128xf32> to vector<64x128xbf16>
    %c4_34 = arith.constant 4 : index
    %c0_35 = arith.constant 0 : index
    %c0_36 = arith.constant 0 : index
    %47 = vector.load %arg4[%c4_34, %c0_35, %c0_36] : memref<5x128x256xbf16, #tpu.memory_space<vmem>>, vector<1x128x256xbf16>
    %48 = vector.shape_cast %47 : vector<1x128x256xbf16> to vector<128x256xbf16>
    %cst_37 = arith.constant dense<0.000000e+00> : vector<64x256xf32>
    %49 = tpu.matmul %46, %48, %cst_37 {dimension_numbers = #tpu.dot_dimension_numbers<[1], [0], [0], [1], [0, 0, 1, 1], [], []>} : vector<64x128xbf16>, vector<128x256xbf16>, vector<64x256xf32> -> vector<64x256xf32>
    %50 = arith.addf %44, %49 : vector<64x256xf32>
    %c0_38 = arith.constant 0 : index
    %c0_39 = arith.constant 0 : index
    %51 = vector.load %arg5[%c0_38, %c0_39] : memref<1x256xf32, #tpu.memory_space<vmem>>, vector<1x256xf32>
    %52 = vector.broadcast %51 : vector<1x256xf32> to vector<64x256xf32>
    %53 = arith.addf %50, %52 : vector<64x256xf32>
    %cst_40 = arith.constant 0.000000e+00 : f32
    %54 = vector.broadcast %cst_40 : f32 to vector<64x256xf32>
    %55 = arith.maximumf %53, %54 : vector<64x256xf32>
    %56 = vector.extract_strided_slice %55 {offsets = [0, 0], sizes = [64, 128], strides = [1, 1]} : vector<64x256xf32> to vector<64x128xf32>
    %57 = vector.extract_strided_slice %55 {offsets = [0, 128], sizes = [64, 128], strides = [1, 1]} : vector<64x256xf32> to vector<64x128xf32>
    %58 = arith.maximumf %56, %57 : vector<64x128xf32>
    %c0_41 = arith.constant 0 : index
    %c0_42 = arith.constant 0 : index
    %59 = vector.load %arg14[%c0_41, %c0_42] : memref<72x128xf32, #tpu.memory_space<vmem>>, vector<64x128xf32>
    tpu.vector_store %arg14[%c0_41, %c0_42], %58 {strides = array<i32>} : memref<72x128xf32, #tpu.memory_space<vmem>>, vector<64x128xf32>,
    %cst_43 = arith.constant 0.000000e+00 : f32
    %60 = vector.broadcast %cst_43 : f32 to vector<8x128xf32>
    %c64_44 = arith.constant 64 : index
    %c0_45 = arith.constant 0 : index
    %61 = vector.load %arg14[%c64_44, %c0_45] : memref<72x128xf32, #tpu.memory_space<vmem>>, vector<8x128xf32>
    tpu.vector_store %arg14[%c64_44, %c0_45], %60 {strides = array<i32>} : memref<72x128xf32, #tpu.memory_space<vmem>>, vector<8x128xf32>,
    %c0_46 = arith.constant 0 : index
    %c0_47 = arith.constant 0 : index
    %62 = vector.load %arg14[%c0_46, %c0_47] : memref<72x128xf32, #tpu.memory_space<vmem>>, vector<64x128xf32>
    %c1_48 = arith.constant 1 : index
    %c0_49 = arith.constant 0 : index
    %63 = vector.load %arg14[%c1_48, %c0_49] : memref<72x128xf32, #tpu.memory_space<vmem>>, vector<64x128xf32>
    %64 = arith.maximumf %62, %63 : vector<64x128xf32>
    %c0_50 = arith.constant 0 : index
    %c0_51 = arith.constant 0 : index
    %65 = vector.load %arg15[%c0_50, %c0_51] : memref<72x128xf32, #tpu.memory_space<vmem>>, vector<64x128xf32>
    tpu.vector_store %arg15[%c0_50, %c0_51], %64 {strides = array<i32>} : memref<72x128xf32, #tpu.memory_space<vmem>>, vector<64x128xf32>,
    %cst_52 = arith.constant 0.000000e+00 : f32
    %66 = vector.broadcast %cst_52 : f32 to vector<8x128xf32>
    %c64_53 = arith.constant 64 : index
    %c0_54 = arith.constant 0 : index
    %67 = vector.load %arg15[%c64_53, %c0_54] : memref<72x128xf32, #tpu.memory_space<vmem>>, vector<8x128xf32>
    tpu.vector_store %arg15[%c64_53, %c0_54], %66 {strides = array<i32>} : memref<72x128xf32, #tpu.memory_space<vmem>>, vector<8x128xf32>,
    %cst_55 = arith.constant 0.000000e+00 : f32
    %68 = vector.broadcast %cst_55 : f32 to vector<64x256xf32>
    %c0_56 = arith.constant 0 : index
    %c0_57 = arith.constant 0 : index
    %69 = vector.load %arg15[%c0_56, %c0_57] : memref<72x128xf32, #tpu.memory_space<vmem>>, vector<64x128xf32>
    %70 = arith.truncf %69 : vector<64x128xf32> to vector<64x128xbf16>
    %c0_58 = arith.constant 0 : index
    %c0_59 = arith.constant 0 : index
    %c0_60 = arith.constant 0 : index
    %71 = vector.load %arg6[%c0_58, %c0_59, %c0_60] : memref<5x128x256xbf16, #tpu.memory_space<vmem>>, vector<1x128x256xbf16>
    %72 = vector.shape_cast %71 : vector<1x128x256xbf16> to vector<128x256xbf16>
    %cst_61 = arith.constant dense<0.000000e+00> : vector<64x256xf32>
    %73 = tpu.matmul %70, %72, %cst_61 {dimension_numbers = #tpu.dot_dimension_numbers<[1], [0], [0], [1], [0, 0, 1, 1], [], []>} : vector<64x128xbf16>, vector<128x256xbf16>, vector<64x256xf32> -> vector<64x256xf32>
    %74 = arith.addf %68, %73 : vector<64x256xf32>
    %c2_62 = arith.constant 2 : index
    %c0_63 = arith.constant 0 : index
    %75 = vector.load %arg15[%c2_62, %c0_63] : memref<72x128xf32, #tpu.memory_space<vmem>>, vector<64x128xf32>
    %76 = arith.truncf %75 : vector<64x128xf32> to vector<64x128xbf16>
    %c1_64 = arith.constant 1 : index
    %c0_65 = arith.constant 0 : index
    %c0_66 = arith.constant 0 : index
    %77 = vector.load %arg6[%c1_64, %c0_65, %c0_66] : memref<5x128x256xbf16, #tpu.memory_space<vmem>>, vector<1x128x256xbf16>
    %78 = vector.shape_cast %77 : vector<1x128x256xbf16> to vector<128x256xbf16>
    %cst_67 = arith.constant dense<0.000000e+00> : vector<64x256xf32>
    %79 = tpu.matmul %76, %78, %cst_67 {dimension_numbers = #tpu.dot_dimension_numbers<[1], [0], [0], [1], [0, 0, 1, 1], [], []>} : vector<64x128xbf16>, vector<128x256xbf16>, vector<64x256xf32> -> vector<64x256xf32>
    %80 = arith.addf %74, %79 : vector<64x256xf32>
    %c4_68 = arith.constant 4 : index
    %c0_69 = arith.constant 0 : index
    %81 = vector.load %arg15[%c4_68, %c0_69] : memref<72x128xf32, #tpu.memory_space<vmem>>, vector<64x128xf32>
    %82 = arith.truncf %81 : vector<64x128xf32> to vector<64x128xbf16>
    %c2_70 = arith.constant 2 : index
    %c0_71 = arith.constant 0 : index
    %c0_72 = arith.constant 0 : index
    %83 = vector.load %arg6[%c2_70, %c0_71, %c0_72] : memref<5x128x256xbf16, #tpu.memory_space<vmem>>, vector<1x128x256xbf16>
    %84 = vector.shape_cast %83 : vector<1x128x256xbf16> to vector<128x256xbf16>
    %cst_73 = arith.constant dense<0.000000e+00> : vector<64x256xf32>
    %85 = tpu.matmul %82, %84, %cst_73 {dimension_numbers = #tpu.dot_dimension_numbers<[1], [0], [0], [1], [0, 0, 1, 1], [], []>} : vector<64x128xbf16>, vector<128x256xbf16>, vector<64x256xf32> -> vector<64x256xf32>
    %86 = arith.addf %80, %85 : vector<64x256xf32>
    %c6 = arith.constant 6 : index
    %c0_74 = arith.constant 0 : index
    %87 = vector.load %arg15[%c6, %c0_74] : memref<72x128xf32, #tpu.memory_space<vmem>>, vector<64x128xf32>
    %88 = arith.truncf %87 : vector<64x128xf32> to vector<64x128xbf16>
    %c3_75 = arith.constant 3 : index
    %c0_76 = arith.constant 0 : index
    %c0_77 = arith.constant 0 : index
    %89 = vector.load %arg6[%c3_75, %c0_76, %c0_77] : memref<5x128x256xbf16, #tpu.memory_space<vmem>>, vector<1x128x256xbf16>
    %90 = vector.shape_cast %89 : vector<1x128x256xbf16> to vector<128x256xbf16>
    %cst_78 = arith.constant dense<0.000000e+00> : vector<64x256xf32>
    %91 = tpu.matmul %88, %90, %cst_78 {dimension_numbers = #tpu.dot_dimension_numbers<[1], [0], [0], [1], [0, 0, 1, 1], [], []>} : vector<64x128xbf16>, vector<128x256xbf16>, vector<64x256xf32> -> vector<64x256xf32>
    %92 = arith.addf %86, %91 : vector<64x256xf32>
    %c8 = arith.constant 8 : index
    %c0_79 = arith.constant 0 : index
    %93 = vector.load %arg15[%c8, %c0_79] : memref<72x128xf32, #tpu.memory_space<vmem>>, vector<64x128xf32>
    %94 = arith.truncf %93 : vector<64x128xf32> to vector<64x128xbf16>
    %c4_80 = arith.constant 4 : index
    %c0_81 = arith.constant 0 : index
    %c0_82 = arith.constant 0 : index
    %95 = vector.load %arg6[%c4_80, %c0_81, %c0_82] : memref<5x128x256xbf16, #tpu.memory_space<vmem>>, vector<1x128x256xbf16>
    %96 = vector.shape_cast %95 : vector<1x128x256xbf16> to vector<128x256xbf16>
    %cst_83 = arith.constant dense<0.000000e+00> : vector<64x256xf32>
    %97 = tpu.matmul %94, %96, %cst_83 {dimension_numbers = #tpu.dot_dimension_numbers<[1], [0], [0], [1], [0, 0, 1, 1], [], []>} : vector<64x128xbf16>, vector<128x256xbf16>, vector<64x256xf32> -> vector<64x256xf32>
    %98 = arith.addf %92, %97 : vector<64x256xf32>
    %c0_84 = arith.constant 0 : index
    %c0_85 = arith.constant 0 : index
    %99 = vector.load %arg7[%c0_84, %c0_85] : memref<1x256xf32, #tpu.memory_space<vmem>>, vector<1x256xf32>
    %100 = vector.broadcast %99 : vector<1x256xf32> to vector<64x256xf32>
    %101 = arith.addf %98, %100 : vector<64x256xf32>
    %cst_86 = arith.constant 0.000000e+00 : f32
    %102 = vector.broadcast %cst_86 : f32 to vector<64x256xf32>
    %103 = arith.maximumf %101, %102 : vector<64x256xf32>
    %c0_87 = arith.constant 0 : index
    %c0_88 = arith.constant 0 : index
    %104 = vector.load %arg16[%c0_87, %c0_88] : memref<72x256xf32, #tpu.memory_space<vmem>>, vector<64x256xf32>
    tpu.vector_store %arg16[%c0_87, %c0_88], %103 {strides = array<i32>} : memref<72x256xf32, #tpu.memory_space<vmem>>, vector<64x256xf32>,
    %cst_89 = arith.constant 0.000000e+00 : f32
    %105 = vector.broadcast %cst_89 : f32 to vector<8x256xf32>
    %c64_90 = arith.constant 64 : index
    %c0_91 = arith.constant 0 : index
    %106 = vector.load %arg16[%c64_90, %c0_91] : memref<72x256xf32, #tpu.memory_space<vmem>>, vector<8x256xf32>
    tpu.vector_store %arg16[%c64_90, %c0_91], %105 {strides = array<i32>} : memref<72x256xf32, #tpu.memory_space<vmem>>, vector<8x256xf32>,
    %cst_92 = arith.constant 0.000000e+00 : f32
    %107 = vector.broadcast %cst_92 : f32 to vector<64x128xf32>
    %c0_93 = arith.constant 0 : index
    %c0_94 = arith.constant 0 : index
    %108 = vector.load %arg16[%c0_93, %c0_94] : memref<72x256xf32, #tpu.memory_space<vmem>>, vector<64x256xf32>
    %109 = arith.truncf %108 : vector<64x256xf32> to vector<64x256xbf16>
    %c0_95 = arith.constant 0 : index
    %c0_96 = arith.constant 0 : index
    %c0_97 = arith.constant 0 : index
    %110 = vector.load %arg8[%c0_95, %c0_96, %c0_97] : memref<2x256x128xbf16, #tpu.memory_space<vmem>>, vector<1x256x128xbf16>
    %111 = vector.shape_cast %110 : vector<1x256x128xbf16> to vector<256x128xbf16>
    %cst_98 = arith.constant dense<0.000000e+00> : vector<64x128xf32>
    %112 = tpu.matmul %109, %111, %cst_98 {dimension_numbers = #tpu.dot_dimension_numbers<[1], [0], [0], [1], [0, 0, 1, 1], [], []>} : vector<64x256xbf16>, vector<256x128xbf16>, vector<64x128xf32> -> vector<64x128xf32>
    %113 = arith.addf %107, %112 : vector<64x128xf32>
    %c2_99 = arith.constant 2 : index
    %c0_100 = arith.constant 0 : index
    %114 = vector.load %arg16[%c2_99, %c0_100] : memref<72x256xf32, #tpu.memory_space<vmem>>, vector<64x256xf32>
    %115 = arith.truncf %114 : vector<64x256xf32> to vector<64x256xbf16>
    %c1_101 = arith.constant 1 : index
    %c0_102 = arith.constant 0 : index
    %c0_103 = arith.constant 0 : index
    %116 = vector.load %arg8[%c1_101, %c0_102, %c0_103] : memref<2x256x128xbf16, #tpu.memory_space<vmem>>, vector<1x256x128xbf16>
    %117 = vector.shape_cast %116 : vector<1x256x128xbf16> to vector<256x128xbf16>
    %cst_104 = arith.constant dense<0.000000e+00> : vector<64x128xf32>
    %118 = tpu.matmul %115, %117, %cst_104 {dimension_numbers = #tpu.dot_dimension_numbers<[1], [0], [0], [1], [0, 0, 1, 1], [], []>} : vector<64x256xbf16>, vector<256x128xbf16>, vector<64x128xf32> -> vector<64x128xf32>
    %119 = arith.addf %113, %118 : vector<64x128xf32>
    %c0_105 = arith.constant 0 : index
    %c0_106 = arith.constant 0 : index
    %120 = vector.load %arg9[%c0_105, %c0_106] : memref<1x128xf32, #tpu.memory_space<vmem>>, vector<1x128xf32>
    %121 = vector.broadcast %120 : vector<1x128xf32> to vector<64x128xf32>
    %122 = arith.addf %119, %121 : vector<64x128xf32>
    %cst_107 = arith.constant 0.000000e+00 : f32
    %123 = vector.broadcast %cst_107 : f32 to vector<64x128xf32>
    %124 = arith.maximumf %122, %123 : vector<64x128xf32>
    %125 = arith.truncf %124 : vector<64x128xf32> to vector<64x128xbf16>
    %c0_108 = arith.constant 0 : index
    %c0_109 = arith.constant 0 : index
    %126 = vector.load %arg10[%c0_108, %c0_109] : memref<128x128xbf16, #tpu.memory_space<vmem>>, vector<128x128xbf16>
    %cst_110 = arith.constant dense<0.000000e+00> : vector<64x128xf32>
    %127 = tpu.matmul %125, %126, %cst_110 {dimension_numbers = #tpu.dot_dimension_numbers<[1], [0], [0], [1], [0, 0, 1, 1], [], []>} : vector<64x128xbf16>, vector<128x128xbf16>, vector<64x128xf32> -> vector<64x128xf32>
    %c0_111 = arith.constant 0 : index
    %c0_112 = arith.constant 0 : index
    %128 = vector.load %arg11[%c0_111, %c0_112] : memref<1x128xf32, #tpu.memory_space<vmem>>, vector<1x128xf32>
    %129 = vector.broadcast %128 : vector<1x128xf32> to vector<64x128xf32>
    %130 = arith.addf %127, %129 : vector<64x128xf32>
    %131 = vector.shape_cast %130 : vector<64x128xf32> to vector<4x16x128xf32>
    %132 = vector.extract_strided_slice %131 {offsets = [0, 0, 0], sizes = [4, 1, 128], strides = [1, 1, 1]} : vector<4x16x128xf32> to vector<4x1x128xf32>
    %c0_113 = arith.constant 0 : index
    %c0_114 = arith.constant 0 : index
    %c0_115 = arith.constant 0 : index
    %133 = vector.load %arg12[%c0_113, %c0_114, %c0_115] : memref<4x1x128xf32, #tpu.memory_space<vmem>>, vector<4x1x128xf32>
    tpu.vector_store %arg12[%c0_113, %c0_114, %c0_115], %132 {strides = array<i32>} : memref<4x1x128xf32, #tpu.memory_space<vmem>>, vector<4x1x128xf32>,
    return
  }
  func.func @transform_0(%arg0: i32) -> (i32, i32, i32) {
    %c0_i32 = arith.constant 0 : i32
    %c0_i32_0 = arith.constant 0 : i32
    %c0_i32_1 = arith.constant 0 : i32
    return %arg0, %c0_i32, %c0_i32_0 : i32, i32, i32
  }
  func.func @transform_1(%arg0: i32) -> (i32, i32) {
    %c0_i32 = arith.constant 0 : i32
    %c0_i32_0 = arith.constant 0 : i32
    %c0_i32_1 = arith.constant 0 : i32
    return %c0_i32, %c0_i32_0 : i32, i32
  }
  func.func @transform_2(%arg0: i32) -> (i32, i32) {
    %c0_i32 = arith.constant 0 : i32
    %c0_i32_0 = arith.constant 0 : i32
    %c0_i32_1 = arith.constant 0 : i32
    return %c0_i32, %c0_i32_0 : i32, i32
  }
  func.func @transform_3(%arg0: i32) -> (i32, i32, i32) {
    %c0_i32 = arith.constant 0 : i32
    %c0_i32_0 = arith.constant 0 : i32
    %c0_i32_1 = arith.constant 0 : i32
    %c0_i32_2 = arith.constant 0 : i32
    return %c0_i32, %c0_i32_0, %c0_i32_1 : i32, i32, i32
  }
  func.func @transform_4(%arg0: i32) -> (i32, i32) {
    %c0_i32 = arith.constant 0 : i32
    %c0_i32_0 = arith.constant 0 : i32
    %c0_i32_1 = arith.constant 0 : i32
    return %c0_i32, %c0_i32_0 : i32, i32
  }
  func.func @transform_5(%arg0: i32) -> (i32, i32, i32) {
    %c0_i32 = arith.constant 0 : i32
    %c0_i32_0 = arith.constant 0 : i32
    %c0_i32_1 = arith.constant 0 : i32
    %c0_i32_2 = arith.constant 0 : i32
    return %c0_i32, %c0_i32_0, %c0_i32_1 : i32, i32, i32
  }
  func.func @transform_6(%arg0: i32) -> (i32, i32) {
    %c0_i32 = arith.constant 0 : i32
    %c0_i32_0 = arith.constant 0 : i32
    %c0_i32_1 = arith.constant 0 : i32
    return %c0_i32, %c0_i32_0 : i32, i32
  }
  func.func @transform_7(%arg0: i32) -> (i32, i32, i32) {
    %c0_i32 = arith.constant 0 : i32
    %c0_i32_0 = arith.constant 0 : i32
    %c0_i32_1 = arith.constant 0 : i32
    %c0_i32_2 = arith.constant 0 : i32
    return %c0_i32, %c0_i32_0, %c0_i32_1 : i32, i32, i32
  }
  func.func @transform_8(%arg0: i32) -> (i32, i32) {
    %c0_i32 = arith.constant 0 : i32
    %c0_i32_0 = arith.constant 0 : i32
    %c0_i32_1 = arith.constant 0 : i32
    return %c0_i32, %c0_i32_0 : i32, i32
  }
  func.func @transform_9(%arg0: i32) -> (i32, i32) {
    %c0_i32 = arith.constant 0 : i32
    %c0_i32_0 = arith.constant 0 : i32
    %c0_i32_1 = arith.constant 0 : i32
    return %c0_i32, %c0_i32_0 : i32, i32
  }
  func.func @transform_10(%arg0: i32) -> (i32, i32) {
    %c0_i32 = arith.constant 0 : i32
    %c0_i32_0 = arith.constant 0 : i32
    %c0_i32_1 = arith.constant 0 : i32
    return %c0_i32, %c0_i32_0 : i32, i32
  }
  func.func @transform_11(%arg0: i32) -> (i32, i32, i32) {
    %c0_i32 = arith.constant 0 : i32
    %c0_i32_0 = arith.constant 0 : i32
    %c0_i32_1 = arith.constant 0 : i32
    return %arg0, %c0_i32, %c0_i32_0 : i32, i32, i32
  }
}

</mosaic_0001>

<llo_original>
// kernel: lenet5_32_forward.1
$region0: #{lenet5_32_forward.1}
  #allocation0 [shape = 'u32[]', space=smem, size = 0x4, offset = 0x4, fixed_abs, tag = 'smem constant byte address 0x4 - core index']
  #allocation1 [shape = 'u32[144,128]{1,0:T(1,128)}', space=vmem, size = 0x12000, scoped, tag = 'internal scratch']
  #allocation2 [shape = 'f32[72,128]{1,0:T(8,128)}', space=vmem, size = 0x9000, scoped, tag = 'scratch operand']
  #allocation3 [shape = 'f32[72,128]{1,0:T(8,128)}', space=vmem, size = 0x9000, scoped, tag = 'scratch operand']
  #allocation4 [shape = 'f32[72,128]{1,0:T(8,128)}', space=vmem, size = 0x9000, scoped, tag = 'scratch operand']
  #allocation5 [shape = 'f32[72,256]{1,0:T(8,128)}', space=vmem, size = 0x12000, scoped, tag = 'scratch operand']
  %s0 = inlined_call_operand.vmem [shape: bf16[8,32,544], index: 0, kind: input, shape index: {}]
  %s1 = inlined_call_operand.vmem [shape: bf16[544,256], index: 1, kind: input, shape index: {}]
  %s2 = inlined_call_operand.vmem [shape: f32[1,128], index: 2, kind: input, shape index: {}]
  %s3 = inlined_call_operand.vmem [shape: bf16[5,128,256], index: 3, kind: input, shape index: {}]
  %s4 = inlined_call_operand.vmem [shape: f32[1,256], index: 4, kind: input, shape index: {}]
  %s5 = inlined_call_operand.vmem [shape: bf16[5,128,256], index: 5, kind: input, shape index: {}]
  %s6 = inlined_call_operand.vmem [shape: f32[1,256], index: 6, kind: input, shape index: {}]
  %s7 = inlined_call_operand.vmem [shape: bf16[2,256,128], index: 7, kind: input, shape index: {}]
  %s8 = inlined_call_operand.vmem [shape: f32[1,128], index: 8, kind: input, shape index: {}]
  %s9 = inlined_call_operand.vmem [shape: bf16[128,128], index: 9, kind: input, shape index: {}]
  %s10 = inlined_call_operand.vmem [shape: f32[1,128], index: 10, kind: input, shape index: {}]
  %s11 = inlined_call_operand.vmem [shape: f32[8,1,128], index: 11, kind: output, shape index: {}]
  %s12 = sld [smem:[#allocation0]]
  $region77: #{lenet5_32_forward.1} parent=0
    _
  %s14 = ssub.s32 1, %s12
  %s15 = scalar_select 0, %s14, %s12
  loop: start=0, step=1, limit=4
  $region2: #{lenet5_32_forward.1} parent=0 // loop_pre_header
    _
  $region3: #{lenet5_32_forward.1} parent=0 // loop_header
    %s17 = sphi 0, %s21
    %p18 = scmp.ge.s32.totalorder %s17, 4
    %s27 = sphi 0, %s29
    %s30 = sphi 0, %s27
    %s31 = sphi 0, %s30
    %s47 = sphi 0, %s31
    %s51 = sphi 0, %s51
    %s53 = sphi 0, %s51
    %s54 = sphi 0, %s53
    %s68 = sphi 0, %s54
    %s72 = sphi 0, %s72
    %s74 = sphi 0, %s72
    %s75 = sphi 0, %s74
    %s89 = sphi 0, %s75
    %s93 = sphi 0, %s93
    %s95 = sphi 0, %s93
    %s96 = sphi 0, %s95
    %s110 = sphi 0, %s96
    %s114 = sphi 0, %s114
    %s116 = sphi 0, %s114
    %s117 = sphi 0, %s116
    %s131 = sphi 0, %s117
    %s135 = sphi 0, %s135
    %s137 = sphi 0, %s135
    %s138 = sphi 0, %s137
    %s152 = sphi 0, %s138
    %s156 = sphi 0, %s156
    %s158 = sphi 0, %s156
    %s159 = sphi 0, %s158
    %s173 = sphi 0, %s159
    %s177 = sphi 0, %s177
    %s179 = sphi 0, %s177
    %s180 = sphi 0, %s179
    %s194 = sphi 0, %s180
    %s198 = sphi 0, %s198
    %s200 = sphi 0, %s198
    %s201 = sphi 0, %s200
    %s215 = sphi 0, %s201
    %s219 = sphi 0, %s219
    %s221 = sphi 0, %s219
    %s222 = sphi 0, %s221
    %s236 = sphi 0, %s222
    %s240 = sphi 0, %s240
    %s242 = sphi 0, %s240
    %s243 = sphi 0, %s242
    %s257 = sphi 0, %s243
    %s263 = sphi 0, %s265
    %s266 = sphi 0, %s263
    %s267 = sphi 0, %s266
    %s283 = sphi 0, %s267
  $region4: #{lenet5_32_forward.1} parent=0 // loop_header_branch
    %20 = sbr.rel (%p18) target = $region8
  $region5: #{lenet5_32_forward.1} parent=0 // loop_body
    %s22 = ssub.s32 %s17, 1
    %s23 = ssub.s32 %s17, 2
    %s24 = sadd.s32 %s17, 1
    %s25 = ssub.s32 %s17, %s24
    %p26 = scmp.eq.s32.totalorder %s25, 0
    %s28 = sadd.s32 %s27, 1
    %s29 = scalar_select %p26, %s27, %s28
    %p32 = pneg %p26
    %p33 = scmp.eq.s32.totalorder %s17, 1
    %p34 = por %p32, %p33
    %p35 = scmp.ne.s32.totalorder %s27, %s30
    %p36 = scmp.eq.s32.totalorder %s17, 0
    %p37 = por %p35, %p36
    %p38 = scmp.ne.s32.totalorder %s27, %s30
    %p39 = scmp.eq.s32.totalorder %s22, 1
    %p40 = por %p38, %p39
    %p41 = scmp.ne.s32.totalorder %s30, %s31
    %p42 = scmp.eq.s32.totalorder %s22, 0
    %p43 = por %p41, %p42
    %p44 = scmp.ne.s32.totalorder %s30, %s31
    %p45 = scmp.eq.s32.totalorder %s23, 1
    %p46 = por %p44, %p45
    %p48 = scmp.ne.s32.totalorder %s31, %s47
    %p49 = scmp.eq.s32.totalorder %s23, 0
    %p50 = por %p48, %p49
    %s52 = sadd.s32 %s51, 1
    %p55 = scmp.eq.s32.totalorder %s17, 1
    %p56 = scmp.ne.s32.totalorder %s51, %s53
    %p57 = scmp.eq.s32.totalorder %s17, 0
    %p58 = por %p56, %p57
    %p59 = scmp.ne.s32.totalorder %s51, %s53
    %p60 = scmp.eq.s32.totalorder %s22, 1
    %p61 = por %p59, %p60
    %p62 = scmp.ne.s32.totalorder %s53, %s54
    %p63 = scmp.eq.s32.totalorder %s22, 0
    %p64 = por %p62, %p63
    %p65 = scmp.ne.s32.totalorder %s53, %s54
    %p66 = scmp.eq.s32.totalorder %s23, 1
    %p67 = por %p65, %p66
    %p69 = scmp.ne.s32.totalorder %s54, %s68
    %p70 = scmp.eq.s32.totalorder %s23, 0
    %p71 = por %p69, %p70
    %s73 = sadd.s32 %s72, 1
    %p76 = scmp.eq.s32.totalorder %s17, 1
    %p77 = scmp.ne.s32.totalorder %s72, %s74
    %p78 = scmp.eq.s32.totalorder %s17, 0
    %p79 = por %p77, %p78
    %p80 = scmp.ne.s32.totalorder %s72, %s74
    %p81 = scmp.eq.s32.totalorder %s22, 1
    %p82 = por %p80, %p81
    %p83 = scmp.ne.s32.totalorder %s74, %s75
    %p84 = scmp.eq.s32.totalorder %s22, 0
    %p85 = por %p83, %p84
    %p86 = scmp.ne.s32.totalorder %s74, %s75
    %p87 = scmp.eq.s32.totalorder %s23, 1
    %p88 = por %p86, %p87
    %p90 = scmp.ne.s32.totalorder %s75, %s89
    %p91 = scmp.eq.s32.totalorder %s23, 0
    %p92 = por %p90, %p91
    %s94 = sadd.s32 %s93, 1
    %p97 = scmp.eq.s32.totalorder %s17, 1
    %p98 = scmp.ne.s32.totalorder %s93, %s95
    %p99 = scmp.eq.s32.totalorder %s17, 0
    %p100 = por %p98, %p99
    %p101 = scmp.ne.s32.totalorder %s93, %s95
    %p102 = scmp.eq.s32.totalorder %s22, 1
    %p103 = por %p101, %p102
    %p104 = scmp.ne.s32.totalorder %s95, %s96
    %p105 = scmp.eq.s32.totalorder %s22, 0
    %p106 = por %p104, %p105
    %p107 = scmp.ne.s32.totalorder %s95, %s96
    %p108 = scmp.eq.s32.totalorder %s23, 1
    %p109 = por %p107, %p108
    %p111 = scmp.ne.s32.totalorder %s96, %s110
    %p112 = scmp.eq.s32.totalorder %s23, 0
    %p113 = por %p111, %p112
    %s115 = sadd.s32 %s114, 1
    %p118 = scmp.eq.s32.totalorder %s17, 1
    %p119 = scmp.ne.s32.totalorder %s114, %s116
    %p120 = scmp.eq.s32.totalorder %s17, 0
    %p121 = por %p119, %p120
    %p122 = scmp.ne.s32.totalorder %s114, %s116
    %p123 = scmp.eq.s32.totalorder %s22, 1
    %p124 = por %p122, %p123
    %p125 = scmp.ne.s32.totalorder %s116, %s117
    %p126 = scmp.eq.s32.totalorder %s22, 0
    %p127 = por %p125, %p126
    %p128 = scmp.ne.s32.totalorder %s116, %s117
    %p129 = scmp.eq.s32.totalorder %s23, 1
    %p130 = por %p128, %p129
    %p132 = scmp.ne.s32.totalorder %s117, %s131
    %p133 = scmp.eq.s32.totalorder %s23, 0
    %p134 = por %p132, %p133
    %s136 = sadd.s32 %s135, 1
    %p139 = scmp.eq.s32.totalorder %s17, 1
    %p140 = scmp.ne.s32.totalorder %s135, %s137
    %p141 = scmp.eq.s32.totalorder %s17, 0
    %p142 = por %p140, %p141
    %p143 = scmp.ne.s32.totalorder %s135, %s137
    %p144 = scmp.eq.s32.totalorder %s22, 1
    %p145 = por %p143, %p144
    %p146 = scmp.ne.s32.totalorder %s137, %s138
    %p147 = scmp.eq.s32.totalorder %s22, 0
    %p148 = por %p146, %p147
    %p149 = scmp.ne.s32.totalorder %s137, %s138
    %p150 = scmp.eq.s32.totalorder %s23, 1
    %p151 = por %p149, %p150
    %p153 = scmp.ne.s32.totalorder %s138, %s152
    %p154 = scmp.eq.s32.totalorder %s23, 0
    %p155 = por %p153, %p154
    %s157 = sadd.s32 %s156, 1
    %p160 = scmp.eq.s32.totalorder %s17, 1
    %p161 = scmp.ne.s32.totalorder %s156, %s158
    %p162 = scmp.eq.s32.totalorder %s17, 0
    %p163 = por %p161, %p162
    %p164 = scmp.ne.s32.totalorder %s156, %s158
    %p165 = scmp.eq.s32.totalorder %s22, 1
    %p166 = por %p164, %p165
    %p167 = scmp.ne.s32.totalorder %s158, %s159
    %p168 = scmp.eq.s32.totalorder %s22, 0
    %p169 = por %p167, %p168
    %p170 = scmp.ne.s32.totalorder %s158, %s159
    %p171 = scmp.eq.s32.totalorder %s23, 1
    %p172 = por %p170, %p171
    %p174 = scmp.ne.s32.totalorder %s159, %s173
    %p175 = scmp.eq.s32.totalorder %s23, 0
    %p176 = por %p174, %p175
    %s178 = sadd.s32 %s177, 1
    %p181 = scmp.eq.s32.totalorder %s17, 1
    %p182 = scmp.ne.s32.totalorder %s177, %s179
    %p183 = scmp.eq.s32.totalorder %s17, 0
    %p184 = por %p182, %p183
    %p185 = scmp.ne.s32.totalorder %s177, %s179
    %p186 = scmp.eq.s32.totalorder %s22, 1
    %p187 = por %p185, %p186
    %p188 = scmp.ne.s32.totalorder %s179, %s180
    %p189 = scmp.eq.s32.totalorder %s22, 0
    %p190 = por %p188, %p189
    %p191 = scmp.ne.s32.totalorder %s179, %s180
    %p192 = scmp.eq.s32.totalorder %s23, 1
    %p193 = por %p191, %p192
    %p195 = scmp.ne.s32.totalorder %s180, %s194
    %p196 = scmp.eq.s32.totalorder %s23, 0
    %p197 = por %p195, %p196
    %s199 = sadd.s32 %s198, 1
    %p202 = scmp.eq.s32.totalorder %s17, 1
    %p203 = scmp.ne.s32.totalorder %s198, %s200
    %p204 = scmp.eq.s32.totalorder %s17, 0
    %p205 = por %p203, %p204
    %p206 = scmp.ne.s32.totalorder %s198, %s200
    %p207 = scmp.eq.s32.totalorder %s22, 1
    %p208 = por %p206, %p207
    %p209 = scmp.ne.s32.totalorder %s200, %s201
    %p210 = scmp.eq.s32.totalorder %s22, 0
    %p211 = por %p209, %p210
    %p212 = scmp.ne.s32.totalorder %s200, %s201
    %p213 = scmp.eq.s32.totalorder %s23, 1
    %p214 = por %p212, %p213
    %p216 = scmp.ne.s32.totalorder %s201, %s215
    %p217 = scmp.eq.s32.totalorder %s23, 0
    %p218 = por %p216, %p217
    %s220 = sadd.s32 %s219, 1
    %p223 = scmp.eq.s32.totalorder %s17, 1
    %p224 = scmp.ne.s32.totalorder %s219, %s221
    %p225 = scmp.eq.s32.totalorder %s17, 0
    %p226 = por %p224, %p225
    %p227 = scmp.ne.s32.totalorder %s219, %s221
    %p228 = scmp.eq.s32.totalorder %s22, 1
    %p229 = por %p227, %p228
    %p230 = scmp.ne.s32.totalorder %s221, %s222
    %p231 = scmp.eq.s32.totalorder %s22, 0
    %p232 = por %p230, %p231
    %p233 = scmp.ne.s32.totalorder %s221, %s222
    %p234 = scmp.eq.s32.totalorder %s23, 1
    %p235 = por %p233, %p234
    %p237 = scmp.ne.s32.totalorder %s222, %s236
    %p238 = scmp.eq.s32.totalorder %s23, 0
    %p239 = por %p237, %p238
    %s241 = sadd.s32 %s240, 1
    %p244 = scmp.eq.s32.totalorder %s17, 1
    %p245 = scmp.ne.s32.totalorder %s240, %s242
    %p246 = scmp.eq.s32.totalorder %s17, 0
    %p247 = por %p245, %p246
    %p248 = scmp.ne.s32.totalorder %s240, %s242
    %p249 = scmp.eq.s32.totalorder %s22, 1
    %p250 = por %p248, %p249
    %p251 = scmp.ne.s32.totalorder %s242, %s243
    %p252 = scmp.eq.s32.totalorder %s22, 0
    %p253 = por %p251, %p252
    %p254 = scmp.ne.s32.totalorder %s242, %s243
    %p255 = scmp.eq.s32.totalorder %s23, 1
    %p256 = por %p254, %p255
    %p258 = scmp.ne.s32.totalorder %s243, %s257
    %p259 = scmp.eq.s32.totalorder %s23, 0
    %p260 = por %p258, %p259
    %s261 = ssub.s32 %s17, %s24
    %p262 = scmp.eq.s32.totalorder %s261, 0
    %s264 = sadd.s32 %s263, 1
    %s265 = scalar_select %p262, %s263, %s264
    %p268 = pneg %p262
    %p269 = scmp.eq.s32.totalorder %s17, 1
    %p270 = por %p268, %p269
    %p271 = scmp.ne.s32.totalorder %s263, %s266
    %p272 = scmp.eq.s32.totalorder %s17, 0
    %p273 = por %p271, %p272
    %p274 = scmp.ne.s32.totalorder %s263, %s266
    %p275 = scmp.eq.s32.totalorder %s22, 1
    %p276 = por %p274, %p275
    %p277 = scmp.ne.s32.totalorder %s266, %s267
    %p278 = scmp.eq.s32.totalorder %s22, 0
    %p279 = por %p277, %p278
    %p280 = scmp.ne.s32.totalorder %s266, %s267
    %p281 = scmp.eq.s32.totalorder %s23, 1
    %p282 = por %p280, %p281
    %p284 = scmp.ne.s32.totalorder %s267, %s283
    %p285 = scmp.eq.s32.totalorder %s23, 0
    %p286 = por %p284, %p285
    %p287 = scmp.le.s32.totalorder 1, %s17
    %p288 = scmp.lt.s32.totalorder %s17, 3
    %p289 = pnand %p287, %p288
    %p290 = pneg %p289
    // Predicated region
    $region9: #{lenet5_32_forward.1} parent=5 // pred_check
      _
    $region10: #{lenet5_32_forward.1} parent=5 // pred_check_branch
      %292 = sbr.rel (%p289) target = $region12
    $region11: #{lenet5_32_forward.1} parent=5 // pred_region
      %s293 = ssub.s32 %s17, 1
      // Predicated region
      $region13: #{lenet5_32_forward.1} parent=11 // pred_check
        %p294 = pneg %p64
      $region14: #{lenet5_32_forward.1} parent=11 // pred_check_branch
        %296 = sbr.rel (%p294) target = $region16
      $region15: #{lenet5_32_forward.1} parent=11 // pred_region
        _
      $region16: #{lenet5_32_forward.1} parent=11 // pred_fallthru
        _
      // Predicated region
      $region17: #{lenet5_32_forward.1} parent=11 // pred_check
        %p297 = pneg %p85
      $region18: #{lenet5_32_forward.1} parent=11 // pred_check_branch
        %299 = sbr.rel (%p297) target = $region20
      $region19: #{lenet5_32_forward.1} parent=11 // pred_region
        _
      $region20: #{lenet5_32_forward.1} parent=11 // pred_fallthru
        _
      // Predicated region
      $region21: #{lenet5_32_forward.1} parent=11 // pred_check
        %p300 = pneg %p106
      $region22: #{lenet5_32_forward.1} parent=11 // pred_check_branch
        %302 = sbr.rel (%p300) target = $region24
      $region23: #{lenet5_32_forward.1} parent=11 // pred_region
        _
      $region24: #{lenet5_32_forward.1} parent=11 // pred_fallthru
        _
      // Predicated region
      $region25: #{lenet5_32_forward.1} parent=11 // pred_check
        %p303 = pneg %p127
      $region26: #{lenet5_32_forward.1} parent=11 // pred_check_branch
        %305 = sbr.rel (%p303) target = $region28
      $region27: #{lenet5_32_forward.1} parent=11 // pred_region
        _
      $region28: #{lenet5_32_forward.1} parent=11 // pred_fallthru
        _
      // Predicated region
      $region29: #{lenet5_32_forward.1} parent=11 // pred_check
        %p306 = pneg %p148
      $region30: #{lenet5_32_forward.1} parent=11 // pred_check_branch
        %308 = sbr.rel (%p306) target = $region32
      $region31: #{lenet5_32_forward.1} parent=11 // pred_region
        _
      $region32: #{lenet5_32_forward.1} parent=11 // pred_fallthru
        _
      // Predicated region
      $region33: #{lenet5_32_forward.1} parent=11 // pred_check
        %p309 = pneg %p169
      $region34: #{lenet5_32_forward.1} parent=11 // pred_check_branch
        %311 = sbr.rel (%p309) target = $region36
      $region35: #{lenet5_32_forward.1} parent=11 // pred_region
        _
      $region36: #{lenet5_32_forward.1} parent=11 // pred_fallthru
        _
      // Predicated region
      $region37: #{lenet5_32_forward.1} parent=11 // pred_check
        %p312 = pneg %p190
      $region38: #{lenet5_32_forward.1} parent=11 // pred_check_branch
        %314 = sbr.rel (%p312) target = $region40
      $region39: #{lenet5_32_forward.1} parent=11 // pred_region
        _
      $region40: #{lenet5_32_forward.1} parent=11 // pred_fallthru
        _
      // Predicated region
      $region41: #{lenet5_32_forward.1} parent=11 // pred_check
        %p315 = pneg %p211
      $region42: #{lenet5_32_forward.1} parent=11 // pred_check_branch
        %317 = sbr.rel (%p315) target = $region44
      $region43: #{lenet5_32_forward.1} parent=11 // pred_region
        _
      $region44: #{lenet5_32_forward.1} parent=11 // pred_fallthru
        _
      // Predicated region
      $region45: #{lenet5_32_forward.1} parent=11 // pred_check
        %p318 = pneg %p232
      $region46: #{lenet5_32_forward.1} parent=11 // pred_check_branch
        %320 = sbr.rel (%p318) target = $region48
      $region47: #{lenet5_32_forward.1} parent=11 // pred_region
        _
      $region48: #{lenet5_32_forward.1} parent=11 // pred_fallthru
        _
      // Predicated region
      $region49: #{lenet5_32_forward.1} parent=11 // pred_check
        %p321 = pneg %p253
      $region50: #{lenet5_32_forward.1} parent=11 // pred_check_branch
        %323 = sbr.rel (%p321) target = $region52
      $region51: #{lenet5_32_forward.1} parent=11 // pred_region
        _
      $region52: #{lenet5_32_forward.1} parent=11 // pred_fallthru
        _
    $region12: #{lenet5_32_forward.1} parent=5 // pred_fallthru
      _
    %p324 = scmp.lt.s32.totalorder %s17, 2
    // Predicated region
    $region53: #{lenet5_32_forward.1} parent=5 // pred_check
      %p325 = pneg %p324
    $region54: #{lenet5_32_forward.1} parent=5 // pred_check_branch
      %327 = sbr.rel (%p325) target = $region56
    $region55: #{lenet5_32_forward.1} parent=5 // pred_region
      // Predicated region
      $region57: #{lenet5_32_forward.1} parent=55 // pred_check
        %p328 = pneg %p37
      $region58: #{lenet5_32_forward.1} parent=55 // pred_check_branch
        %330 = sbr.rel (%p328) target = $region60
      $region59: #{lenet5_32_forward.1} parent=55 // pred_region
        %s331 = smul.u32 4, %s17
        %p332 = scmp.lt.s32.totalorder %s331, 7
        %s333 = scalar_select %p332, %s331, 7
        %s334 = smul.addr %s333, 20
        %s335 = smul.addr %s334, 4
        %s336 = scalar_lea.vmem %s0, %s335
        %s337 = smul.u32 4, %s17
      $region60: #{lenet5_32_forward.1} parent=55 // pred_fallthru
        _
    $region56: #{lenet5_32_forward.1} parent=5 // pred_fallthru
      _
    %p338 = scmp.le.s32.totalorder 1, %s17
    %p339 = scmp.lt.s32.totalorder %s17, 3
    %p340 = pnand %p338, %p339
    %p341 = pneg %p340
    // Predicated region
    $region61: #{lenet5_32_forward.1} parent=5 // pred_check
      _
    $region62: #{lenet5_32_forward.1} parent=5 // pred_check_branch
      %343 = sbr.rel (%p340) target = $region64
    $region63: #{lenet5_32_forward.1} parent=5 // pred_region
      %s344 = ssub.s32 %s17, 1
      %s345 = smul.u32 4, %s22
      %p346 = scmp.lt.s32.totalorder %s345, 7
      %s347 = scalar_select %p346, %s345, 7
      %s348 = smul.addr %s347, 20
      %s349 = smul.addr %s348, 4
      %s350 = scalar_lea.vmem %s0, %s349
      %p351 = pneg %p43
      %p352 = pneg %p40
      %p353 = pneg %p64
      %p354 = pneg %p61
      %p355 = pneg %p85
      %p356 = pneg %p82
      %p357 = pneg %p106
      %p358 = pneg %p103
      %p359 = pneg %p127
      %p360 = pneg %p124
      %p361 = pneg %p148
      %p362 = pneg %p145
      %p363 = pneg %p169
      %p364 = pneg %p166
      %p365 = pneg %p190
      %p366 = pneg %p187
      %p367 = pneg %p211
      %p368 = pneg %p208
      %p369 = pneg %p232
      %p370 = pneg %p229
      %p371 = pneg %p253
      %p372 = pneg %p250
      %p373 = pneg %p279
      %p374 = pneg %p276
      %s375 = smul.u32 4, %s22
      %p376 = scmp.lt.s32.totalorder %s375, 7
      %s377 = scalar_select %p376, %s375, 7
      %s378 = scalar_lea.vmem %s11, %s377
      %s379 = smul.u32 4, %s22
      %p380 = scmp.lt.s32.totalorder %s379, 7
      %s381 = scalar_select %p380, %s379, 7
      %s382 = smul.addr %s381, 20
      %s383 = smul.addr %s382, 4
      %s384 = scalar_lea.vmem %s0, %s383
      %s385 = smul.u32 4, %s22
      %s386 = smul.u32 4, %s22
      %p387 = scmp.lt.s32.totalorder %s386, 7
      %s388 = scalar_select %p387, %s386, 7
      %s389 = scalar_lea.vmem %s11, %s388
      %s390 = smul.u32 4, %s22
      %v392 = vld [vmem:[%s384] sm:$0xff]
      %v393 = vld [vmem:[%s384 + $0x8] sm:$0xff]
      %v394 = vld [vmem:[%s384 + $0x10] sm:$0xf]
      %v395 = vld [vmem:[%s384 + $0x14] sm:$0xff]
      %v396 = vld [vmem:[%s384 + $0x1c] sm:$0xff]
      %v397 = vld [vmem:[%s384 + $0x24] sm:$0xf]
      %v398 = vld [vmem:[%s384 + $0x28] sm:$0xff]
      %v399 = vld [vmem:[%s384 + $0x30] sm:$0xff]
      %v400 = vld [vmem:[%s384 + $0x38] sm:$0xf]
      %v401 = vld [vmem:[%s384 + $0x3c] sm:$0xff]
      %v402 = vld [vmem:[%s384 + $0x44] sm:$0xff]
      %v403 = vld [vmem:[%s384 + $0x4c] sm:$0xf]
      %v404 = vld [vmem:[%s384 + $0x50] sm:$0xff]
      %v405 = vld [vmem:[%s384 + $0x58] sm:$0xff]
      %v406 = vld [vmem:[%s384 + $0x60] sm:$0xf]
      %v407 = vld [vmem:[%s384 + $0x64] sm:$0xff]
      %v408 = vld [vmem:[%s384 + $0x6c] sm:$0xff]
      %v409 = vld [vmem:[%s384 + $0x74] sm:$0xf]
      %v410 = vld [vmem:[%s384 + $0x78] sm:$0xff]
      %v411 = vld [vmem:[%s384 + $0x80] sm:$0xff]
      %v412 = vld [vmem:[%s384 + $0x88] sm:$0xf]
      %v413 = vld [vmem:[%s384 + $0x8c] sm:$0xff]
      %v414 = vld [vmem:[%s384 + $0x94] sm:$0xff]
      %v415 = vld [vmem:[%s384 + $0x9c] sm:$0xf]
      %v416 = vld [vmem:[%s384 + $0xa0] sm:$0xff]
      %v417 = vld [vmem:[%s384 + $0xa8] sm:$0xff]
      %v418 = vld [vmem:[%s384 + $0xb0] sm:$0xf]
      %v419 = vld [vmem:[%s384 + $0xb4] sm:$0xff]
      %v420 = vld [vmem:[%s384 + $0xbc] sm:$0xff]
      %v421 = vld [vmem:[%s384 + $0xc4] sm:$0xf]
      %v422 = vld [vmem:[%s384 + $0xc8] sm:$0xff]
      %v423 = vld [vmem:[%s384 + $0xd0] sm:$0xff]
      %v424 = vld [vmem:[%s384 + $0xd8] sm:$0xf]
      %v425 = vld [vmem:[%s384 + $0xdc] sm:$0xff]
      %v426 = vld [vmem:[%s384 + $0xe4] sm:$0xff]
      %v427 = vld [vmem:[%s384 + $0xec] sm:$0xf]
      %v428 = vld [vmem:[%s384 + $0xf0] sm:$0xff]
      %v429 = vld [vmem:[%s384 + $0xf8] sm:$0xff]
      %v430 = vld [vmem:[%s384 + $0x100] sm:$0xf]
      %v431 = vld [vmem:[%s384 + $0x104] sm:$0xff]
      %v432 = vld [vmem:[%s384 + $0x10c] sm:$0xff]
      %v433 = vld [vmem:[%s384 + $0x114] sm:$0xf]
      %v434 = vld [vmem:[%s384 + $0x118] sm:$0xff]
      %v435 = vld [vmem:[%s384 + $0x120] sm:$0xff]
      %v436 = vld [vmem:[%s384 + $0x128] sm:$0xf]
      %v437 = vld [vmem:[%s384 + $0x12c] sm:$0xff]
      %v438 = vld [vmem:[%s384 + $0x134] sm:$0xff]
      %v439 = vld [vmem:[%s384 + $0x13c] sm:$0xf]
      %v440 = vld [vmem:[%s1] sm:$0xff]
      %v441 = vld [vmem:[%s1 + $0x8] sm:$0xff]
      %v442 = vld [vmem:[%s1 + $0x10] sm:$0xff]
      %v443 = vld [vmem:[%s1 + $0x18] sm:$0xff]
      %v444 = vld [vmem:[%s1 + $0x20] sm:$0xff]
      %v445 = vld [vmem:[%s1 + $0x28] sm:$0xff]
      %v446 = vld [vmem:[%s1 + $0x30] sm:$0xff]
      %v447 = vld [vmem:[%s1 + $0x38] sm:$0xff]
      %v448 = vld [vmem:[%s1 + $0x40] sm:$0xff]
      %v449 = vld [vmem:[%s1 + $0x48] sm:$0xff]
      %v450 = vld [vmem:[%s1 + $0x50] sm:$0xff]
      %v451 = vld [vmem:[%s1 + $0x58] sm:$0xff]
      %v452 = vld [vmem:[%s1 + $0x60] sm:$0xff]
      %v453 = vld [vmem:[%s1 + $0x68] sm:$0xff]
      %v454 = vld [vmem:[%s1 + $0x70] sm:$0xff]
      %v455 = vld [vmem:[%s1 + $0x78] sm:$0xff]
      %v456 = vld [vmem:[%s1 + $0x80] sm:$0xff]
      %v457 = vld [vmem:[%s1 + $0x88] sm:$0xff]
      %v458 = vld [vmem:[%s1 + $0x90] sm:$0xff]
      %v459 = vld [vmem:[%s1 + $0x98] sm:$0xff]
      %v460 = vld [vmem:[%s1 + $0xa0] sm:$0xff]
      %v461 = vld [vmem:[%s1 + $0xa8] sm:$0xff]
      %v462 = vld [vmem:[%s1 + $0xb0] sm:$0xff]
      %v463 = vld [vmem:[%s1 + $0xb8] sm:$0xff]
      %v464 = vld [vmem:[%s1 + $0xc0] sm:$0xff]
      %v465 = vld [vmem:[%s1 + $0xc8] sm:$0xff]
      %v466 = vld [vmem:[%s1 + $0xd0] sm:$0xff]
      %v467 = vld [vmem:[%s1 + $0xd8] sm:$0xff]
      %v468 = vld [vmem:[%s1 + $0xe0] sm:$0xff]
      %v469 = vld [vmem:[%s1 + $0xe8] sm:$0xff]
      %v470 = vld [vmem:[%s1 + $0xf0] sm:$0xff]
      %v471 = vld [vmem:[%s1 + $0xf8] sm:$0xff]
      %v472 = vld [vmem:[%s1 + $0x100] sm:$0xff]
      %v473 = vld [vmem:[%s1 + $0x108] sm:$0xff]
      %v474 = vld [vmem:[%s1 + $0x110] sm:$0xff]
      %v475 = vld [vmem:[%s1 + $0x118] sm:$0xff]
      %v476 = vld [vmem:[%s1 + $0x120] sm:$0xff]
      %v477 = vld [vmem:[%s1 + $0x128] sm:$0xff]
      %v478 = vld [vmem:[%s1 + $0x130] sm:$0xff]
      %v479 = vld [vmem:[%s1 + $0x138] sm:$0xff]
      %v480 = vld [vmem:[%s1 + $0x140] sm:$0xff]
      %v481 = vld [vmem:[%s1 + $0x148] sm:$0xff]
      %v482 = vld [vmem:[%s1 + $0x150] sm:$0xff]
      %v483 = vld [vmem:[%s1 + $0x158] sm:$0xff]
      %v484 = vld [vmem:[%s1 + $0x160] sm:$0xff]
      %v485 = vld [vmem:[%s1 + $0x168] sm:$0xff]
      %v486 = vld [vmem:[%s1 + $0x170] sm:$0xff]
      %v487 = vld [vmem:[%s1 + $0x178] sm:$0xff]
      %v488 = vld [vmem:[%s1 + $0x180] sm:$0xff]
      %v489 = vld [vmem:[%s1 + $0x188] sm:$0xff]
      %v490 = vld [vmem:[%s1 + $0x190] sm:$0xff]
      %v491 = vld [vmem:[%s1 + $0x198] sm:$0xff]
      %v492 = vld [vmem:[%s1 + $0x1a0] sm:$0xff]
      %v493 = vld [vmem:[%s1 + $0x1a8] sm:$0xff]
      %v494 = vld [vmem:[%s1 + $0x1b0] sm:$0xff]
      %v495 = vld [vmem:[%s1 + $0x1b8] sm:$0xff]
      %v496 = vld [vmem:[%s1 + $0x1c0] sm:$0xff]
      %v497 = vld [vmem:[%s1 + $0x1c8] sm:$0xff]
      %v498 = vld [vmem:[%s1 + $0x1d0] sm:$0xff]
      %v499 = vld [vmem:[%s1 + $0x1d8] sm:$0xff]
      %v500 = vld [vmem:[%s1 + $0x1e0] sm:$0xff]
      %v501 = vld [vmem:[%s1 + $0x1e8] sm:$0xff]
      %v502 = vld [vmem:[%s1 + $0x1f0] sm:$0xff]
      %v503 = vld [vmem:[%s1 + $0x1f8] sm:$0xff]
      %v504 = vld [vmem:[%s1 + $0x200] sm:$0xff]
      %v505 = vld [vmem:[%s1 + $0x208] sm:$0xff]
      %v506 = vld [vmem:[%s1 + $0x210] sm:$0xff]
      %v507 = vld [vmem:[%s1 + $0x218] sm:$0xff]
      %v556 = vunpack.c.l.b16 %v392
      %v557 = vunpack.c.h.b16 %v392
      %v558 = vunpack.c.l.b16 %v393
      %v559 = vunpack.c.h.b16 %v393
      %v560 = vunpack.c.l.b16 %v394
      %v561 = vunpack.c.l.b16 %v395
      %v562 = vunpack.c.h.b16 %v395
      %v563 = vunpack.c.l.b16 %v396
      %v564 = vunpack.c.h.b16 %v396
      %v565 = vunpack.c.l.b16 %v397
      %v566 = vunpack.c.l.b16 %v398
      %v567 = vunpack.c.h.b16 %v398
      %v568 = vunpack.c.l.b16 %v399
      %v569 = vunpack.c.h.b16 %v399
      %v570 = vunpack.c.l.b16 %v400
      %v571 = vunpack.c.l.b16 %v401
      %v572 = vunpack.c.h.b16 %v401
      %v573 = vunpack.c.l.b16 %v402
      %v574 = vunpack.c.h.b16 %v402
      %v575 = vunpack.c.l.b16 %v403
      %v576 = vunpack.c.l.b16 %v404
      %v577 = vunpack.c.h.b16 %v404
      %v578 = vunpack.c.l.b16 %v405
      %v579 = vunpack.c.h.b16 %v405
      %v580 = vunpack.c.l.b16 %v406
      %v581 = vunpack.c.l.b16 %v407
      %v582 = vunpack.c.h.b16 %v407
      %v583 = vunpack.c.l.b16 %v408
      %v584 = vunpack.c.h.b16 %v408
      %v585 = vunpack.c.l.b16 %v409
      %v586 = vunpack.c.l.b16 %v410
      %v587 = vunpack.c.h.b16 %v410
      %v588 = vunpack.c.l.b16 %v411
      %v589 = vunpack.c.h.b16 %v411
      %v590 = vunpack.c.l.b16 %v412
      %v591 = vunpack.c.l.b16 %v413
      %v592 = vunpack.c.h.b16 %v413
      %v593 = vunpack.c.l.b16 %v414
      %v594 = vunpack.c.h.b16 %v414
      %v595 = vunpack.c.l.b16 %v415
      %v596 = vunpack.c.l.b16 %v416
      %v597 = vunpack.c.h.b16 %v416
      %v598 = vunpack.c.l.b16 %v417
      %v599 = vunpack.c.h.b16 %v417
      %v600 = vunpack.c.l.b16 %v418
      %v601 = vunpack.c.l.b16 %v419
      %v602 = vunpack.c.h.b16 %v419
      %v603 = vunpack.c.l.b16 %v420
      %v604 = vunpack.c.h.b16 %v420
      %v605 = vunpack.c.l.b16 %v421
      %v606 = vunpack.c.l.b16 %v422
      %v607 = vunpack.c.h.b16 %v422
      %v608 = vunpack.c.l.b16 %v423
      %v609 = vunpack.c.h.b16 %v423
      %v610 = vunpack.c.l.b16 %v424
      %v611 = vunpack.c.l.b16 %v425
      %v612 = vunpack.c.h.b16 %v425
      %v613 = vunpack.c.l.b16 %v426
      %v614 = vunpack.c.h.b16 %v426
      %v615 = vunpack.c.l.b16 %v427
      %v616 = vunpack.c.l.b16 %v428
      %v617 = vunpack.c.h.b16 %v428
      %v618 = vunpack.c.l.b16 %v429
      %v619 = vunpack.c.h.b16 %v429
      %v620 = vunpack.c.l.b16 %v430
      %v621 = vunpack.c.l.b16 %v431
      %v622 = vunpack.c.h.b16 %v431
      %v623 = vunpack.c.l.b16 %v432
      %v624 = vunpack.c.h.b16 %v432
      %v625 = vunpack.c.l.b16 %v433
      %v626 = vunpack.c.l.b16 %v434
      %v627 = vunpack.c.h.b16 %v434
      %v628 = vunpack.c.l.b16 %v435
      %v629 = vunpack.c.h.b16 %v435
      %v630 = vunpack.c.l.b16 %v436
      %v631 = vunpack.c.l.b16 %v437
      %v632 = vunpack.c.h.b16 %v437
      %v633 = vunpack.c.l.b16 %v438
      %v634 = vunpack.c.h.b16 %v438
      %v635 = vunpack.c.l.b16 %v439
      %v636 = vpack.c.b16 %v561, %v556
      %v637 = vpack.c.b16 %v562, %v557
      %v638 = vpack.c.b16 %v563, %v558
      %v639 = vpack.c.b16 %v564, %v559
      %v640 = vpack.c.b16 %v565, %v560
      %v641 = vpack.c.b16 %v571, %v566
      %v642 = vpack.c.b16 %v572, %v567
      %v643 = vpack.c.b16 %v573, %v568
      %v644 = vpack.c.b16 %v574, %v569
      %v645 = vpack.c.b16 %v575, %v570
      %v646 = vpack.c.b16 %v581, %v576
      %v647 = vpack.c.b16 %v582, %v577
      %v648 = vpack.c.b16 %v583, %v578
      %v649 = vpack.c.b16 %v584, %v579
      %v650 = vpack.c.b16 %v585, %v580
      %v651 = vpack.c.b16 %v591, %v586
      %v652 = vpack.c.b16 %v592, %v587
      %v653 = vpack.c.b16 %v593, %v588
      %v654 = vpack.c.b16 %v594, %v589
      %v655 = vpack.c.b16 %v595, %v590
      %v656 = vpack.c.b16 %v601, %v596
      %v657 = vpack.c.b16 %v602, %v597
      %v658 = vpack.c.b16 %v603, %v598
      %v659 = vpack.c.b16 %v604, %v599
      %v660 = vpack.c.b16 %v605, %v600
      %v661 = vpack.c.b16 %v611, %v606
      %v662 = vpack.c.b16 %v612, %v607
      %v663 = vpack.c.b16 %v613, %v608
      %v664 = vpack.c.b16 %v614, %v609
      %v665 = vpack.c.b16 %v615, %v610
      %v666 = vpack.c.b16 %v621, %v616
      %v667 = vpack.c.b16 %v622, %v617
      %v668 = vpack.c.b16 %v623, %v618
      %v669 = vpack.c.b16 %v624, %v619
      %v670 = vpack.c.b16 %v625, %v620
      %v671 = vpack.c.b16 %v631, %v626
      %v672 = vpack.c.b16 %v632, %v627
      %v673 = vpack.c.b16 %v633, %v628
      %v674 = vpack.c.b16 %v634, %v629
      %v675 = vpack.c.b16 %v635, %v630
      %v776 = vunpack.c.l.b16 %v440
      %v777 = vunpack.c.h.b16 %v440
      %v778 = vunpack.c.l.b16 %v441
      %v779 = vunpack.c.h.b16 %v441
      %v780 = vunpack.c.l.b16 %v442
      %v781 = vunpack.c.h.b16 %v442
      %v782 = vunpack.c.l.b16 %v443
      %v783 = vunpack.c.h.b16 %v443
      %v784 = vunpack.c.l.b16 %v444
      %v785 = vunpack.c.h.b16 %v444
      %v786 = vunpack.c.l.b16 %v445
      %v787 = vunpack.c.h.b16 %v445
      %v788 = vunpack.c.l.b16 %v446
      %v789 = vunpack.c.h.b16 %v446
      %v790 = vunpack.c.l.b16 %v447
      %v791 = vunpack.c.h.b16 %v447
      %v792 = vunpack.c.l.b16 %v448
      %v793 = vunpack.c.h.b16 %v448
      %v794 = vunpack.c.l.b16 %v449
      %v795 = vunpack.c.h.b16 %v449
      %v796 = vunpack.c.l.b16 %v450
      %v797 = vunpack.c.h.b16 %v450
      %v798 = vunpack.c.l.b16 %v451
      %v799 = vunpack.c.h.b16 %v451
      %v800 = vunpack.c.l.b16 %v452
      %v801 = vunpack.c.h.b16 %v452
      %v802 = vunpack.c.l.b16 %v453
      %v803 = vunpack.c.h.b16 %v453
      %v804 = vunpack.c.l.b16 %v454
      %v805 = vunpack.c.h.b16 %v454
      %v806 = vunpack.c.l.b16 %v455
      %v807 = vunpack.c.h.b16 %v455
      %v808 = vunpack.c.l.b16 %v456
      %v809 = vunpack.c.h.b16 %v456
      %v810 = vunpack.c.l.b16 %v457
      %v811 = vunpack.c.h.b16 %v457
      %v812 = vunpack.c.l.b16 %v458
      %v813 = vunpack.c.h.b16 %v458
      %v814 = vunpack.c.l.b16 %v459
      %v815 = vunpack.c.h.b16 %v459
      %v816 = vunpack.c.l.b16 %v460
      %v817 = vunpack.c.h.b16 %v460
      %v818 = vunpack.c.l.b16 %v461
      %v819 = vunpack.c.h.b16 %v461
      %v820 = vunpack.c.l.b16 %v462
      %v821 = vunpack.c.h.b16 %v462
      %v822 = vunpack.c.l.b16 %v463
      %v823 = vunpack.c.h.b16 %v463
      %v824 = vunpack.c.l.b16 %v464
      %v825 = vunpack.c.h.b16 %v464
      %v826 = vunpack.c.l.b16 %v465
      %v827 = vunpack.c.h.b16 %v465
      %v828 = vunpack.c.l.b16 %v466
      %v829 = vunpack.c.h.b16 %v466
      %v830 = vunpack.c.l.b16 %v467
      %v831 = vunpack.c.h.b16 %v467
      %v832 = vunpack.c.l.b16 %v468
      %v833 = vunpack.c.h.b16 %v468
      %v834 = vunpack.c.l.b16 %v469
      %v835 = vunpack.c.h.b16 %v469
      %v836 = vunpack.c.l.b16 %v470
      %v837 = vunpack.c.h.b16 %v470
      %v838 = vunpack.c.l.b16 %v471
      %v839 = vunpack.c.h.b16 %v471
      %v840 = vunpack.c.l.b16 %v472
      %v841 = vunpack.c.h.b16 %v472
      %v842 = vunpack.c.l.b16 %v473
      %v843 = vunpack.c.h.b16 %v473
      %v844 = vunpack.c.l.b16 %v474
      %v845 = vunpack.c.h.b16 %v474
      %v846 = vunpack.c.l.b16 %v475
      %v847 = vunpack.c.h.b16 %v475
      %v848 = vunpack.c.l.b16 %v476
      %v849 = vunpack.c.h.b16 %v476
      %v850 = vunpack.c.l.b16 %v477
      %v851 = vunpack.c.h.b16 %v477
      %v852 = vunpack.c.l.b16 %v478
      %v853 = vunpack.c.h.b16 %v478
      %v854 = vunpack.c.l.b16 %v479
      %v855 = vunpack.c.h.b16 %v479
      %v856 = vunpack.c.l.b16 %v480
      %v857 = vunpack.c.h.b16 %v480
      %v858 = vunpack.c.l.b16 %v481
      %v859 = vunpack.c.h.b16 %v481
      %v860 = vunpack.c.l.b16 %v482
      %v861 = vunpack.c.h.b16 %v482
      %v862 = vunpack.c.l.b16 %v483
      %v863 = vunpack.c.h.b16 %v483
      %v864 = vunpack.c.l.b16 %v484
      %v865 = vunpack.c.h.b16 %v484
      %v866 = vunpack.c.l.b16 %v485
      %v867 = vunpack.c.h.b16 %v485
      %v868 = vunpack.c.l.b16 %v486
      %v869 = vunpack.c.h.b16 %v486
      %v870 = vunpack.c.l.b16 %v487
      %v871 = vunpack.c.h.b16 %v487
      %v872 = vunpack.c.l.b16 %v488
      %v873 = vunpack.c.h.b16 %v488
      %v874 = vunpack.c.l.b16 %v489
      %v875 = vunpack.c.h.b16 %v489
      %v876 = vunpack.c.l.b16 %v490
      %v877 = vunpack.c.h.b16 %v490
      %v878 = vunpack.c.l.b16 %v491
      %v879 = vunpack.c.h.b16 %v491
      %v880 = vunpack.c.l.b16 %v492
      %v881 = vunpack.c.h.b16 %v492
      %v882 = vunpack.c.l.b16 %v493
      %v883 = vunpack.c.h.b16 %v493
      %v884 = vunpack.c.l.b16 %v494
      %v885 = vunpack.c.h.b16 %v494
      %v886 = vunpack.c.l.b16 %v495
      %v887 = vunpack.c.h.b16 %v495
      %v888 = vunpack.c.l.b16 %v496
      %v889 = vunpack.c.h.b16 %v496
      %v890 = vunpack.c.l.b16 %v497
      %v891 = vunpack.c.h.b16 %v497
      %v892 = vunpack.c.l.b16 %v498
      %v893 = vunpack.c.h.b16 %v498
      %v894 = vunpack.c.l.b16 %v499
      %v895 = vunpack.c.h.b16 %v499
      %v896 = vunpack.c.l.b16 %v500
      %v897 = vunpack.c.h.b16 %v500
      %v898 = vunpack.c.l.b16 %v501
      %v899 = vunpack.c.h.b16 %v501
      %v900 = vunpack.c.l.b16 %v502
      %v901 = vunpack.c.h.b16 %v502
      %v902 = vunpack.c.l.b16 %v503
      %v903 = vunpack.c.h.b16 %v503
      %v904 = vunpack.c.l.b16 %v504
      %v905 = vunpack.c.h.b16 %v504
      %v906 = vunpack.c.l.b16 %v505
      %v907 = vunpack.c.h.b16 %v505
      %v908 = vunpack.c.l.b16 %v506
      %v909 = vunpack.c.h.b16 %v506
      %v910 = vunpack.c.l.b16 %v507
      %v911 = vunpack.c.h.b16 %v507
      %v912 = vpack.c.b16 %v778, %v776
      %v913 = vpack.c.b16 %v779, %v777
      %v914 = vpack.c.b16 %v782, %v780
      %v915 = vpack.c.b16 %v783, %v781
      %v916 = vpack.c.b16 %v786, %v784
      %v917 = vpack.c.b16 %v787, %v785
      %v918 = vpack.c.b16 %v790, %v788
      %v919 = vpack.c.b16 %v791, %v789
      %v920 = vpack.c.b16 %v794, %v792
      %v921 = vpack.c.b16 %v795, %v793
      %v922 = vpack.c.b16 %v798, %v796
      %v923 = vpack.c.b16 %v799, %v797
      %v924 = vpack.c.b16 %v802, %v800
      %v925 = vpack.c.b16 %v803, %v801
      %v926 = vpack.c.b16 %v806, %v804
      %v927 = vpack.c.b16 %v807, %v805
      %v928 = vpack.c.b16 %v810, %v808
      %v929 = vpack.c.b16 %v811, %v809
      %v930 = vpack.c.b16 %v814, %v812
      %v931 = vpack.c.b16 %v815, %v813
      %v932 = vpack.c.b16 %v818, %v816
      %v933 = vpack.c.b16 %v819, %v817
      %v934 = vpack.c.b16 %v822, %v820
      %v935 = vpack.c.b16 %v823, %v821
      %v936 = vpack.c.b16 %v826, %v824
      %v937 = vpack.c.b16 %v827, %v825
      %v938 = vpack.c.b16 %v830, %v828
      %v939 = vpack.c.b16 %v831, %v829
      %v940 = vpack.c.b16 %v834, %v832
      %v941 = vpack.c.b16 %v835, %v833
      %v942 = vpack.c.b16 %v838, %v836
      %v943 = vpack.c.b16 %v839, %v837
      %v944 = vpack.c.b16 %v842, %v840
      %v945 = vpack.c.b16 %v843, %v841
      %v946 = vpack.c.b16 %v846, %v844
      %v947 = vpack.c.b16 %v847, %v845
      %v948 = vpack.c.b16 %v850, %v848
      %v949 = vpack.c.b16 %v851, %v849
      %v950 = vpack.c.b16 %v854, %v852
      %v951 = vpack.c.b16 %v855, %v853
      %v952 = vpack.c.b16 %v858, %v856
      %v953 = vpack.c.b16 %v859, %v857
      %v954 = vpack.c.b16 %v862, %v860
      %v955 = vpack.c.b16 %v863, %v861
      %v956 = vpack.c.b16 %v866, %v864
      %v957 = vpack.c.b16 %v867, %v865
      %v958 = vpack.c.b16 %v870, %v868
      %v959 = vpack.c.b16 %v871, %v869
      %v960 = vpack.c.b16 %v874, %v872
      %v961 = vpack.c.b16 %v875, %v873
      %v962 = vpack.c.b16 %v878, %v876
      %v963 = vpack.c.b16 %v879, %v877
      %v964 = vpack.c.b16 %v882, %v880
      %v965 = vpack.c.b16 %v883, %v881
      %v966 = vpack.c.b16 %v886, %v884
      %v967 = vpack.c.b16 %v887, %v885
      %v968 = vpack.c.b16 %v890, %v888
      %v969 = vpack.c.b16 %v891, %v889
      %v970 = vpack.c.b16 %v894, %v892
      %v971 = vpack.c.b16 %v895, %v893
      %v972 = vpack.c.b16 %v898, %v896
      %v973 = vpack.c.b16 %v899, %v897
      %v974 = vpack.c.b16 %v902, %v900
      %v975 = vpack.c.b16 %v903, %v901
      %v976 = vpack.c.b16 %v906, %v904
      %v977 = vpack.c.b16 %v907, %v905
      %v978 = vpack.c.b16 %v910, %v908
      %v979 = vpack.c.b16 %v911, %v909
      %vm1048 = vcmask 261120
      %v1050 = vsel %vm1048, %v640, 0
      %v1053 = vsel %vm1048, %v645, 0
      %v1056 = vsel %vm1048, %v650, 0
      %v1059 = vsel %vm1048, %v655, 0
      %v1062 = vsel %vm1048, %v660, 0
      %v1065 = vsel %vm1048, %v665, 0
      %v1068 = vsel %vm1048, %v670, 0
      %v1071 = vsel %vm1048, %v675, 0
      %1073 = vmatprep.subr.bf16.mxu0 %v913
      %1074 = vmatpush1.bf16.msra.mxu0 %v912
      %1075 = vmatprep.subr.bf16.mxu0 %v915
      %1076 = vmatpush1.bf16.msra.mxu0 %v914
      %1077 = vmatprep.subr.bf16.mxu0 %v917
      %1078 = vmatpush1.bf16.msra.mxu0 %v916
      %1079 = vmatprep.subr.bf16.mxu0 %v919
      %1080 = vmatpush1.bf16.msra.mxu0 %v918
      %1081 = vmatprep.subr.bf16.mxu0 %v921
      %1082 = vmatpush1.bf16.msra.mxu0 %v920
      %1083 = vmatprep.subr.bf16.mxu0 %v923
      %1084 = vmatpush1.bf16.msra.mxu0 %v922
      %1085 = vmatprep.subr.bf16.mxu0 %v925
      %1086 = vmatpush1.bf16.msra.mxu0 %v924
      %1087 = vmatprep.subr.bf16.mxu0 %v927
      %1088 = vmatpush1.bf16.msra.mxu0 %v926
      %1089 = vmatprep.subr.bf16.mxu0 %v929
      %1090 = vmatpush1.bf16.msra.mxu0 %v928
      %1091 = vmatprep.subr.bf16.mxu0 %v931
      %1092 = vmatpush1.bf16.msra.mxu0 %v930
      %1093 = vmatprep.subr.bf16.mxu0 %v933
      %1094 = vmatpush1.bf16.msra.mxu0 %v932
      %1095 = vmatprep.subr.bf16.mxu0 %v935
      %1096 = vmatpush1.bf16.msra.mxu0 %v934
      %1097 = vmatprep.subr.bf16.mxu0 %v937
      %1098 = vmatpush1.bf16.msra.mxu0 %v936
      %1099 = vmatprep.subr.bf16.mxu0 %v939
      %1100 = vmatpush1.bf16.msra.mxu0 %v938
      %1101 = vmatprep.subr.bf16.mxu0 %v941
      %1102 = vmatpush1.bf16.msra.mxu0 %v940
      %1103 = vmatprep.subr.bf16.mxu0 %v943
      %1104 = vmatpush1.bf16.msra.mxu0 %v942
      %1105 = vmatprep.mubr.bf16.mxu0 %v637
      %1106 = vmatmul.mubr.bf16.gmra.mrb[0].mxu0 %v636
      %v1107 = vpop.f32.mrb[0].mxu0
      %v1108 = vadd.f32 0.0, %v1107
      %v1109 = vpop.f32.mrb[0].mxu0
      %v1110 = vadd.f32 0.0, %v1109
      %v1111 = vpop.f32.mrb[0].mxu0
      %v1112 = vadd.f32 0.0, %v1111
      %v1113 = vpop.f32.mrb[0].mxu0
      %v1114 = vadd.f32 0.0, %v1113
      %1115 = vmatprep.mubr.bf16.mxu0 %v642
      %1116 = vmatmul.mubr.bf16.gmra.mrb[0].mxu0 %v641
      %v1117 = vpop.f32.mrb[0].mxu0
      %v1118 = vadd.f32 0.0, %v1117
      %v1119 = vpop.f32.mrb[0].mxu0
      %v1120 = vadd.f32 0.0, %v1119
      %v1121 = vpop.f32.mrb[0].mxu0
      %v1122 = vadd.f32 0.0, %v1121
      %v1123 = vpop.f32.mrb[0].mxu0
      %v1124 = vadd.f32 0.0, %v1123
      %1125 = vmatprep.mubr.bf16.mxu0 %v647
      %1126 = vmatmul.mubr.bf16.gmra.mrb[0].mxu0 %v646
      %v1127 = vpop.f32.mrb[0].mxu0
      %v1128 = vadd.f32 0.0, %v1127
      %v1129 = vpop.f32.mrb[0].mxu0
      %v1130 = vadd.f32 0.0, %v1129
      %v1131 = vpop.f32.mrb[0].mxu0
      %v1132 = vadd.f32 0.0, %v1131
      %v1133 = vpop.f32.mrb[0].mxu0
      %v1134 = vadd.f32 0.0, %v1133
      %1135 = vmatprep.mubr.bf16.mxu0 %v652
      %1136 = vmatmul.mubr.bf16.gmra.mrb[0].mxu0 %v651
      %v1137 = vpop.f32.mrb[0].mxu0
      %v1138 = vadd.f32 0.0, %v1137
      %v1139 = vpop.f32.mrb[0].mxu0
      %v1140 = vadd.f32 0.0, %v1139
      %v1141 = vpop.f32.mrb[0].mxu0
      %v1142 = vadd.f32 0.0, %v1141
      %v1143 = vpop.f32.mrb[0].mxu0
      %v1144 = vadd.f32 0.0, %v1143
      %1145 = vmatprep.mubr.bf16.mxu0 %v657
      %1146 = vmatmul.mubr.bf16.gmra.mrb[0].mxu0 %v656
      %v1147 = vpop.f32.mrb[0].mxu0
      %v1148 = vadd.f32 0.0, %v1147
      %v1149 = vpop.f32.mrb[0].mxu0
      %v1150 = vadd.f32 0.0, %v1149
      %v1151 = vpop.f32.mrb[0].mxu0
      %v1152 = vadd.f32 0.0, %v1151
      %v1153 = vpop.f32.mrb[0].mxu0
      %v1154 = vadd.f32 0.0, %v1153
      %1155 = vmatprep.mubr.bf16.mxu0 %v662
      %1156 = vmatmul.mubr.bf16.gmra.mrb[0].mxu0 %v661
      %v1157 = vpop.f32.mrb[0].mxu0
      %v1158 = vadd.f32 0.0, %v1157
      %v1159 = vpop.f32.mrb[0].mxu0
      %v1160 = vadd.f32 0.0, %v1159
      %v1161 = vpop.f32.mrb[0].mxu0
      %v1162 = vadd.f32 0.0, %v1161
      %v1163 = vpop.f32.mrb[0].mxu0
      %v1164 = vadd.f32 0.0, %v1163
      %1165 = vmatprep.mubr.bf16.mxu0 %v667
      %1166 = vmatmul.mubr.bf16.gmra.mrb[0].mxu0 %v666
      %v1167 = vpop.f32.mrb[0].mxu0
      %v1168 = vadd.f32 0.0, %v1167
      %v1169 = vpop.f32.mrb[0].mxu0
      %v1170 = vadd.f32 0.0, %v1169
      %v1171 = vpop.f32.mrb[0].mxu0
      %v1172 = vadd.f32 0.0, %v1171
      %v1173 = vpop.f32.mrb[0].mxu0
      %v1174 = vadd.f32 0.0, %v1173
      %1175 = vmatprep.mubr.bf16.mxu0 %v672
      %1176 = vmatmul.mubr.bf16.gmra.mrb[0].mxu0 %v671
      %v1177 = vpop.f32.mrb[0].mxu0
      %v1178 = vadd.f32 0.0, %v1177
      %v1179 = vpop.f32.mrb[0].mxu0
      %v1180 = vadd.f32 0.0, %v1179
      %v1181 = vpop.f32.mrb[0].mxu0
      %v1182 = vadd.f32 0.0, %v1181
      %v1183 = vpop.f32.mrb[0].mxu0
      %v1184 = vadd.f32 0.0, %v1183
      %1185 = vdwg.mxu0
      %1186 = vmatprep.subr.bf16.mxu0 %v945
      %1187 = vmatpush1.bf16.msra.mxu0 %v944
      %1188 = vmatprep.subr.bf16.mxu0 %v947
      %1189 = vmatpush1.bf16.msra.mxu0 %v946
      %1190 = vmatprep.subr.bf16.mxu0 %v949
      %1191 = vmatpush1.bf16.msra.mxu0 %v948
      %1192 = vmatprep.subr.bf16.mxu0 %v951
      %1193 = vmatpush1.bf16.msra.mxu0 %v950
      %1194 = vmatprep.subr.bf16.mxu0 %v953
      %1195 = vmatpush1.bf16.msra.mxu0 %v952
      %1196 = vmatprep.subr.bf16.mxu0 %v955
      %1197 = vmatpush1.bf16.msra.mxu0 %v954
      %1198 = vmatprep.subr.bf16.mxu0 %v957
      %1199 = vmatpush1.bf16.msra.mxu0 %v956
      %1200 = vmatprep.subr.bf16.mxu0 %v959
      %1201 = vmatpush1.bf16.msra.mxu0 %v958
      %1202 = vmatprep.subr.bf16.mxu0 %v961
      %1203 = vmatpush1.bf16.msra.mxu0 %v960
      %1204 = vmatprep.subr.bf16.mxu0 %v963
      %1205 = vmatpush1.bf16.msra.mxu0 %v962
      %1206 = vmatprep.subr.bf16.mxu0 %v965
      %1207 = vmatpush1.bf16.msra.mxu0 %v964
      %1208 = vmatprep.subr.bf16.mxu0 %v967
      %1209 = vmatpush1.bf16.msra.mxu0 %v966
      %1210 = vmatprep.subr.bf16.mxu0 %v969
      %1211 = vmatpush1.bf16.msra.mxu0 %v968
      %1212 = vmatprep.subr.bf16.mxu0 %v971
      %1213 = vmatpush1.bf16.msra.mxu0 %v970
      %1214 = vmatprep.subr.bf16.mxu0 %v973
      %1215 = vmatpush1.bf16.msra.mxu0 %v972
      %1216 = vmatprep.subr.bf16.mxu0 %v975
      %1217 = vmatpush1.bf16.msra.mxu0 %v974
      %1218 = vmatprep.mubr.bf16.mxu0 %v639
      %1219 = vmatmul.mubr.bf16.gmra.mrb[0].mxu0 %v638
      %v1220 = vpop.f32.mrb[0].mxu0
      %v1221 = vadd.f32 %v1108, %v1220
      %v1222 = vpop.f32.mrb[0].mxu0
      %v1223 = vadd.f32 %v1110, %v1222
      %v1224 = vpop.f32.mrb[0].mxu0
      %v1225 = vadd.f32 %v1112, %v1224
      %v1226 = vpop.f32.mrb[0].mxu0
      %v1227 = vadd.f32 %v1114, %v1226
      %1228 = vmatprep.mubr.bf16.mxu0 %v644
      %1229 = vmatmul.mubr.bf16.gmra.mrb[0].mxu0 %v643
      %v1230 = vpop.f32.mrb[0].mxu0
      %v1231 = vadd.f32 %v1118, %v1230
      %v1232 = vpop.f32.mrb[0].mxu0
      %v1233 = vadd.f32 %v1120, %v1232
      %v1234 = vpop.f32.mrb[0].mxu0
      %v1235 = vadd.f32 %v1122, %v1234
      %v1236 = vpop.f32.mrb[0].mxu0
      %v1237 = vadd.f32 %v1124, %v1236
      %1238 = vmatprep.mubr.bf16.mxu0 %v649
      %1239 = vmatmul.mubr.bf16.gmra.mrb[0].mxu0 %v648
      %v1240 = vpop.f32.mrb[0].mxu0
      %v1241 = vadd.f32 %v1128, %v1240
      %v1242 = vpop.f32.mrb[0].mxu0
      %v1243 = vadd.f32 %v1130, %v1242
      %v1244 = vpop.f32.mrb[0].mxu0
      %v1245 = vadd.f32 %v1132, %v1244
      %v1246 = vpop.f32.mrb[0].mxu0
      %v1247 = vadd.f32 %v1134, %v1246
      %1248 = vmatprep.mubr.bf16.mxu0 %v654
      %1249 = vmatmul.mubr.bf16.gmra.mrb[0].mxu0 %v653
      %v1250 = vpop.f32.mrb[0].mxu0
      %v1251 = vadd.f32 %v1138, %v1250
      %v1252 = vpop.f32.mrb[0].mxu0
      %v1253 = vadd.f32 %v1140, %v1252
      %v1254 = vpop.f32.mrb[0].mxu0
      %v1255 = vadd.f32 %v1142, %v1254
      %v1256 = vpop.f32.mrb[0].mxu0
      %v1257 = vadd.f32 %v1144, %v1256
      %1258 = vmatprep.mubr.bf16.mxu0 %v659
      %1259 = vmatmul.mubr.bf16.gmra.mrb[0].mxu0 %v658
      %v1260 = vpop.f32.mrb[0].mxu0
      %v1261 = vadd.f32 %v1148, %v1260
      %v1262 = vpop.f32.mrb[0].mxu0
      %v1263 = vadd.f32 %v1150, %v1262
      %v1264 = vpop.f32.mrb[0].mxu0
      %v1265 = vadd.f32 %v1152, %v1264
      %v1266 = vpop.f32.mrb[0].mxu0
      %v1267 = vadd.f32 %v1154, %v1266
      %1268 = vmatprep.mubr.bf16.mxu0 %v664
      %1269 = vmatmul.mubr.bf16.gmra.mrb[0].mxu0 %v663
      %v1270 = vpop.f32.mrb[0].mxu0
      %v1271 = vadd.f32 %v1158, %v1270
      %v1272 = vpop.f32.mrb[0].mxu0
      %v1273 = vadd.f32 %v1160, %v1272
      %v1274 = vpop.f32.mrb[0].mxu0
      %v1275 = vadd.f32 %v1162, %v1274
      %v1276 = vpop.f32.mrb[0].mxu0
      %v1277 = vadd.f32 %v1164, %v1276
      %1278 = vmatprep.mubr.bf16.mxu0 %v669
      %1279 = vmatmul.mubr.bf16.gmra.mrb[0].mxu0 %v668
      %v1280 = vpop.f32.mrb[0].mxu0
      %v1281 = vadd.f32 %v1168, %v1280
      %v1282 = vpop.f32.mrb[0].mxu0
      %v1283 = vadd.f32 %v1170, %v1282
      %v1284 = vpop.f32.mrb[0].mxu0
      %v1285 = vadd.f32 %v1172, %v1284
      %v1286 = vpop.f32.mrb[0].mxu0
      %v1287 = vadd.f32 %v1174, %v1286
      %1288 = vmatprep.mubr.bf16.mxu0 %v674
      %1289 = vmatmul.mubr.bf16.gmra.mrb[0].mxu0 %v673
      %v1290 = vpop.f32.mrb[0].mxu0
      %v1291 = vadd.f32 %v1178, %v1290
      %v1292 = vpop.f32.mrb[0].mxu0
      %v1293 = vadd.f32 %v1180, %v1292
      %v1294 = vpop.f32.mrb[0].mxu0
      %v1295 = vadd.f32 %v1182, %v1294
      %v1296 = vpop.f32.mrb[0].mxu0
      %v1297 = vadd.f32 %v1184, %v1296
      %1298 = vdwg.mxu0
      %1299 = vmatprep.subr.bf16.mxu0 %v977
      %1300 = vmatpush1.bf16.msra.mxu0 %v976
      %1301 = vmatprep.subr.bf16.mxu0 %v979
      %1302 = vmatpush1.bf16.msra.mxu0 %v978
      %1303 = vmatprep.subr.bf16.mxu0 0
      %1304 = vmatpush1.bf16.msra.mxu0 0
      %1305 = vmatprep.subr.bf16.mxu0 0
      %1306 = vmatpush1.bf16.msra.mxu0 0
      %1307 = vmatprep.subr.bf16.mxu0 0
      %1308 = vmatpush1.bf16.msra.mxu0 0
      %1309 = vmatprep.subr.bf16.mxu0 0
      %1310 = vmatpush1.bf16.msra.mxu0 0
      %1311 = vmatprep.subr.bf16.mxu0 0
      %1312 = vmatpush1.bf16.msra.mxu0 0
      %1313 = vmatprep.subr.bf16.mxu0 0
      %1314 = vmatpush1.bf16.msra.mxu0 0
      %1315 = vmatprep.subr.bf16.mxu0 0
      %1316 = vmatpush1.bf16.msra.mxu0 0
      %1317 = vmatprep.subr.bf16.mxu0 0
      %1318 = vmatpush1.bf16.msra.mxu0 0
      %1319 = vmatprep.subr.bf16.mxu0 0
      %1320 = vmatpush1.bf16.msra.mxu0 0
      %1321 = vmatprep.subr.bf16.mxu0 0
      %1322 = vmatpush1.bf16.msra.mxu0 0
      %1323 = vmatprep.subr.bf16.mxu0 0
      %1324 = vmatpush1.bf16.msra.mxu0 0
      %1325 = vmatprep.subr.bf16.mxu0 0
      %1326 = vmatpush1.bf16.msra.mxu0 0
      %1327 = vmatprep.subr.bf16.mxu0 0
      %1328 = vmatpush1.bf16.msra.mxu0 0
      %1329 = vmatprep.subr.bf16.mxu0 0
      %1330 = vmatpush1.bf16.msra.mxu0 0
      %1331 = vmatprep.mubr.bf16.mxu0 0
      %1332 = vmatmul.mubr.bf16.gmra.mrb[0].mxu0 %v1050
      %v1333 = vpop.f32.mrb[0].mxu0
      %v1334 = vadd.f32 %v1221, %v1333
      %v1335 = vpop.f32.mrb[0].mxu0
      %v1336 = vadd.f32 %v1223, %v1335
      %v1337 = vpop.f32.mrb[0].mxu0
      %v1338 = vadd.f32 %v1225, %v1337
      %v1339 = vpop.f32.mrb[0].mxu0
      %v1340 = vadd.f32 %v1227, %v1339
      %1341 = vmatprep.mubr.bf16.mxu0 0
      %1342 = vmatmul.mubr.bf16.gmra.mrb[0].mxu0 %v1053
      %v1343 = vpop.f32.mrb[0].mxu0
      %v1344 = vadd.f32 %v1231, %v1343
      %v1345 = vpop.f32.mrb[0].mxu0
      %v1346 = vadd.f32 %v1233, %v1345
      %v1347 = vpop.f32.mrb[0].mxu0
      %v1348 = vadd.f32 %v1235, %v1347
      %v1349 = vpop.f32.mrb[0].mxu0
      %v1350 = vadd.f32 %v1237, %v1349
      %1351 = vmatprep.mubr.bf16.mxu0 0
      %1352 = vmatmul.mubr.bf16.gmra.mrb[0].mxu0 %v1056
      %v1353 = vpop.f32.mrb[0].mxu0
      %v1354 = vadd.f32 %v1241, %v1353
      %v1355 = vpop.f32.mrb[0].mxu0
      %v1356 = vadd.f32 %v1243, %v1355
      %v1357 = vpop.f32.mrb[0].mxu0
      %v1358 = vadd.f32 %v1245, %v1357
      %v1359 = vpop.f32.mrb[0].mxu0
      %v1360 = vadd.f32 %v1247, %v1359
      %1361 = vmatprep.mubr.bf16.mxu0 0
      %1362 = vmatmul.mubr.bf16.gmra.mrb[0].mxu0 %v1059
      %v1363 = vpop.f32.mrb[0].mxu0
      %v1364 = vadd.f32 %v1251, %v1363
      %v1365 = vpop.f32.mrb[0].mxu0
      %v1366 = vadd.f32 %v1253, %v1365
      %v1367 = vpop.f32.mrb[0].mxu0
      %v1368 = vadd.f32 %v1255, %v1367
      %v1369 = vpop.f32.mrb[0].mxu0
      %v1370 = vadd.f32 %v1257, %v1369
      %1371 = vmatprep.mubr.bf16.mxu0 0
      %1372 = vmatmul.mubr.bf16.gmra.mrb[0].mxu0 %v1062
      %v1373 = vpop.f32.mrb[0].mxu0
      %v1374 = vadd.f32 %v1261, %v1373
      %v1375 = vpop.f32.mrb[0].mxu0
      %v1376 = vadd.f32 %v1263, %v1375
      %v1377 = vpop.f32.mrb[0].mxu0
      %v1378 = vadd.f32 %v1265, %v1377
      %v1379 = vpop.f32.mrb[0].mxu0
      %v1380 = vadd.f32 %v1267, %v1379
      %1381 = vmatprep.mubr.bf16.mxu0 0
      %1382 = vmatmul.mubr.bf16.gmra.mrb[0].mxu0 %v1065
      %v1383 = vpop.f32.mrb[0].mxu0
      %v1384 = vadd.f32 %v1271, %v1383
      %v1385 = vpop.f32.mrb[0].mxu0
      %v1386 = vadd.f32 %v1273, %v1385
      %v1387 = vpop.f32.mrb[0].mxu0
      %v1388 = vadd.f32 %v1275, %v1387
      %v1389 = vpop.f32.mrb[0].mxu0
      %v1390 = vadd.f32 %v1277, %v1389
      %1391 = vmatprep.mubr.bf16.mxu0 0
      %1392 = vmatmul.mubr.bf16.gmra.mrb[0].mxu0 %v1068
      %v1393 = vpop.f32.mrb[0].mxu0
      %v1394 = vadd.f32 %v1281, %v1393
      %v1395 = vpop.f32.mrb[0].mxu0
      %v1396 = vadd.f32 %v1283, %v1395
      %v1397 = vpop.f32.mrb[0].mxu0
      %v1398 = vadd.f32 %v1285, %v1397
      %v1399 = vpop.f32.mrb[0].mxu0
      %v1400 = vadd.f32 %v1287, %v1399
      %1401 = vmatprep.mubr.bf16.mxu0 0
      %1402 = vmatmul.mubr.bf16.gmra.mrb[0].mxu0 %v1071
      %v1403 = vpop.f32.mrb[0].mxu0
      %v1404 = vadd.f32 %v1291, %v1403
      %v1405 = vpop.f32.mrb[0].mxu0
      %v1406 = vadd.f32 %v1293, %v1405
      %v1407 = vpop.f32.mrb[0].mxu0
      %v1408 = vadd.f32 %v1295, %v1407
      %v1409 = vpop.f32.mrb[0].mxu0
      %v1410 = vadd.f32 %v1297, %v1409
      %1411 = vdwg.mxu0
      %v1412 = vmax.f32 %v1334, %v1336
      %v1413 = vmax.f32 %v1338, %v1340
      %v1414 = vmax.f32 %v1344, %v1346
      %v1415 = vmax.f32 %v1348, %v1350
      %v1416 = vmax.f32 %v1354, %v1356
      %v1417 = vmax.f32 %v1358, %v1360
      %v1418 = vmax.f32 %v1364, %v1366
      %v1419 = vmax.f32 %v1368, %v1370
      %v1420 = vmax.f32 %v1374, %v1376
      %v1421 = vmax.f32 %v1378, %v1380
      %v1422 = vmax.f32 %v1384, %v1386
      %v1423 = vmax.f32 %v1388, %v1390
      %v1424 = vmax.f32 %v1394, %v1396
      %v1425 = vmax.f32 %v1398, %v1400
      %v1426 = vmax.f32 %v1404, %v1406
      %v1427 = vmax.f32 %v1408, %v1410
      %v1428 = vmax.f32 %v1412, %v1414
      %v1429 = vmax.f32 %v1413, %v1415
      %v1430 = vmax.f32 %v1416, %v1418
      %v1431 = vmax.f32 %v1417, %v1419
      %v1432 = vmax.f32 %v1420, %v1422
      %v1433 = vmax.f32 %v1421, %v1423
      %v1434 = vmax.f32 %v1424, %v1426
      %v1435 = vmax.f32 %v1425, %v1427
      %v1436 = vld [vmem:[%s2] sm:$0x1]
      %v1438 = vlaneseq
      %v1439 = vshrl.u32 %v1438, 7
      %v1440 = vsub.s32 0, %v1439
      %v1441 = vrot.slane %v1436, %v1440
      %v1443 = vadd.f32 %v1428, %v1441
      %v1444 = vadd.f32 %v1429, %v1441
      %v1445 = vadd.f32 %v1430, %v1441
      %v1446 = vadd.f32 %v1431, %v1441
      %v1447 = vadd.f32 %v1432, %v1441
      %v1448 = vadd.f32 %v1433, %v1441
      %v1449 = vadd.f32 %v1434, %v1441
      %v1450 = vadd.f32 %v1435, %v1441
      %v1451 = vmax.f32 %v1443, 0.0
      %v1452 = vmax.f32 %v1444, 0.0
      %v1453 = vmax.f32 %v1445, 0.0
      %v1454 = vmax.f32 %v1446, 0.0
      %v1455 = vmax.f32 %v1447, 0.0
      %v1456 = vmax.f32 %v1448, 0.0
      %v1457 = vmax.f32 %v1449, 0.0
      %v1458 = vmax.f32 %v1450, 0.0
      %1459 = vst [vmem:[#allocation2] sm:$0xff] %v1451
      %1460 = vst [vmem:[#allocation2 + $0x8] sm:$0xff] %v1452
      %1461 = vst [vmem:[#allocation2 + $0x10] sm:$0xff] %v1453
      %1462 = vst [vmem:[#allocation2 + $0x18] sm:$0xff] %v1454
      %1463 = vst [vmem:[#allocation2 + $0x20] sm:$0xff] %v1455
      %1464 = vst [vmem:[#allocation2 + $0x28] sm:$0xff] %v1456
      %1465 = vst [vmem:[#allocation2 + $0x30] sm:$0xff] %v1457
      %1466 = vst [vmem:[#allocation2 + $0x38] sm:$0xff] %v1458
      %1467 = vst [vmem:[#allocation2 + $0x40] sm:$0xff] 0.0
      %v1468 = vld [vmem:[#allocation2] sm:$0xff]
      %v1469 = vld [vmem:[#allocation2 + $0x8] sm:$0xff]
      %v1470 = vld [vmem:[#allocation2 + $0x10] sm:$0xff]
      %v1471 = vld [vmem:[#allocation2 + $0x18] sm:$0xff]
      %v1472 = vld [vmem:[#allocation2 + $0x20] sm:$0xff]
      %v1473 = vld [vmem:[#allocation2 + $0x28] sm:$0xff]
      %v1474 = vld [vmem:[#allocation2 + $0x30] sm:$0xff]
      %v1475 = vld [vmem:[#allocation2 + $0x38] sm:$0xff]
      %v1476 = vpack.c.bf16 %v1469, %v1468
      %v1477 = vpack.c.bf16 %v1471, %v1470
      %v1478 = vpack.c.bf16 %v1473, %v1472
      %v1479 = vpack.c.bf16 %v1475, %v1474
      %v1480 = vld [vmem:[%s3] sm:$0xff]
      %v1481 = vld [vmem:[%s3 + $0x8] sm:$0xff]
      %v1482 = vld [vmem:[%s3 + $0x10] sm:$0xff]
      %v1483 = vld [vmem:[%s3 + $0x18] sm:$0xff]
      %v1484 = vld [vmem:[%s3 + $0x20] sm:$0xff]
      %v1485 = vld [vmem:[%s3 + $0x28] sm:$0xff]
      %v1486 = vld [vmem:[%s3 + $0x30] sm:$0xff]
      %v1487 = vld [vmem:[%s3 + $0x38] sm:$0xff]
      %v1488 = vld [vmem:[%s3 + $0x40] sm:$0xff]
      %v1489 = vld [vmem:[%s3 + $0x48] sm:$0xff]
      %v1490 = vld [vmem:[%s3 + $0x50] sm:$0xff]
      %v1491 = vld [vmem:[%s3 + $0x58] sm:$0xff]
      %v1492 = vld [vmem:[%s3 + $0x60] sm:$0xff]
      %v1493 = vld [vmem:[%s3 + $0x68] sm:$0xff]
      %v1494 = vld [vmem:[%s3 + $0x70] sm:$0xff]
      %v1495 = vld [vmem:[%s3 + $0x78] sm:$0xff]
      %v1496 = vld [vmem:[#allocation2 + $0x1] sm:$0xff]
      %v1497 = vld [vmem:[#allocation2 + $0x9] sm:$0xff]
      %v1498 = vld [vmem:[#allocation2 + $0x11] sm:$0xff]
      %v1499 = vld [vmem:[#allocation2 + $0x19] sm:$0xff]
      %v1500 = vld [vmem:[#allocation2 + $0x21] sm:$0xff]
      %v1501 = vld [vmem:[#allocation2 + $0x29] sm:$0xff]
      %v1502 = vld [vmem:[#allocation2 + $0x31] sm:$0xff]
      %v1503 = vld [vmem:[#allocation2 + $0x39] sm:$0xff]
      %v1504 = vpack.c.bf16 %v1497, %v1496
      %v1505 = vpack.c.bf16 %v1499, %v1498
      %v1506 = vpack.c.bf16 %v1501, %v1500
      %v1507 = vpack.c.bf16 %v1503, %v1502
      %s1508 = scalar_lea.vmem %s3, 128
      %v1509 = vld [vmem:[%s1508] sm:$0xff]
      %v1510 = vld [vmem:[%s1508 + $0x8] sm:$0xff]
      %v1511 = vld [vmem:[%s1508 + $0x10] sm:$0xff]
      %v1512 = vld [vmem:[%s1508 + $0x18] sm:$0xff]
      %v1513 = vld [vmem:[%s1508 + $0x20] sm:$0xff]
      %v1514 = vld [vmem:[%s1508 + $0x28] sm:$0xff]
      %v1515 = vld [vmem:[%s1508 + $0x30] sm:$0xff]
      %v1516 = vld [vmem:[%s1508 + $0x38] sm:$0xff]
      %v1517 = vld [vmem:[%s1508 + $0x40] sm:$0xff]
      %v1518 = vld [vmem:[%s1508 + $0x48] sm:$0xff]
      %v1519 = vld [vmem:[%s1508 + $0x50] sm:$0xff]
      %v1520 = vld [vmem:[%s1508 + $0x58] sm:$0xff]
      %v1521 = vld [vmem:[%s1508 + $0x60] sm:$0xff]
      %v1522 = vld [vmem:[%s1508 + $0x68] sm:$0xff]
      %v1523 = vld [vmem:[%s1508 + $0x70] sm:$0xff]
      %v1524 = vld [vmem:[%s1508 + $0x78] sm:$0xff]
      %v1541 = vunpack.c.l.b16 %v1509
      %v1542 = vunpack.c.h.b16 %v1509
      %v1543 = vunpack.c.l.b16 %v1510
      %v1544 = vunpack.c.h.b16 %v1510
      %v1545 = vunpack.c.l.b16 %v1511
      %v1546 = vunpack.c.h.b16 %v1511
      %v1547 = vunpack.c.l.b16 %v1512
      %v1548 = vunpack.c.h.b16 %v1512
      %v1549 = vunpack.c.l.b16 %v1513
      %v1550 = vunpack.c.h.b16 %v1513
      %v1551 = vunpack.c.l.b16 %v1514
      %v1552 = vunpack.c.h.b16 %v1514
      %v1553 = vunpack.c.l.b16 %v1515
      %v1554 = vunpack.c.h.b16 %v1515
      %v1555 = vunpack.c.l.b16 %v1516
      %v1556 = vunpack.c.h.b16 %v1516
      %v1557 = vunpack.c.l.b16 %v1517
      %v1558 = vunpack.c.h.b16 %v1517
      %v1559 = vunpack.c.l.b16 %v1518
      %v1560 = vunpack.c.h.b16 %v1518
      %v1561 = vunpack.c.l.b16 %v1519
      %v1562 = vunpack.c.h.b16 %v1519
      %v1563 = vunpack.c.l.b16 %v1520
      %v1564 = vunpack.c.h.b16 %v1520
      %v1565 = vunpack.c.l.b16 %v1521
      %v1566 = vunpack.c.h.b16 %v1521
      %v1567 = vunpack.c.l.b16 %v1522
      %v1568 = vunpack.c.h.b16 %v1522
      %v1569 = vunpack.c.l.b16 %v1523
      %v1570 = vunpack.c.h.b16 %v1523
      %v1571 = vunpack.c.l.b16 %v1524
      %v1572 = vunpack.c.h.b16 %v1524
      %v1573 = vpack.c.b16 %v1543, %v1541
      %v1574 = vpack.c.b16 %v1544, %v1542
      %v1575 = vpack.c.b16 %v1547, %v1545
      %v1576 = vpack.c.b16 %v1548, %v1546
      %v1577 = vpack.c.b16 %v1551, %v1549
      %v1578 = vpack.c.b16 %v1552, %v1550
      %v1579 = vpack.c.b16 %v1555, %v1553
      %v1580 = vpack.c.b16 %v1556, %v1554
      %v1581 = vpack.c.b16 %v1559, %v1557
      %v1582 = vpack.c.b16 %v1560, %v1558
      %v1583 = vpack.c.b16 %v1563, %v1561
      %v1584 = vpack.c.b16 %v1564, %v1562
      %v1585 = vpack.c.b16 %v1567, %v1565
      %v1586 = vpack.c.b16 %v1568, %v1566
      %v1587 = vpack.c.b16 %v1571, %v1569
      %v1588 = vpack.c.b16 %v1572, %v1570
      %1605 = vmatprep.subr.bf16.mxu0 %v1574
      %1606 = vmatpush1.bf16.msra.mxu0 %v1573
      %1607 = vmatprep.subr.bf16.mxu0 %v1576
      %1608 = vmatpush1.bf16.msra.mxu0 %v1575
      %1609 = vmatprep.subr.bf16.mxu0 %v1578
      %1610 = vmatpush1.bf16.msra.mxu0 %v1577
      %1611 = vmatprep.subr.bf16.mxu0 %v1580
      %1612 = vmatpush1.bf16.msra.mxu0 %v1579
      %1613 = vmatprep.subr.bf16.mxu0 %v1582
      %1614 = vmatpush1.bf16.msra.mxu0 %v1581
      %1615 = vmatprep.subr.bf16.mxu0 %v1584
      %1616 = vmatpush1.bf16.msra.mxu0 %v1583
      %1617 = vmatprep.subr.bf16.mxu0 %v1586
      %1618 = vmatpush1.bf16.msra.mxu0 %v1585
      %1619 = vmatprep.subr.bf16.mxu0 %v1588
      %1620 = vmatpush1.bf16.msra.mxu0 %v1587
      %1621 = vmatprep.subr.bf16.mxu0 0
      %1622 = vmatpush1.bf16.msra.mxu0 0
      %1623 = vmatprep.subr.bf16.mxu0 0
      %1624 = vmatpush1.bf16.msra.mxu0 0
      %1625 = vmatprep.subr.bf16.mxu0 0
      %1626 = vmatpush1.bf16.msra.mxu0 0
      %1627 = vmatprep.subr.bf16.mxu0 0
      %1628 = vmatpush1.bf16.msra.mxu0 0
      %1629 = vmatprep.subr.bf16.mxu0 0
      %1630 = vmatpush1.bf16.msra.mxu0 0
      %1631 = vmatprep.subr.bf16.mxu0 0
      %1632 = vmatpush1.bf16.msra.mxu0 0
      %1633 = vmatprep.subr.bf16.mxu0 0
      %1634 = vmatpush1.bf16.msra.mxu0 0
      %1635 = vmatprep.subr.bf16.mxu0 0
      %1636 = vmatpush1.bf16.msra.mxu0 0
      %1637 = vmatprep.mubr.bf16.mxu0 0
      %1638 = vmatmul.mubr.bf16.gmra.mrb[0].mxu0 %v1504
      %v1639 = vpop.f32.mrb[0].mxu0
      %v1640 = vadd.f32 0.0, %v1639
      %v1641 = vpop.f32.mrb[0].mxu0
      %v1642 = vadd.f32 0.0, %v1641
      %v1643 = vpop.f32.mrb[0].mxu0
      %v1644 = vadd.f32 0.0, %v1643
      %v1645 = vpop.f32.mrb[0].mxu0
      %v1646 = vadd.f32 0.0, %v1645
      %1647 = vmatprep.mubr.bf16.mxu0 0
      %1648 = vmatmul.mubr.bf16.gmra.mrb[0].mxu0 %v1505
      %v1649 = vpop.f32.mrb[0].mxu0
      %v1650 = vadd.f32 0.0, %v1649
      %v1651 = vpop.f32.mrb[0].mxu0
      %v1652 = vadd.f32 0.0, %v1651
      %v1653 = vpop.f32.mrb[0].mxu0
      %v1654 = vadd.f32 0.0, %v1653
      %v1655 = vpop.f32.mrb[0].mxu0
      %v1656 = vadd.f32 0.0, %v1655
      %1657 = vmatprep.mubr.bf16.mxu0 0
      %1658 = vmatmul.mubr.bf16.gmra.mrb[0].mxu0 %v1506
      %v1659 = vpop.f32.mrb[0].mxu0
      %v1660 = vadd.f32 0.0, %v1659
      %v1661 = vpop.f32.mrb[0].mxu0
      %v1662 = vadd.f32 0.0, %v1661
      %v1663 = vpop.f32.mrb[0].mxu0
      %v1664 = vadd.f32 0.0, %v1663
      %v1665 = vpop.f32.mrb[0].mxu0
      %v1666 = vadd.f32 0.0, %v1665
      %1667 = vmatprep.mubr.bf16.mxu0 0
      %1668 = vmatmul.mubr.bf16.gmra.mrb[0].mxu0 %v1507
      %v1669 = vpop.f32.mrb[0].mxu0
      %v1670 = vadd.f32 0.0, %v1669
      %v1671 = vpop.f32.mrb[0].mxu0
      %v1672 = vadd.f32 0.0, %v1671
      %v1673 = vpop.f32.mrb[0].mxu0
      %v1674 = vadd.f32 0.0, %v1673
      %v1675 = vpop.f32.mrb[0].mxu0
      %v1676 = vadd.f32 0.0, %v1675
      %1677 = vdwg.mxu0
      %v1694 = vunpack.c.l.b16 %v1480
      %v1695 = vunpack.c.h.b16 %v1480
      %v1696 = vunpack.c.l.b16 %v1481
      %v1697 = vunpack.c.h.b16 %v1481
      %v1698 = vunpack.c.l.b16 %v1482
      %v1699 = vunpack.c.h.b16 %v1482
      %v1700 = vunpack.c.l.b16 %v1483
      %v1701 = vunpack.c.h.b16 %v1483
      %v1702 = vunpack.c.l.b16 %v1484
      %v1703 = vunpack.c.h.b16 %v1484
      %v1704 = vunpack.c.l.b16 %v1485
      %v1705 = vunpack.c.h.b16 %v1485
      %v1706 = vunpack.c.l.b16 %v1486
      %v1707 = vunpack.c.h.b16 %v1486
      %v1708 = vunpack.c.l.b16 %v1487
      %v1709 = vunpack.c.h.b16 %v1487
      %v1710 = vunpack.c.l.b16 %v1488
      %v1711 = vunpack.c.h.b16 %v1488
      %v1712 = vunpack.c.l.b16 %v1489
      %v1713 = vunpack.c.h.b16 %v1489
      %v1714 = vunpack.c.l.b16 %v1490
      %v1715 = vunpack.c.h.b16 %v1490
      %v1716 = vunpack.c.l.b16 %v1491
      %v1717 = vunpack.c.h.b16 %v1491
      %v1718 = vunpack.c.l.b16 %v1492
      %v1719 = vunpack.c.h.b16 %v1492
      %v1720 = vunpack.c.l.b16 %v1493
      %v1721 = vunpack.c.h.b16 %v1493
      %v1722 = vunpack.c.l.b16 %v1494
      %v1723 = vunpack.c.h.b16 %v1494
      %v1724 = vunpack.c.l.b16 %v1495
      %v1725 = vunpack.c.h.b16 %v1495
      %v1726 = vpack.c.b16 %v1696, %v1694
      %v1727 = vpack.c.b16 %v1697, %v1695
      %v1728 = vpack.c.b16 %v1700, %v1698
      %v1729 = vpack.c.b16 %v1701, %v1699
      %v1730 = vpack.c.b16 %v1704, %v1702
      %v1731 = vpack.c.b16 %v1705, %v1703
      %v1732 = vpack.c.b16 %v1708, %v1706
      %v1733 = vpack.c.b16 %v1709, %v1707
      %v1734 = vpack.c.b16 %v1712, %v1710
      %v1735 = vpack.c.b16 %v1713, %v1711
      %v1736 = vpack.c.b16 %v1716, %v1714
      %v1737 = vpack.c.b16 %v1717, %v1715
      %v1738 = vpack.c.b16 %v1720, %v1718
      %v1739 = vpack.c.b16 %v1721, %v1719
      %v1740 = vpack.c.b16 %v1724, %v1722
      %v1741 = vpack.c.b16 %v1725, %v1723
      %1758 = vmatprep.subr.bf16.mxu0 %v1727
      %1759 = vmatpush1.bf16.msra.mxu0 %v1726
      %1760 = vmatprep.subr.bf16.mxu0 %v1729
      %1761 = vmatpush1.bf16.msra.mxu0 %v1728
      %1762 = vmatprep.subr.bf16.mxu0 %v1731
      %1763 = vmatpush1.bf16.msra.mxu0 %v1730
      %1764 = vmatprep.subr.bf16.mxu0 %v1733
      %1765 = vmatpush1.bf16.msra.mxu0 %v1732
      %1766 = vmatprep.subr.bf16.mxu0 %v1735
      %1767 = vmatpush1.bf16.msra.mxu0 %v1734
      %1768 = vmatprep.subr.bf16.mxu0 %v1737
      %1769 = vmatpush1.bf16.msra.mxu0 %v1736
      %1770 = vmatprep.subr.bf16.mxu0 %v1739
      %1771 = vmatpush1.bf16.msra.mxu0 %v1738
      %1772 = vmatprep.subr.bf16.mxu0 %v1741
      %1773 = vmatpush1.bf16.msra.mxu0 %v1740
      %1774 = vmatprep.subr.bf16.mxu0 0
      %1775 = vmatpush1.bf16.msra.mxu0 0
      %1776 = vmatprep.subr.bf16.mxu0 0
      %1777 = vmatpush1.bf16.msra.mxu0 0
      %1778 = vmatprep.subr.bf16.mxu0 0
      %1779 = vmatpush1.bf16.msra.mxu0 0
      %1780 = vmatprep.subr.bf16.mxu0 0
      %1781 = vmatpush1.bf16.msra.mxu0 0
      %1782 = vmatprep.subr.bf16.mxu0 0
      %1783 = vmatpush1.bf16.msra.mxu0 0
      %1784 = vmatprep.subr.bf16.mxu0 0
      %1785 = vmatpush1.bf16.msra.mxu0 0
      %1786 = vmatprep.subr.bf16.mxu0 0
      %1787 = vmatpush1.bf16.msra.mxu0 0
      %1788 = vmatprep.subr.bf16.mxu0 0
      %1789 = vmatpush1.bf16.msra.mxu0 0
      %1790 = vmatprep.mubr.bf16.mxu0 0
      %1791 = vmatmul.mubr.bf16.gmra.mrb[0].mxu0 %v1476
      %v1792 = vpop.f32.mrb[0].mxu0
      %v1793 = vadd.f32 %v1640, %v1792
      %v1794 = vpop.f32.mrb[0].mxu0
      %v1795 = vadd.f32 %v1642, %v1794
      %v1796 = vpop.f32.mrb[0].mxu0
      %v1797 = vadd.f32 %v1644, %v1796
      %v1798 = vpop.f32.mrb[0].mxu0
      %v1799 = vadd.f32 %v1646, %v1798
      %1800 = vmatprep.mubr.bf16.mxu0 0
      %1801 = vmatmul.mubr.bf16.gmra.mrb[0].mxu0 %v1477
      %v1802 = vpop.f32.mrb[0].mxu0
      %v1803 = vadd.f32 %v1650, %v1802
      %v1804 = vpop.f32.mrb[0].mxu0
      %v1805 = vadd.f32 %v1652, %v1804
      %v1806 = vpop.f32.mrb[0].mxu0
      %v1807 = vadd.f32 %v1654, %v1806
      %v1808 = vpop.f32.mrb[0].mxu0
      %v1809 = vadd.f32 %v1656, %v1808
      %1810 = vmatprep.mubr.bf16.mxu0 0
      %1811 = vmatmul.mubr.bf16.gmra.mrb[0].mxu0 %v1478
      %v1812 = vpop.f32.mrb[0].mxu0
      %v1813 = vadd.f32 %v1660, %v1812
      %v1814 = vpop.f32.mrb[0].mxu0
      %v1815 = vadd.f32 %v1662, %v1814
      %v1816 = vpop.f32.mrb[0].mxu0
      %v1817 = vadd.f32 %v1664, %v1816
      %v1818 = vpop.f32.mrb[0].mxu0
      %v1819 = vadd.f32 %v1666, %v1818
      %1820 = vmatprep.mubr.bf16.mxu0 0
      %1821 = vmatmul.mubr.bf16.gmra.mrb[0].mxu0 %v1479
      %v1822 = vpop.f32.mrb[0].mxu0
      %v1823 = vadd.f32 %v1670, %v1822
      %v1824 = vpop.f32.mrb[0].mxu0
      %v1825 = vadd.f32 %v1672, %v1824
      %v1826 = vpop.f32.mrb[0].mxu0
      %v1827 = vadd.f32 %v1674, %v1826
      %v1828 = vpop.f32.mrb[0].mxu0
      %v1829 = vadd.f32 %v1676, %v1828
      %1830 = vdwg.mxu0
      %v1831 = vld [vmem:[#allocation2 + $0x2] sm:$0xff]
      %v1832 = vld [vmem:[#allocation2 + $0xa] sm:$0xff]
      %v1833 = vld [vmem:[#allocation2 + $0x12] sm:$0xff]
      %v1834 = vld [vmem:[#allocation2 + $0x1a] sm:$0xff]
      %v1835 = vld [vmem:[#allocation2 + $0x22] sm:$0xff]
      %v1836 = vld [vmem:[#allocation2 + $0x2a] sm:$0xff]
      %v1837 = vld [vmem:[#allocation2 + $0x32] sm:$0xff]
      %v1838 = vld [vmem:[#allocation2 + $0x3a] sm:$0xff]
      %v1839 = vpack.c.bf16 %v1832, %v1831
      %v1840 = vpack.c.bf16 %v1834, %v1833
      %v1841 = vpack.c.bf16 %v1836, %v1835
      %v1842 = vpack.c.bf16 %v1838, %v1837
      %s1843 = scalar_lea.vmem %s3, 256
      %v1844 = vld [vmem:[%s1843] sm:$0xff]
      %v1845 = vld [vmem:[%s1843 + $0x8] sm:$0xff]
      %v1846 = vld [vmem:[%s1843 + $0x10] sm:$0xff]
      %v1847 = vld [vmem:[%s1843 + $0x18] sm:$0xff]
      %v1848 = vld [vmem:[%s1843 + $0x20] sm:$0xff]
      %v1849 = vld [vmem:[%s1843 + $0x28] sm:$0xff]
      %v1850 = vld [vmem:[%s1843 + $0x30] sm:$0xff]
      %v1851 = vld [vmem:[%s1843 + $0x38] sm:$0xff]
      %v1852 = vld [vmem:[%s1843 + $0x40] sm:$0xff]
      %v1853 = vld [vmem:[%s1843 + $0x48] sm:$0xff]
      %v1854 = vld [vmem:[%s1843 + $0x50] sm:$0xff]
      %v1855 = vld [vmem:[%s1843 + $0x58] sm:$0xff]
      %v1856 = vld [vmem:[%s1843 + $0x60] sm:$0xff]
      %v1857 = vld [vmem:[%s1843 + $0x68] sm:$0xff]
      %v1858 = vld [vmem:[%s1843 + $0x70] sm:$0xff]
      %v1859 = vld [vmem:[%s1843 + $0x78] sm:$0xff]
      %v1876 = vunpack.c.l.b16 %v1844
      %v1877 = vunpack.c.h.b16 %v1844
      %v1878 = vunpack.c.l.b16 %v1845
      %v1879 = vunpack.c.h.b16 %v1845
      %v1880 = vunpack.c.l.b16 %v1846
      %v1881 = vunpack.c.h.b16 %v1846
      %v1882 = vunpack.c.l.b16 %v1847
      %v1883 = vunpack.c.h.b16 %v1847
      %v1884 = vunpack.c.l.b16 %v1848
      %v1885 = vunpack.c.h.b16 %v1848
      %v1886 = vunpack.c.l.b16 %v1849
      %v1887 = vunpack.c.h.b16 %v1849
      %v1888 = vunpack.c.l.b16 %v1850
      %v1889 = vunpack.c.h.b16 %v1850
      %v1890 = vunpack.c.l.b16 %v1851
      %v1891 = vunpack.c.h.b16 %v1851
      %v1892 = vunpack.c.l.b16 %v1852
      %v1893 = vunpack.c.h.b16 %v1852
      %v1894 = vunpack.c.l.b16 %v1853
      %v1895 = vunpack.c.h.b16 %v1853
      %v1896 = vunpack.c.l.b16 %v1854
      %v1897 = vunpack.c.h.b16 %v1854
      %v1898 = vunpack.c.l.b16 %v1855
      %v1899 = vunpack.c.h.b16 %v1855
      %v1900 = vunpack.c.l.b16 %v1856
      %v1901 = vunpack.c.h.b16 %v1856
      %v1902 = vunpack.c.l.b16 %v1857
      %v1903 = vunpack.c.h.b16 %v1857
      %v1904 = vunpack.c.l.b16 %v1858
      %v1905 = vunpack.c.h.b16 %v1858
      %v1906 = vunpack.c.l.b16 %v1859
      %v1907 = vunpack.c.h.b16 %v1859
      %v1908 = vpack.c.b16 %v1878, %v1876
      %v1909 = vpack.c.b16 %v1879, %v1877
      %v1910 = vpack.c.b16 %v1882, %v1880
      %v1911 = vpack.c.b16 %v1883, %v1881
      %v1912 = vpack.c.b16 %v1886, %v1884
      %v1913 = vpack.c.b16 %v1887, %v1885
      %v1914 = vpack.c.b16 %v1890, %v1888
      %v1915 = vpack.c.b16 %v1891, %v1889
      %v1916 = vpack.c.b16 %v1894, %v1892
      %v1917 = vpack.c.b16 %v1895, %v1893
      %v1918 = vpack.c.b16 %v1898, %v1896
      %v1919 = vpack.c.b16 %v1899, %v1897
      %v1920 = vpack.c.b16 %v1902, %v1900
      %v1921 = vpack.c.b16 %v1903, %v1901
      %v1922 = vpack.c.b16 %v1906, %v1904
      %v1923 = vpack.c.b16 %v1907, %v1905
      %1940 = vmatprep.subr.bf16.mxu0 %v1909
      %1941 = vmatpush1.bf16.msra.mxu0 %v1908
      %1942 = vmatprep.subr.bf16.mxu0 %v1911
      %1943 = vmatpush1.bf16.msra.mxu0 %v1910
      %1944 = vmatprep.subr.bf16.mxu0 %v1913
      %1945 = vmatpush1.bf16.msra.mxu0 %v1912
      %1946 = vmatprep.subr.bf16.mxu0 %v1915
      %1947 = vmatpush1.bf16.msra.mxu0 %v1914
      %1948 = vmatprep.subr.bf16.mxu0 %v1917
      %1949 = vmatpush1.bf16.msra.mxu0 %v1916
      %1950 = vmatprep.subr.bf16.mxu0 %v1919
      %1951 = vmatpush1.bf16.msra.mxu0 %v1918
      %1952 = vmatprep.subr.bf16.mxu0 %v1921
      %1953 = vmatpush1.bf16.msra.mxu0 %v1920
      %1954 = vmatprep.subr.bf16.mxu0 %v1923
      %1955 = vmatpush1.bf16.msra.mxu0 %v1922
      %1956 = vmatprep.subr.bf16.mxu0 0
      %1957 = vmatpush1.bf16.msra.mxu0 0
      %1958 = vmatprep.subr.bf16.mxu0 0
      %1959 = vmatpush1.bf16.msra.mxu0 0
      %1960 = vmatprep.subr.bf16.mxu0 0
      %1961 = vmatpush1.bf16.msra.mxu0 0
      %1962 = vmatprep.subr.bf16.mxu0 0
      %1963 = vmatpush1.bf16.msra.mxu0 0
      %1964 = vmatprep.subr.bf16.mxu0 0
      %1965 = vmatpush1.bf16.msra.mxu0 0
      %1966 = vmatprep.subr.bf16.mxu0 0
      %1967 = vmatpush1.bf16.msra.mxu0 0
      %1968 = vmatprep.subr.bf16.mxu0 0
      %1969 = vmatpush1.bf16.msra.mxu0 0
      %1970 = vmatprep.subr.bf16.mxu0 0
      %1971 = vmatpush1.bf16.msra.mxu0 0
      %1972 = vmatprep.mubr.bf16.mxu0 0
      %1973 = vmatmul.mubr.bf16.gmra.mrb[0].mxu0 %v1839
      %v1974 = vpop.f32.mrb[0].mxu0
      %v1975 = vadd.f32 0.0, %v1974
      %v1976 = vpop.f32.mrb[0].mxu0
      %v1977 = vadd.f32 0.0, %v1976
      %v1978 = vpop.f32.mrb[0].mxu0
      %v1979 = vadd.f32 0.0, %v1978
      %v1980 = vpop.f32.mrb[0].mxu0
      %v1981 = vadd.f32 0.0, %v1980
      %1982 = vmatprep.mubr.bf16.mxu0 0
      %1983 = vmatmul.mubr.bf16.gmra.mrb[0].mxu0 %v1840
      %v1984 = vpop.f32.mrb[0].mxu0
      %v1985 = vadd.f32 0.0, %v1984
      %v1986 = vpop.f32.mrb[0].mxu0
      %v1987 = vadd.f32 0.0, %v1986
      %v1988 = vpop.f32.mrb[0].mxu0
      %v1989 = vadd.f32 0.0, %v1988
      %v1990 = vpop.f32.mrb[0].mxu0
      %v1991 = vadd.f32 0.0, %v1990
      %1992 = vmatprep.mubr.bf16.mxu0 0
      %1993 = vmatmul.mubr.bf16.gmra.mrb[0].mxu0 %v1841
      %v1994 = vpop.f32.mrb[0].mxu0
      %v1995 = vadd.f32 0.0, %v1994
      %v1996 = vpop.f32.mrb[0].mxu0
      %v1997 = vadd.f32 0.0, %v1996
      %v1998 = vpop.f32.mrb[0].mxu0
      %v1999 = vadd.f32 0.0, %v1998
      %v2000 = vpop.f32.mrb[0].mxu0
      %v2001 = vadd.f32 0.0, %v2000
      %2002 = vmatprep.mubr.bf16.mxu0 0
      %2003 = vmatmul.mubr.bf16.gmra.mrb[0].mxu0 %v1842
      %v2004 = vpop.f32.mrb[0].mxu0
      %v2005 = vadd.f32 0.0, %v2004
      %v2006 = vpop.f32.mrb[0].mxu0
      %v2007 = vadd.f32 0.0, %v2006
      %v2008 = vpop.f32.mrb[0].mxu0
      %v2009 = vadd.f32 0.0, %v2008
      %v2010 = vpop.f32.mrb[0].mxu0
      %v2011 = vadd.f32 0.0, %v2010
      %2012 = vdwg.mxu0
      %v2013 = vadd.f32 %v1793, %v1975
      %v2014 = vadd.f32 %v1795, %v1977
      %v2015 = vadd.f32 %v1797, %v1979
      %v2016 = vadd.f32 %v1799, %v1981
      %v2017 = vadd.f32 %v1803, %v1985
      %v2018 = vadd.f32 %v1805, %v1987
      %v2019 = vadd.f32 %v1807, %v1989
      %v2020 = vadd.f32 %v1809, %v1991
      %v2021 = vadd.f32 %v1813, %v1995
      %v2022 = vadd.f32 %v1815, %v1997
      %v2023 = vadd.f32 %v1817, %v1999
      %v2024 = vadd.f32 %v1819, %v2001
      %v2025 = vadd.f32 %v1823, %v2005
      %v2026 = vadd.f32 %v1825, %v2007
      %v2027 = vadd.f32 %v1827, %v2009
      %v2028 = vadd.f32 %v1829, %v2011
      %v2029 = vld [vmem:[#allocation2 + $0x3] sm:$0xff]
      %v2030 = vld [vmem:[#allocation2 + $0xb] sm:$0xff]
      %v2031 = vld [vmem:[#allocation2 + $0x13] sm:$0xff]
      %v2032 = vld [vmem:[#allocation2 + $0x1b] sm:$0xff]
      %v2033 = vld [vmem:[#allocation2 + $0x23] sm:$0xff]
      %v2034 = vld [vmem:[#allocation2 + $0x2b] sm:$0xff]
      %v2035 = vld [vmem:[#allocation2 + $0x33] sm:$0xff]
      %v2036 = vld [vmem:[#allocation2 + $0x3b] sm:$0xff]
      %v2037 = vpack.c.bf16 %v2030, %v2029
      %v2038 = vpack.c.bf16 %v2032, %v2031
      %v2039 = vpack.c.bf16 %v2034, %v2033
      %v2040 = vpack.c.bf16 %v2036, %v2035
      %s2041 = scalar_lea.vmem %s3, 384
      %v2042 = vld [vmem:[%s2041] sm:$0xff]
      %v2043 = vld [vmem:[%s2041 + $0x8] sm:$0xff]
      %v2044 = vld [vmem:[%s2041 + $0x10] sm:$0xff]
      %v2045 = vld [vmem:[%s2041 + $0x18] sm:$0xff]
      %v2046 = vld [vmem:[%s2041 + $0x20] sm:$0xff]
      %v2047 = vld [vmem:[%s2041 + $0x28] sm:$0xff]
      %v2048 = vld [vmem:[%s2041 + $0x30] sm:$0xff]
      %v2049 = vld [vmem:[%s2041 + $0x38] sm:$0xff]
      %v2050 = vld [vmem:[%s2041 + $0x40] sm:$0xff]
      %v2051 = vld [vmem:[%s2041 + $0x48] sm:$0xff]
      %v2052 = vld [vmem:[%s2041 + $0x50] sm:$0xff]
      %v2053 = vld [vmem:[%s2041 + $0x58] sm:$0xff]
      %v2054 = vld [vmem:[%s2041 + $0x60] sm:$0xff]
      %v2055 = vld [vmem:[%s2041 + $0x68] sm:$0xff]
      %v2056 = vld [vmem:[%s2041 + $0x70] sm:$0xff]
      %v2057 = vld [vmem:[%s2041 + $0x78] sm:$0xff]
      %v2074 = vunpack.c.l.b16 %v2042
      %v2075 = vunpack.c.h.b16 %v2042
      %v2076 = vunpack.c.l.b16 %v2043
      %v2077 = vunpack.c.h.b16 %v2043
      %v2078 = vunpack.c.l.b16 %v2044
      %v2079 = vunpack.c.h.b16 %v2044
      %v2080 = vunpack.c.l.b16 %v2045
      %v2081 = vunpack.c.h.b16 %v2045
      %v2082 = vunpack.c.l.b16 %v2046
      %v2083 = vunpack.c.h.b16 %v2046
      %v2084 = vunpack.c.l.b16 %v2047
      %v2085 = vunpack.c.h.b16 %v2047
      %v2086 = vunpack.c.l.b16 %v2048
      %v2087 = vunpack.c.h.b16 %v2048
      %v2088 = vunpack.c.l.b16 %v2049
      %v2089 = vunpack.c.h.b16 %v2049
      %v2090 = vunpack.c.l.b16 %v2050
      %v2091 = vunpack.c.h.b16 %v2050
      %v2092 = vunpack.c.l.b16 %v2051
      %v2093 = vunpack.c.h.b16 %v2051
      %v2094 = vunpack.c.l.b16 %v2052
      %v2095 = vunpack.c.h.b16 %v2052
      %v2096 = vunpack.c.l.b16 %v2053
      %v2097 = vunpack.c.h.b16 %v2053
      %v2098 = vunpack.c.l.b16 %v2054
      %v2099 = vunpack.c.h.b16 %v2054
      %v2100 = vunpack.c.l.b16 %v2055
      %v2101 = vunpack.c.h.b16 %v2055
      %v2102 = vunpack.c.l.b16 %v2056
      %v2103 = vunpack.c.h.b16 %v2056
      %v2104 = vunpack.c.l.b16 %v2057
      %v2105 = vunpack.c.h.b16 %v2057
      %v2106 = vpack.c.b16 %v2076, %v2074
      %v2107 = vpack.c.b16 %v2077, %v2075
      %v2108 = vpack.c.b16 %v2080, %v2078
      %v2109 = vpack.c.b16 %v2081, %v2079
      %v2110 = vpack.c.b16 %v2084, %v2082
      %v2111 = vpack.c.b16 %v2085, %v2083
      %v2112 = vpack.c.b16 %v2088, %v2086
      %v2113 = vpack.c.b16 %v2089, %v2087
      %v2114 = vpack.c.b16 %v2092, %v2090
      %v2115 = vpack.c.b16 %v2093, %v2091
      %v2116 = vpack.c.b16 %v2096, %v2094
      %v2117 = vpack.c.b16 %v2097, %v2095
      %v2118 = vpack.c.b16 %v2100, %v2098
      %v2119 = vpack.c.b16 %v2101, %v2099
      %v2120 = vpack.c.b16 %v2104, %v2102
      %v2121 = vpack.c.b16 %v2105, %v2103
      %2138 = vmatprep.subr.bf16.mxu0 %v2107
      %2139 = vmatpush1.bf16.msra.mxu0 %v2106
      %2140 = vmatprep.subr.bf16.mxu0 %v2109
      %2141 = vmatpush1.bf16.msra.mxu0 %v2108
      %2142 = vmatprep.subr.bf16.mxu0 %v2111
      %2143 = vmatpush1.bf16.msra.mxu0 %v2110
      %2144 = vmatprep.subr.bf16.mxu0 %v2113
      %2145 = vmatpush1.bf16.msra.mxu0 %v2112
      %2146 = vmatprep.subr.bf16.mxu0 %v2115
      %2147 = vmatpush1.bf16.msra.mxu0 %v2114
      %2148 = vmatprep.subr.bf16.mxu0 %v2117
      %2149 = vmatpush1.bf16.msra.mxu0 %v2116
      %2150 = vmatprep.subr.bf16.mxu0 %v2119
      %2151 = vmatpush1.bf16.msra.mxu0 %v2118
      %2152 = vmatprep.subr.bf16.mxu0 %v2121
      %2153 = vmatpush1.bf16.msra.mxu0 %v2120
      %2154 = vmatprep.subr.bf16.mxu0 0
      %2155 = vmatpush1.bf16.msra.mxu0 0
      %2156 = vmatprep.subr.bf16.mxu0 0
      %2157 = vmatpush1.bf16.msra.mxu0 0
      %2158 = vmatprep.subr.bf16.mxu0 0
      %2159 = vmatpush1.bf16.msra.mxu0 0
      %2160 = vmatprep.subr.bf16.mxu0 0
      %2161 = vmatpush1.bf16.msra.mxu0 0
      %2162 = vmatprep.subr.bf16.mxu0 0
      %2163 = vmatpush1.bf16.msra.mxu0 0
      %2164 = vmatprep.subr.bf16.mxu0 0
      %2165 = vmatpush1.bf16.msra.mxu0 0
      %2166 = vmatprep.subr.bf16.mxu0 0
      %2167 = vmatpush1.bf16.msra.mxu0 0
      %2168 = vmatprep.subr.bf16.mxu0 0
      %2169 = vmatpush1.bf16.msra.mxu0 0
      %2170 = vmatprep.mubr.bf16.mxu0 0
      %2171 = vmatmul.mubr.bf16.gmra.mrb[0].mxu0 %v2037
      %v2172 = vpop.f32.mrb[0].mxu0
      %v2173 = vadd.f32 0.0, %v2172
      %v2174 = vpop.f32.mrb[0].mxu0
      %v2175 = vadd.f32 0.0, %v2174
      %v2176 = vpop.f32.mrb[0].mxu0
      %v2177 = vadd.f32 0.0, %v2176
      %v2178 = vpop.f32.mrb[0].mxu0
      %v2179 = vadd.f32 0.0, %v2178
      %2180 = vmatprep.mubr.bf16.mxu0 0
      %2181 = vmatmul.mubr.bf16.gmra.mrb[0].mxu0 %v2038
      %v2182 = vpop.f32.mrb[0].mxu0
      %v2183 = vadd.f32 0.0, %v2182
      %v2184 = vpop.f32.mrb[0].mxu0
      %v2185 = vadd.f32 0.0, %v2184
      %v2186 = vpop.f32.mrb[0].mxu0
      %v2187 = vadd.f32 0.0, %v2186
      %v2188 = vpop.f32.mrb[0].mxu0
      %v2189 = vadd.f32 0.0, %v2188
      %2190 = vmatprep.mubr.bf16.mxu0 0
      %2191 = vmatmul.mubr.bf16.gmra.mrb[0].mxu0 %v2039
      %v2192 = vpop.f32.mrb[0].mxu0
      %v2193 = vadd.f32 0.0, %v2192
      %v2194 = vpop.f32.mrb[0].mxu0
      %v2195 = vadd.f32 0.0, %v2194
      %v2196 = vpop.f32.mrb[0].mxu0
      %v2197 = vadd.f32 0.0, %v2196
      %v2198 = vpop.f32.mrb[0].mxu0
      %v2199 = vadd.f32 0.0, %v2198
      %2200 = vmatprep.mubr.bf16.mxu0 0
      %2201 = vmatmul.mubr.bf16.gmra.mrb[0].mxu0 %v2040
      %v2202 = vpop.f32.mrb[0].mxu0
      %v2203 = vadd.f32 0.0, %v2202
      %v2204 = vpop.f32.mrb[0].mxu0
      %v2205 = vadd.f32 0.0, %v2204
      %v2206 = vpop.f32.mrb[0].mxu0
      %v2207 = vadd.f32 0.0, %v2206
      %v2208 = vpop.f32.mrb[0].mxu0
      %v2209 = vadd.f32 0.0, %v2208
      %2210 = vdwg.mxu0
      %v2211 = vadd.f32 %v2013, %v2173
      %v2212 = vadd.f32 %v2014, %v2175
      %v2213 = vadd.f32 %v2015, %v2177
      %v2214 = vadd.f32 %v2016, %v2179
      %v2215 = vadd.f32 %v2017, %v2183
      %v2216 = vadd.f32 %v2018, %v2185
      %v2217 = vadd.f32 %v2019, %v2187
      %v2218 = vadd.f32 %v2020, %v2189
      %v2219 = vadd.f32 %v2021, %v2193
      %v2220 = vadd.f32 %v2022, %v2195
      %v2221 = vadd.f32 %v2023, %v2197
      %v2222 = vadd.f32 %v2024, %v2199
      %v2223 = vadd.f32 %v2025, %v2203
      %v2224 = vadd.f32 %v2026, %v2205
      %v2225 = vadd.f32 %v2027, %v2207
      %v2226 = vadd.f32 %v2028, %v2209
      %v2227 = vld [vmem:[#allocation2 + $0x4] sm:$0xff]
      %v2228 = vld [vmem:[#allocation2 + $0xc] sm:$0xff]
      %v2229 = vld [vmem:[#allocation2 + $0x14] sm:$0xff]
      %v2230 = vld [vmem:[#allocation2 + $0x1c] sm:$0xff]
      %v2231 = vld [vmem:[#allocation2 + $0x24] sm:$0xff]
      %v2232 = vld [vmem:[#allocation2 + $0x2c] sm:$0xff]
      %v2233 = vld [vmem:[#allocation2 + $0x34] sm:$0xff]
      %v2234 = vld [vmem:[#allocation2 + $0x3c] sm:$0xff]
      %v2235 = vpack.c.bf16 %v2228, %v2227
      %v2236 = vpack.c.bf16 %v2230, %v2229
      %v2237 = vpack.c.bf16 %v2232, %v2231
      %v2238 = vpack.c.bf16 %v2234, %v2233
      %s2239 = scalar_lea.vmem %s3, 512
      %v2240 = vld [vmem:[%s2239] sm:$0xff]
      %v2241 = vld [vmem:[%s2239 + $0x8] sm:$0xff]
      %v2242 = vld [vmem:[%s2239 + $0x10] sm:$0xff]
      %v2243 = vld [vmem:[%s2239 + $0x18] sm:$0xff]
      %v2244 = vld [vmem:[%s2239 + $0x20] sm:$0xff]
      %v2245 = vld [vmem:[%s2239 + $0x28] sm:$0xff]
      %v2246 = vld [vmem:[%s2239 + $0x30] sm:$0xff]
      %v2247 = vld [vmem:[%s2239 + $0x38] sm:$0xff]
      %v2248 = vld [vmem:[%s2239 + $0x40] sm:$0xff]
      %v2249 = vld [vmem:[%s2239 + $0x48] sm:$0xff]
      %v2250 = vld [vmem:[%s2239 + $0x50] sm:$0xff]
      %v2251 = vld [vmem:[%s2239 + $0x58] sm:$0xff]
      %v2252 = vld [vmem:[%s2239 + $0x60] sm:$0xff]
      %v2253 = vld [vmem:[%s2239 + $0x68] sm:$0xff]
      %v2254 = vld [vmem:[%s2239 + $0x70] sm:$0xff]
      %v2255 = vld [vmem:[%s2239 + $0x78] sm:$0xff]
      %v2272 = vunpack.c.l.b16 %v2240
      %v2273 = vunpack.c.h.b16 %v2240
      %v2274 = vunpack.c.l.b16 %v2241
      %v2275 = vunpack.c.h.b16 %v2241
      %v2276 = vunpack.c.l.b16 %v2242
      %v2277 = vunpack.c.h.b16 %v2242
      %v2278 = vunpack.c.l.b16 %v2243
      %v2279 = vunpack.c.h.b16 %v2243
      %v2280 = vunpack.c.l.b16 %v2244
      %v2281 = vunpack.c.h.b16 %v2244
      %v2282 = vunpack.c.l.b16 %v2245
      %v2283 = vunpack.c.h.b16 %v2245
      %v2284 = vunpack.c.l.b16 %v2246
      %v2285 = vunpack.c.h.b16 %v2246
      %v2286 = vunpack.c.l.b16 %v2247
      %v2287 = vunpack.c.h.b16 %v2247
      %v2288 = vunpack.c.l.b16 %v2248
      %v2289 = vunpack.c.h.b16 %v2248
      %v2290 = vunpack.c.l.b16 %v2249
      %v2291 = vunpack.c.h.b16 %v2249
      %v2292 = vunpack.c.l.b16 %v2250
      %v2293 = vunpack.c.h.b16 %v2250
      %v2294 = vunpack.c.l.b16 %v2251
      %v2295 = vunpack.c.h.b16 %v2251
      %v2296 = vunpack.c.l.b16 %v2252
      %v2297 = vunpack.c.h.b16 %v2252
      %v2298 = vunpack.c.l.b16 %v2253
      %v2299 = vunpack.c.h.b16 %v2253
      %v2300 = vunpack.c.l.b16 %v2254
      %v2301 = vunpack.c.h.b16 %v2254
      %v2302 = vunpack.c.l.b16 %v2255
      %v2303 = vunpack.c.h.b16 %v2255
      %v2304 = vpack.c.b16 %v2274, %v2272
      %v2305 = vpack.c.b16 %v2275, %v2273
      %v2306 = vpack.c.b16 %v2278, %v2276
      %v2307 = vpack.c.b16 %v2279, %v2277
      %v2308 = vpack.c.b16 %v2282, %v2280
      %v2309 = vpack.c.b16 %v2283, %v2281
      %v2310 = vpack.c.b16 %v2286, %v2284
      %v2311 = vpack.c.b16 %v2287, %v2285
      %v2312 = vpack.c.b16 %v2290, %v2288
      %v2313 = vpack.c.b16 %v2291, %v2289
      %v2314 = vpack.c.b16 %v2294, %v2292
      %v2315 = vpack.c.b16 %v2295, %v2293
      %v2316 = vpack.c.b16 %v2298, %v2296
      %v2317 = vpack.c.b16 %v2299, %v2297
      %v2318 = vpack.c.b16 %v2302, %v2300
      %v2319 = vpack.c.b16 %v2303, %v2301
      %2336 = vmatprep.subr.bf16.mxu0 %v2305
      %2337 = vmatpush1.bf16.msra.mxu0 %v2304
      %2338 = vmatprep.subr.bf16.mxu0 %v2307
      %2339 = vmatpush1.bf16.msra.mxu0 %v2306
      %2340 = vmatprep.subr.bf16.mxu0 %v2309
      %2341 = vmatpush1.bf16.msra.mxu0 %v2308
      %2342 = vmatprep.subr.bf16.mxu0 %v2311
      %2343 = vmatpush1.bf16.msra.mxu0 %v2310
      %2344 = vmatprep.subr.bf16.mxu0 %v2313
      %2345 = vmatpush1.bf16.msra.mxu0 %v2312
      %2346 = vmatprep.subr.bf16.mxu0 %v2315
      %2347 = vmatpush1.bf16.msra.mxu0 %v2314
      %2348 = vmatprep.subr.bf16.mxu0 %v2317
      %2349 = vmatpush1.bf16.msra.mxu0 %v2316
      %2350 = vmatprep.subr.bf16.mxu0 %v2319
      %2351 = vmatpush1.bf16.msra.mxu0 %v2318
      %2352 = vmatprep.subr.bf16.mxu0 0
      %2353 = vmatpush1.bf16.msra.mxu0 0
      %2354 = vmatprep.subr.bf16.mxu0 0
      %2355 = vmatpush1.bf16.msra.mxu0 0
      %2356 = vmatprep.subr.bf16.mxu0 0
      %2357 = vmatpush1.bf16.msra.mxu0 0
      %2358 = vmatprep.subr.bf16.mxu0 0
      %2359 = vmatpush1.bf16.msra.mxu0 0
      %2360 = vmatprep.subr.bf16.mxu0 0
      %2361 = vmatpush1.bf16.msra.mxu0 0
      %2362 = vmatprep.subr.bf16.mxu0 0
      %2363 = vmatpush1.bf16.msra.mxu0 0
      %2364 = vmatprep.subr.bf16.mxu0 0
      %2365 = vmatpush1.bf16.msra.mxu0 0
      %2366 = vmatprep.subr.bf16.mxu0 0
      %2367 = vmatpush1.bf16.msra.mxu0 0
      %2368 = vmatprep.mubr.bf16.mxu0 0
      %2369 = vmatmul.mubr.bf16.gmra.mrb[0].mxu0 %v2235
      %v2370 = vpop.f32.mrb[0].mxu0
      %v2371 = vadd.f32 0.0, %v2370
      %v2372 = vpop.f32.mrb[0].mxu0
      %v2373 = vadd.f32 0.0, %v2372
      %v2374 = vpop.f32.mrb[0].mxu0
      %v2375 = vadd.f32 0.0, %v2374
      %v2376 = vpop.f32.mrb[0].mxu0
      %v2377 = vadd.f32 0.0, %v2376
      %2378 = vmatprep.mubr.bf16.mxu0 0
      %2379 = vmatmul.mubr.bf16.gmra.mrb[0].mxu0 %v2236
      %v2380 = vpop.f32.mrb[0].mxu0
      %v2381 = vadd.f32 0.0, %v2380
      %v2382 = vpop.f32.mrb[0].mxu0
      %v2383 = vadd.f32 0.0, %v2382
      %v2384 = vpop.f32.mrb[0].mxu0
      %v2385 = vadd.f32 0.0, %v2384
      %v2386 = vpop.f32.mrb[0].mxu0
      %v2387 = vadd.f32 0.0, %v2386
      %2388 = vmatprep.mubr.bf16.mxu0 0
      %2389 = vmatmul.mubr.bf16.gmra.mrb[0].mxu0 %v2237
      %v2390 = vpop.f32.mrb[0].mxu0
      %v2391 = vadd.f32 0.0, %v2390
      %v2392 = vpop.f32.mrb[0].mxu0
      %v2393 = vadd.f32 0.0, %v2392
      %v2394 = vpop.f32.mrb[0].mxu0
      %v2395 = vadd.f32 0.0, %v2394
      %v2396 = vpop.f32.mrb[0].mxu0
      %v2397 = vadd.f32 0.0, %v2396
      %2398 = vmatprep.mubr.bf16.mxu0 0
      %2399 = vmatmul.mubr.bf16.gmra.mrb[0].mxu0 %v2238
      %v2400 = vpop.f32.mrb[0].mxu0
      %v2401 = vadd.f32 0.0, %v2400
      %v2402 = vpop.f32.mrb[0].mxu0
      %v2403 = vadd.f32 0.0, %v2402
      %v2404 = vpop.f32.mrb[0].mxu0
      %v2405 = vadd.f32 0.0, %v2404
      %v2406 = vpop.f32.mrb[0].mxu0
      %v2407 = vadd.f32 0.0, %v2406
      %2408 = vdwg.mxu0
      %v2409 = vadd.f32 %v2211, %v2371
      %v2410 = vadd.f32 %v2212, %v2373
      %v2411 = vadd.f32 %v2213, %v2375
      %v2412 = vadd.f32 %v2214, %v2377
      %v2413 = vadd.f32 %v2215, %v2381
      %v2414 = vadd.f32 %v2216, %v2383
      %v2415 = vadd.f32 %v2217, %v2385
      %v2416 = vadd.f32 %v2218, %v2387
      %v2417 = vadd.f32 %v2219, %v2391
      %v2418 = vadd.f32 %v2220, %v2393
      %v2419 = vadd.f32 %v2221, %v2395
      %v2420 = vadd.f32 %v2222, %v2397
      %v2421 = vadd.f32 %v2223, %v2401
      %v2422 = vadd.f32 %v2224, %v2403
      %v2423 = vadd.f32 %v2225, %v2405
      %v2424 = vadd.f32 %v2226, %v2407
      %v2425 = vld [vmem:[%s4] sm:$0x3]
      %v2427 = vlaneseq
      %v2428 = vshrl.u32 %v2427, 7
      %v2429 = vsub.s32 0, %v2428
      %v2430 = vrot.slane %v2425, %v2429
      %v2431 = vlaneseq
      %v2432 = vshrl.u32 %v2431, 7
      %v2433 = vsub.s32 1, %v2432
      %v2434 = vrot.slane %v2425, %v2433
      %v2437 = vadd.f32 %v2409, %v2430
      %v2438 = vadd.f32 %v2410, %v2434
      %v2439 = vadd.f32 %v2411, %v2430
      %v2440 = vadd.f32 %v2412, %v2434
      %v2441 = vadd.f32 %v2413, %v2430
      %v2442 = vadd.f32 %v2414, %v2434
      %v2443 = vadd.f32 %v2415, %v2430
      %v2444 = vadd.f32 %v2416, %v2434
      %v2445 = vadd.f32 %v2417, %v2430
      %v2446 = vadd.f32 %v2418, %v2434
      %v2447 = vadd.f32 %v2419, %v2430
      %v2448 = vadd.f32 %v2420, %v2434
      %v2449 = vadd.f32 %v2421, %v2430
      %v2450 = vadd.f32 %v2422, %v2434
      %v2451 = vadd.f32 %v2423, %v2430
      %v2452 = vadd.f32 %v2424, %v2434
      %v2453 = vmax.f32 %v2437, 0.0
      %v2454 = vmax.f32 %v2438, 0.0
      %v2455 = vmax.f32 %v2439, 0.0
      %v2456 = vmax.f32 %v2440, 0.0
      %v2457 = vmax.f32 %v2441, 0.0
      %v2458 = vmax.f32 %v2442, 0.0
      %v2459 = vmax.f32 %v2443, 0.0
      %v2460 = vmax.f32 %v2444, 0.0
      %v2461 = vmax.f32 %v2445, 0.0
      %v2462 = vmax.f32 %v2446, 0.0
      %v2463 = vmax.f32 %v2447, 0.0
      %v2464 = vmax.f32 %v2448, 0.0
      %v2465 = vmax.f32 %v2449, 0.0
      %v2466 = vmax.f32 %v2450, 0.0
      %v2467 = vmax.f32 %v2451, 0.0
      %v2468 = vmax.f32 %v2452, 0.0
      %v2469 = vmax.f32 %v2453, %v2454
      %v2470 = vmax.f32 %v2455, %v2456
      %v2471 = vmax.f32 %v2457, %v2458
      %v2472 = vmax.f32 %v2459, %v2460
      %v2473 = vmax.f32 %v2461, %v2462
      %v2474 = vmax.f32 %v2463, %v2464
      %v2475 = vmax.f32 %v2465, %v2466
      %v2476 = vmax.f32 %v2467, %v2468
      %2477 = vst [vmem:[#allocation3] sm:$0xff] %v2469
      %2478 = vst [vmem:[#allocation3 + $0x8] sm:$0xff] %v2470
      %2479 = vst [vmem:[#allocation3 + $0x10] sm:$0xff] %v2471
      %2480 = vst [vmem:[#allocation3 + $0x18] sm:$0xff] %v2472
      %2481 = vst [vmem:[#allocation3 + $0x20] sm:$0xff] %v2473
      %2482 = vst [vmem:[#allocation3 + $0x28] sm:$0xff] %v2474
      %2483 = vst [vmem:[#allocation3 + $0x30] sm:$0xff] %v2475
      %2484 = vst [vmem:[#allocation3 + $0x38] sm:$0xff] %v2476
      %2485 = vst [vmem:[#allocation3 + $0x40] sm:$0xff] 0.0
      %v2486 = vld [vmem:[#allocation3] sm:$0xff]
      %v2487 = vld [vmem:[#allocation3 + $0x8] sm:$0xff]
      %v2488 = vld [vmem:[#allocation3 + $0x10] sm:$0xff]
      %v2489 = vld [vmem:[#allocation3 + $0x18] sm:$0xff]
      %v2490 = vld [vmem:[#allocation3 + $0x20] sm:$0xff]
      %v2491 = vld [vmem:[#allocation3 + $0x28] sm:$0xff]
      %v2492 = vld [vmem:[#allocation3 + $0x30] sm:$0xff]
      %v2493 = vld [vmem:[#allocation3 + $0x38] sm:$0xff]
      %v2494 = vld [vmem:[#allocation3 + $0x1] sm:$0xff]
      %v2495 = vld [vmem:[#allocation3 + $0x9] sm:$0xff]
      %v2496 = vld [vmem:[#allocation3 + $0x11] sm:$0xff]
      %v2497 = vld [vmem:[#allocation3 + $0x19] sm:$0xff]
      %v2498 = vld [vmem:[#allocation3 + $0x21] sm:$0xff]
      %v2499 = vld [vmem:[#allocation3 + $0x29] sm:$0xff]
      %v2500 = vld [vmem:[#allocation3 + $0x31] sm:$0xff]
      %v2501 = vld [vmem:[#allocation3 + $0x39] sm:$0xff]
      %v2502 = vmax.f32 %v2486, %v2494
      %v2503 = vmax.f32 %v2487, %v2495
      %v2504 = vmax.f32 %v2488, %v2496
      %v2505 = vmax.f32 %v2489, %v2497
      %v2506 = vmax.f32 %v2490, %v2498
      %v2507 = vmax.f32 %v2491, %v2499
      %v2508 = vmax.f32 %v2492, %v2500
      %v2509 = vmax.f32 %v2493, %v2501
      %2510 = vst [vmem:[#allocation4] sm:$0xff] %v2502
      %2511 = vst [vmem:[#allocation4 + $0x8] sm:$0xff] %v2503
      %2512 = vst [vmem:[#allocation4 + $0x10] sm:$0xff] %v2504
      %2513 = vst [vmem:[#allocation4 + $0x18] sm:$0xff] %v2505
      %2514 = vst [vmem:[#allocation4 + $0x20] sm:$0xff] %v2506
      %2515 = vst [vmem:[#allocation4 + $0x28] sm:$0xff] %v2507
      %2516 = vst [vmem:[#allocation4 + $0x30] sm:$0xff] %v2508
      %2517 = vst [vmem:[#allocation4 + $0x38] sm:$0xff] %v2509
      %2518 = vst [vmem:[#allocation4 + $0x40] sm:$0xff] 0.0
      %v2519 = vld [vmem:[#allocation4] sm:$0xff]
      %v2520 = vld [vmem:[#allocation4 + $0x8] sm:$0xff]
      %v2521 = vld [vmem:[#allocation4 + $0x10] sm:$0xff]
      %v2522 = vld [vmem:[#allocation4 + $0x18] sm:$0xff]
      %v2523 = vld [vmem:[#allocation4 + $0x20] sm:$0xff]
      %v2524 = vld [vmem:[#allocation4 + $0x28] sm:$0xff]
      %v2525 = vld [vmem:[#allocation4 + $0x30] sm:$0xff]
      %v2526 = vld [vmem:[#allocation4 + $0x38] sm:$0xff]
      %v2527 = vpack.c.bf16 %v2520, %v2519
      %v2528 = vpack.c.bf16 %v2522, %v2521
      %v2529 = vpack.c.bf16 %v2524, %v2523
      %v2530 = vpack.c.bf16 %v2526, %v2525
      %v2531 = vld [vmem:[%s5] sm:$0xff]
      %v2532 = vld [vmem:[%s5 + $0x8] sm:$0xff]
      %v2533 = vld [vmem:[%s5 + $0x10] sm:$0xff]
      %v2534 = vld [vmem:[%s5 + $0x18] sm:$0xff]
      %v2535 = vld [vmem:[%s5 + $0x20] sm:$0xff]
      %v2536 = vld [vmem:[%s5 + $0x28] sm:$0xff]
      %v2537 = vld [vmem:[%s5 + $0x30] sm:$0xff]
      %v2538 = vld [vmem:[%s5 + $0x38] sm:$0xff]
      %v2539 = vld [vmem:[%s5 + $0x40] sm:$0xff]
      %v2540 = vld [vmem:[%s5 + $0x48] sm:$0xff]
      %v2541 = vld [vmem:[%s5 + $0x50] sm:$0xff]
      %v2542 = vld [vmem:[%s5 + $0x58] sm:$0xff]
      %v2543 = vld [vmem:[%s5 + $0x60] sm:$0xff]
      %v2544 = vld [vmem:[%s5 + $0x68] sm:$0xff]
      %v2545 = vld [vmem:[%s5 + $0x70] sm:$0xff]
      %v2546 = vld [vmem:[%s5 + $0x78] sm:$0xff]
      %v2547 = vld [vmem:[#allocation4 + $0x2] sm:$0xff]
      %v2548 = vld [vmem:[#allocation4 + $0xa] sm:$0xff]
      %v2549 = vld [vmem:[#allocation4 + $0x12] sm:$0xff]
      %v2550 = vld [vmem:[#allocation4 + $0x1a] sm:$0xff]
      %v2551 = vld [vmem:[#allocation4 + $0x22] sm:$0xff]
      %v2552 = vld [vmem:[#allocation4 + $0x2a] sm:$0xff]
      %v2553 = vld [vmem:[#allocation4 + $0x32] sm:$0xff]
      %v2554 = vld [vmem:[#allocation4 + $0x3a] sm:$0xff]
      %v2555 = vpack.c.bf16 %v2548, %v2547
      %v2556 = vpack.c.bf16 %v2550, %v2549
      %v2557 = vpack.c.bf16 %v2552, %v2551
      %v2558 = vpack.c.bf16 %v2554, %v2553
      %s2559 = scalar_lea.vmem %s5, 128
      %v2560 = vld [vmem:[%s2559] sm:$0xff]
      %v2561 = vld [vmem:[%s2559 + $0x8] sm:$0xff]
      %v2562 = vld [vmem:[%s2559 + $0x10] sm:$0xff]
      %v2563 = vld [vmem:[%s2559 + $0x18] sm:$0xff]
      %v2564 = vld [vmem:[%s2559 + $0x20] sm:$0xff]
      %v2565 = vld [vmem:[%s2559 + $0x28] sm:$0xff]
      %v2566 = vld [vmem:[%s2559 + $0x30] sm:$0xff]
      %v2567 = vld [vmem:[%s2559 + $0x38] sm:$0xff]
      %v2568 = vld [vmem:[%s2559 + $0x40] sm:$0xff]
      %v2569 = vld [vmem:[%s2559 + $0x48] sm:$0xff]
      %v2570 = vld [vmem:[%s2559 + $0x50] sm:$0xff]
      %v2571 = vld [vmem:[%s2559 + $0x58] sm:$0xff]
      %v2572 = vld [vmem:[%s2559 + $0x60] sm:$0xff]
      %v2573 = vld [vmem:[%s2559 + $0x68] sm:$0xff]
      %v2574 = vld [vmem:[%s2559 + $0x70] sm:$0xff]
      %v2575 = vld [vmem:[%s2559 + $0x78] sm:$0xff]
      %v2592 = vunpack.c.l.b16 %v2560
      %v2593 = vunpack.c.h.b16 %v2560
      %v2594 = vunpack.c.l.b16 %v2561
      %v2595 = vunpack.c.h.b16 %v2561
      %v2596 = vunpack.c.l.b16 %v2562
      %v2597 = vunpack.c.h.b16 %v2562
      %v2598 = vunpack.c.l.b16 %v2563
      %v2599 = vunpack.c.h.b16 %v2563
      %v2600 = vunpack.c.l.b16 %v2564
      %v2601 = vunpack.c.h.b16 %v2564
      %v2602 = vunpack.c.l.b16 %v2565
      %v2603 = vunpack.c.h.b16 %v2565
      %v2604 = vunpack.c.l.b16 %v2566
      %v2605 = vunpack.c.h.b16 %v2566
      %v2606 = vunpack.c.l.b16 %v2567
      %v2607 = vunpack.c.h.b16 %v2567
      %v2608 = vunpack.c.l.b16 %v2568
      %v2609 = vunpack.c.h.b16 %v2568
      %v2610 = vunpack.c.l.b16 %v2569
      %v2611 = vunpack.c.h.b16 %v2569
      %v2612 = vunpack.c.l.b16 %v2570
      %v2613 = vunpack.c.h.b16 %v2570
      %v2614 = vunpack.c.l.b16 %v2571
      %v2615 = vunpack.c.h.b16 %v2571
      %v2616 = vunpack.c.l.b16 %v2572
      %v2617 = vunpack.c.h.b16 %v2572
      %v2618 = vunpack.c.l.b16 %v2573
      %v2619 = vunpack.c.h.b16 %v2573
      %v2620 = vunpack.c.l.b16 %v2574
      %v2621 = vunpack.c.h.b16 %v2574
      %v2622 = vunpack.c.l.b16 %v2575
      %v2623 = vunpack.c.h.b16 %v2575
      %v2624 = vpack.c.b16 %v2594, %v2592
      %v2625 = vpack.c.b16 %v2595, %v2593
      %v2626 = vpack.c.b16 %v2598, %v2596
      %v2627 = vpack.c.b16 %v2599, %v2597
      %v2628 = vpack.c.b16 %v2602, %v2600
      %v2629 = vpack.c.b16 %v2603, %v2601
      %v2630 = vpack.c.b16 %v2606, %v2604
      %v2631 = vpack.c.b16 %v2607, %v2605
      %v2632 = vpack.c.b16 %v2610, %v2608
      %v2633 = vpack.c.b16 %v2611, %v2609
      %v2634 = vpack.c.b16 %v2614, %v2612
      %v2635 = vpack.c.b16 %v2615, %v2613
      %v2636 = vpack.c.b16 %v2618, %v2616
      %v2637 = vpack.c.b16 %v2619, %v2617
      %v2638 = vpack.c.b16 %v2622, %v2620
      %v2639 = vpack.c.b16 %v2623, %v2621
      %2656 = vmatprep.subr.bf16.mxu0 %v2625
      %2657 = vmatpush1.bf16.msra.mxu0 %v2624
      %2658 = vmatprep.subr.bf16.mxu0 %v2627
      %2659 = vmatpush1.bf16.msra.mxu0 %v2626
      %2660 = vmatprep.subr.bf16.mxu0 %v2629
      %2661 = vmatpush1.bf16.msra.mxu0 %v2628
      %2662 = vmatprep.subr.bf16.mxu0 %v2631
      %2663 = vmatpush1.bf16.msra.mxu0 %v2630
      %2664 = vmatprep.subr.bf16.mxu0 %v2633
      %2665 = vmatpush1.bf16.msra.mxu0 %v2632
      %2666 = vmatprep.subr.bf16.mxu0 %v2635
      %2667 = vmatpush1.bf16.msra.mxu0 %v2634
      %2668 = vmatprep.subr.bf16.mxu0 %v2637
      %2669 = vmatpush1.bf16.msra.mxu0 %v2636
      %2670 = vmatprep.subr.bf16.mxu0 %v2639
      %2671 = vmatpush1.bf16.msra.mxu0 %v2638
      %2672 = vmatprep.subr.bf16.mxu0 0
      %2673 = vmatpush1.bf16.msra.mxu0 0
      %2674 = vmatprep.subr.bf16.mxu0 0
      %2675 = vmatpush1.bf16.msra.mxu0 0
      %2676 = vmatprep.subr.bf16.mxu0 0
      %2677 = vmatpush1.bf16.msra.mxu0 0
      %2678 = vmatprep.subr.bf16.mxu0 0
      %2679 = vmatpush1.bf16.msra.mxu0 0
      %2680 = vmatprep.subr.bf16.mxu0 0
      %2681 = vmatpush1.bf16.msra.mxu0 0
      %2682 = vmatprep.subr.bf16.mxu0 0
      %2683 = vmatpush1.bf16.msra.mxu0 0
      %2684 = vmatprep.subr.bf16.mxu0 0
      %2685 = vmatpush1.bf16.msra.mxu0 0
      %2686 = vmatprep.subr.bf16.mxu0 0
      %2687 = vmatpush1.bf16.msra.mxu0 0
      %2688 = vmatprep.mubr.bf16.mxu0 0
      %2689 = vmatmul.mubr.bf16.gmra.mrb[0].mxu0 %v2555
      %v2690 = vpop.f32.mrb[0].mxu0
      %v2691 = vadd.f32 0.0, %v2690
      %v2692 = vpop.f32.mrb[0].mxu0
      %v2693 = vadd.f32 0.0, %v2692
      %v2694 = vpop.f32.mrb[0].mxu0
      %v2695 = vadd.f32 0.0, %v2694
      %v2696 = vpop.f32.mrb[0].mxu0
      %v2697 = vadd.f32 0.0, %v2696
      %2698 = vmatprep.mubr.bf16.mxu0 0
      %2699 = vmatmul.mubr.bf16.gmra.mrb[0].mxu0 %v2556
      %v2700 = vpop.f32.mrb[0].mxu0
      %v2701 = vadd.f32 0.0, %v2700
      %v2702 = vpop.f32.mrb[0].mxu0
      %v2703 = vadd.f32 0.0, %v2702
      %v2704 = vpop.f32.mrb[0].mxu0
      %v2705 = vadd.f32 0.0, %v2704
      %v2706 = vpop.f32.mrb[0].mxu0
      %v2707 = vadd.f32 0.0, %v2706
      %2708 = vmatprep.mubr.bf16.mxu0 0
      %2709 = vmatmul.mubr.bf16.gmra.mrb[0].mxu0 %v2557
      %v2710 = vpop.f32.mrb[0].mxu0
      %v2711 = vadd.f32 0.0, %v2710
      %v2712 = vpop.f32.mrb[0].mxu0
      %v2713 = vadd.f32 0.0, %v2712
      %v2714 = vpop.f32.mrb[0].mxu0
      %v2715 = vadd.f32 0.0, %v2714
      %v2716 = vpop.f32.mrb[0].mxu0
      %v2717 = vadd.f32 0.0, %v2716
      %2718 = vmatprep.mubr.bf16.mxu0 0
      %2719 = vmatmul.mubr.bf16.gmra.mrb[0].mxu0 %v2558
      %v2720 = vpop.f32.mrb[0].mxu0
      %v2721 = vadd.f32 0.0, %v2720
      %v2722 = vpop.f32.mrb[0].mxu0
      %v2723 = vadd.f32 0.0, %v2722
      %v2724 = vpop.f32.mrb[0].mxu0
      %v2725 = vadd.f32 0.0, %v2724
      %v2726 = vpop.f32.mrb[0].mxu0
      %v2727 = vadd.f32 0.0, %v2726
      %2728 = vdwg.mxu0
      %v2745 = vunpack.c.l.b16 %v2531
      %v2746 = vunpack.c.h.b16 %v2531
      %v2747 = vunpack.c.l.b16 %v2532
      %v2748 = vunpack.c.h.b16 %v2532
      %v2749 = vunpack.c.l.b16 %v2533
      %v2750 = vunpack.c.h.b16 %v2533
      %v2751 = vunpack.c.l.b16 %v2534
      %v2752 = vunpack.c.h.b16 %v2534
      %v2753 = vunpack.c.l.b16 %v2535
      %v2754 = vunpack.c.h.b16 %v2535
      %v2755 = vunpack.c.l.b16 %v2536
      %v2756 = vunpack.c.h.b16 %v2536
      %v2757 = vunpack.c.l.b16 %v2537
      %v2758 = vunpack.c.h.b16 %v2537
      %v2759 = vunpack.c.l.b16 %v2538
      %v2760 = vunpack.c.h.b16 %v2538
      %v2761 = vunpack.c.l.b16 %v2539
      %v2762 = vunpack.c.h.b16 %v2539
      %v2763 = vunpack.c.l.b16 %v2540
      %v2764 = vunpack.c.h.b16 %v2540
      %v2765 = vunpack.c.l.b16 %v2541
      %v2766 = vunpack.c.h.b16 %v2541
      %v2767 = vunpack.c.l.b16 %v2542
      %v2768 = vunpack.c.h.b16 %v2542
      %v2769 = vunpack.c.l.b16 %v2543
      %v2770 = vunpack.c.h.b16 %v2543
      %v2771 = vunpack.c.l.b16 %v2544
      %v2772 = vunpack.c.h.b16 %v2544
      %v2773 = vunpack.c.l.b16 %v2545
      %v2774 = vunpack.c.h.b16 %v2545
      %v2775 = vunpack.c.l.b16 %v2546
      %v2776 = vunpack.c.h.b16 %v2546
      %v2777 = vpack.c.b16 %v2747, %v2745
      %v2778 = vpack.c.b16 %v2748, %v2746
      %v2779 = vpack.c.b16 %v2751, %v2749
      %v2780 = vpack.c.b16 %v2752, %v2750
      %v2781 = vpack.c.b16 %v2755, %v2753
      %v2782 = vpack.c.b16 %v2756, %v2754
      %v2783 = vpack.c.b16 %v2759, %v2757
      %v2784 = vpack.c.b16 %v2760, %v2758
      %v2785 = vpack.c.b16 %v2763, %v2761
      %v2786 = vpack.c.b16 %v2764, %v2762
      %v2787 = vpack.c.b16 %v2767, %v2765
      %v2788 = vpack.c.b16 %v2768, %v2766
      %v2789 = vpack.c.b16 %v2771, %v2769
      %v2790 = vpack.c.b16 %v2772, %v2770
      %v2791 = vpack.c.b16 %v2775, %v2773
      %v2792 = vpack.c.b16 %v2776, %v2774
      %2809 = vmatprep.subr.bf16.mxu0 %v2778
      %2810 = vmatpush1.bf16.msra.mxu0 %v2777
      %2811 = vmatprep.subr.bf16.mxu0 %v2780
      %2812 = vmatpush1.bf16.msra.mxu0 %v2779
      %2813 = vmatprep.subr.bf16.mxu0 %v2782
      %2814 = vmatpush1.bf16.msra.mxu0 %v2781
      %2815 = vmatprep.subr.bf16.mxu0 %v2784
      %2816 = vmatpush1.bf16.msra.mxu0 %v2783
      %2817 = vmatprep.subr.bf16.mxu0 %v2786
      %2818 = vmatpush1.bf16.msra.mxu0 %v2785
      %2819 = vmatprep.subr.bf16.mxu0 %v2788
      %2820 = vmatpush1.bf16.msra.mxu0 %v2787
      %2821 = vmatprep.subr.bf16.mxu0 %v2790
      %2822 = vmatpush1.bf16.msra.mxu0 %v2789
      %2823 = vmatprep.subr.bf16.mxu0 %v2792
      %2824 = vmatpush1.bf16.msra.mxu0 %v2791
      %2825 = vmatprep.subr.bf16.mxu0 0
      %2826 = vmatpush1.bf16.msra.mxu0 0
      %2827 = vmatprep.subr.bf16.mxu0 0
      %2828 = vmatpush1.bf16.msra.mxu0 0
      %2829 = vmatprep.subr.bf16.mxu0 0
      %2830 = vmatpush1.bf16.msra.mxu0 0
      %2831 = vmatprep.subr.bf16.mxu0 0
      %2832 = vmatpush1.bf16.msra.mxu0 0
      %2833 = vmatprep.subr.bf16.mxu0 0
      %2834 = vmatpush1.bf16.msra.mxu0 0
      %2835 = vmatprep.subr.bf16.mxu0 0
      %2836 = vmatpush1.bf16.msra.mxu0 0
      %2837 = vmatprep.subr.bf16.mxu0 0
      %2838 = vmatpush1.bf16.msra.mxu0 0
      %2839 = vmatprep.subr.bf16.mxu0 0
      %2840 = vmatpush1.bf16.msra.mxu0 0
      %2841 = vmatprep.mubr.bf16.mxu0 0
      %2842 = vmatmul.mubr.bf16.gmra.mrb[0].mxu0 %v2527
      %v2843 = vpop.f32.mrb[0].mxu0
      %v2844 = vadd.f32 %v2691, %v2843
      %v2845 = vpop.f32.mrb[0].mxu0
      %v2846 = vadd.f32 %v2693, %v2845
      %v2847 = vpop.f32.mrb[0].mxu0
      %v2848 = vadd.f32 %v2695, %v2847
      %v2849 = vpop.f32.mrb[0].mxu0
      %v2850 = vadd.f32 %v2697, %v2849
      %2851 = vmatprep.mubr.bf16.mxu0 0
      %2852 = vmatmul.mubr.bf16.gmra.mrb[0].mxu0 %v2528
      %v2853 = vpop.f32.mrb[0].mxu0
      %v2854 = vadd.f32 %v2701, %v2853
      %v2855 = vpop.f32.mrb[0].mxu0
      %v2856 = vadd.f32 %v2703, %v2855
      %v2857 = vpop.f32.mrb[0].mxu0
      %v2858 = vadd.f32 %v2705, %v2857
      %v2859 = vpop.f32.mrb[0].mxu0
      %v2860 = vadd.f32 %v2707, %v2859
      %2861 = vmatprep.mubr.bf16.mxu0 0
      %2862 = vmatmul.mubr.bf16.gmra.mrb[0].mxu0 %v2529
      %v2863 = vpop.f32.mrb[0].mxu0
      %v2864 = vadd.f32 %v2711, %v2863
      %v2865 = vpop.f32.mrb[0].mxu0
      %v2866 = vadd.f32 %v2713, %v2865
      %v2867 = vpop.f32.mrb[0].mxu0
      %v2868 = vadd.f32 %v2715, %v2867
      %v2869 = vpop.f32.mrb[0].mxu0
      %v2870 = vadd.f32 %v2717, %v2869
      %2871 = vmatprep.mubr.bf16.mxu0 0
      %2872 = vmatmul.mubr.bf16.gmra.mrb[0].mxu0 %v2530
      %v2873 = vpop.f32.mrb[0].mxu0
      %v2874 = vadd.f32 %v2721, %v2873
      %v2875 = vpop.f32.mrb[0].mxu0
      %v2876 = vadd.f32 %v2723, %v2875
      %v2877 = vpop.f32.mrb[0].mxu0
      %v2878 = vadd.f32 %v2725, %v2877
      %v2879 = vpop.f32.mrb[0].mxu0
      %v2880 = vadd.f32 %v2727, %v2879
      %2881 = vdwg.mxu0
      %v2882 = vld [vmem:[#allocation4 + $0x4] sm:$0xff]
      %v2883 = vld [vmem:[#allocation4 + $0xc] sm:$0xff]
      %v2884 = vld [vmem:[#allocation4 + $0x14] sm:$0xff]
      %v2885 = vld [vmem:[#allocation4 + $0x1c] sm:$0xff]
      %v2886 = vld [vmem:[#allocation4 + $0x24] sm:$0xff]
      %v2887 = vld [vmem:[#allocation4 + $0x2c] sm:$0xff]
      %v2888 = vld [vmem:[#allocation4 + $0x34] sm:$0xff]
      %v2889 = vld [vmem:[#allocation4 + $0x3c] sm:$0xff]
      %v2890 = vpack.c.bf16 %v2883, %v2882
      %v2891 = vpack.c.bf16 %v2885, %v2884
      %v2892 = vpack.c.bf16 %v2887, %v2886
      %v2893 = vpack.c.bf16 %v2889, %v2888
      %s2894 = scalar_lea.vmem %s5, 256
      %v2895 = vld [vmem:[%s2894] sm:$0xff]
      %v2896 = vld [vmem:[%s2894 + $0x8] sm:$0xff]
      %v2897 = vld [vmem:[%s2894 + $0x10] sm:$0xff]
      %v2898 = vld [vmem:[%s2894 + $0x18] sm:$0xff]
      %v2899 = vld [vmem:[%s2894 + $0x20] sm:$0xff]
      %v2900 = vld [vmem:[%s2894 + $0x28] sm:$0xff]
      %v2901 = vld [vmem:[%s2894 + $0x30] sm:$0xff]
      %v2902 = vld [vmem:[%s2894 + $0x38] sm:$0xff]
      %v2903 = vld [vmem:[%s2894 + $0x40] sm:$0xff]
      %v2904 = vld [vmem:[%s2894 + $0x48] sm:$0xff]
      %v2905 = vld [vmem:[%s2894 + $0x50] sm:$0xff]
      %v2906 = vld [vmem:[%s2894 + $0x58] sm:$0xff]
      %v2907 = vld [vmem:[%s2894 + $0x60] sm:$0xff]
      %v2908 = vld [vmem:[%s2894 + $0x68] sm:$0xff]
      %v2909 = vld [vmem:[%s2894 + $0x70] sm:$0xff]
      %v2910 = vld [vmem:[%s2894 + $0x78] sm:$0xff]
      %v2927 = vunpack.c.l.b16 %v2895
      %v2928 = vunpack.c.h.b16 %v2895
      %v2929 = vunpack.c.l.b16 %v2896
      %v2930 = vunpack.c.h.b16 %v2896
      %v2931 = vunpack.c.l.b16 %v2897
      %v2932 = vunpack.c.h.b16 %v2897
      %v2933 = vunpack.c.l.b16 %v2898
      %v2934 = vunpack.c.h.b16 %v2898
      %v2935 = vunpack.c.l.b16 %v2899
      %v2936 = vunpack.c.h.b16 %v2899
      %v2937 = vunpack.c.l.b16 %v2900
      %v2938 = vunpack.c.h.b16 %v2900
      %v2939 = vunpack.c.l.b16 %v2901
      %v2940 = vunpack.c.h.b16 %v2901
      %v2941 = vunpack.c.l.b16 %v2902
      %v2942 = vunpack.c.h.b16 %v2902
      %v2943 = vunpack.c.l.b16 %v2903
      %v2944 = vunpack.c.h.b16 %v2903
      %v2945 = vunpack.c.l.b16 %v2904
      %v2946 = vunpack.c.h.b16 %v2904
      %v2947 = vunpack.c.l.b16 %v2905
      %v2948 = vunpack.c.h.b16 %v2905
      %v2949 = vunpack.c.l.b16 %v2906
      %v2950 = vunpack.c.h.b16 %v2906
      %v2951 = vunpack.c.l.b16 %v2907
      %v2952 = vunpack.c.h.b16 %v2907
      %v2953 = vunpack.c.l.b16 %v2908
      %v2954 = vunpack.c.h.b16 %v2908
      %v2955 = vunpack.c.l.b16 %v2909
      %v2956 = vunpack.c.h.b16 %v2909
      %v2957 = vunpack.c.l.b16 %v2910
      %v2958 = vunpack.c.h.b16 %v2910
      %v2959 = vpack.c.b16 %v2929, %v2927
      %v2960 = vpack.c.b16 %v2930, %v2928
      %v2961 = vpack.c.b16 %v2933, %v2931
      %v2962 = vpack.c.b16 %v2934, %v2932
      %v2963 = vpack.c.b16 %v2937, %v2935
      %v2964 = vpack.c.b16 %v2938, %v2936
      %v2965 = vpack.c.b16 %v2941, %v2939
      %v2966 = vpack.c.b16 %v2942, %v2940
      %v2967 = vpack.c.b16 %v2945, %v2943
      %v2968 = vpack.c.b16 %v2946, %v2944
      %v2969 = vpack.c.b16 %v2949, %v2947
      %v2970 = vpack.c.b16 %v2950, %v2948
      %v2971 = vpack.c.b16 %v2953, %v2951
      %v2972 = vpack.c.b16 %v2954, %v2952
      %v2973 = vpack.c.b16 %v2957, %v2955
      %v2974 = vpack.c.b16 %v2958, %v2956
      %2991 = vmatprep.subr.bf16.mxu0 %v2960
      %2992 = vmatpush1.bf16.msra.mxu0 %v2959
      %2993 = vmatprep.subr.bf16.mxu0 %v2962
      %2994 = vmatpush1.bf16.msra.mxu0 %v2961
      %2995 = vmatprep.subr.bf16.mxu0 %v2964
      %2996 = vmatpush1.bf16.msra.mxu0 %v2963
      %2997 = vmatprep.subr.bf16.mxu0 %v2966
      %2998 = vmatpush1.bf16.msra.mxu0 %v2965
      %2999 = vmatprep.subr.bf16.mxu0 %v2968
      %3000 = vmatpush1.bf16.msra.mxu0 %v2967
      %3001 = vmatprep.subr.bf16.mxu0 %v2970
      %3002 = vmatpush1.bf16.msra.mxu0 %v2969
      %3003 = vmatprep.subr.bf16.mxu0 %v2972
      %3004 = vmatpush1.bf16.msra.mxu0 %v2971
      %3005 = vmatprep.subr.bf16.mxu0 %v2974
      %3006 = vmatpush1.bf16.msra.mxu0 %v2973
      %3007 = vmatprep.subr.bf16.mxu0 0
      %3008 = vmatpush1.bf16.msra.mxu0 0
      %3009 = vmatprep.subr.bf16.mxu0 0
      %3010 = vmatpush1.bf16.msra.mxu0 0
      %3011 = vmatprep.subr.bf16.mxu0 0
      %3012 = vmatpush1.bf16.msra.mxu0 0
      %3013 = vmatprep.subr.bf16.mxu0 0
      %3014 = vmatpush1.bf16.msra.mxu0 0
      %3015 = vmatprep.subr.bf16.mxu0 0
      %3016 = vmatpush1.bf16.msra.mxu0 0
      %3017 = vmatprep.subr.bf16.mxu0 0
      %3018 = vmatpush1.bf16.msra.mxu0 0
      %3019 = vmatprep.subr.bf16.mxu0 0
      %3020 = vmatpush1.bf16.msra.mxu0 0
      %3021 = vmatprep.subr.bf16.mxu0 0
      %3022 = vmatpush1.bf16.msra.mxu0 0
      %3023 = vmatprep.mubr.bf16.mxu0 0
      %3024 = vmatmul.mubr.bf16.gmra.mrb[0].mxu0 %v2890
      %v3025 = vpop.f32.mrb[0].mxu0
      %v3026 = vadd.f32 0.0, %v3025
      %v3027 = vpop.f32.mrb[0].mxu0
      %v3028 = vadd.f32 0.0, %v3027
      %v3029 = vpop.f32.mrb[0].mxu0
      %v3030 = vadd.f32 0.0, %v3029
      %v3031 = vpop.f32.mrb[0].mxu0
      %v3032 = vadd.f32 0.0, %v3031
      %3033 = vmatprep.mubr.bf16.mxu0 0
      %3034 = vmatmul.mubr.bf16.gmra.mrb[0].mxu0 %v2891
      %v3035 = vpop.f32.mrb[0].mxu0
      %v3036 = vadd.f32 0.0, %v3035
      %v3037 = vpop.f32.mrb[0].mxu0
      %v3038 = vadd.f32 0.0, %v3037
      %v3039 = vpop.f32.mrb[0].mxu0
      %v3040 = vadd.f32 0.0, %v3039
      %v3041 = vpop.f32.mrb[0].mxu0
      %v3042 = vadd.f32 0.0, %v3041
      %3043 = vmatprep.mubr.bf16.mxu0 0
      %3044 = vmatmul.mubr.bf16.gmra.mrb[0].mxu0 %v2892
      %v3045 = vpop.f32.mrb[0].mxu0
      %v3046 = vadd.f32 0.0, %v3045
      %v3047 = vpop.f32.mrb[0].mxu0
      %v3048 = vadd.f32 0.0, %v3047
      %v3049 = vpop.f32.mrb[0].mxu0
      %v3050 = vadd.f32 0.0, %v3049
      %v3051 = vpop.f32.mrb[0].mxu0
      %v3052 = vadd.f32 0.0, %v3051
      %3053 = vmatprep.mubr.bf16.mxu0 0
      %3054 = vmatmul.mubr.bf16.gmra.mrb[0].mxu0 %v2893
      %v3055 = vpop.f32.mrb[0].mxu0
      %v3056 = vadd.f32 0.0, %v3055
      %v3057 = vpop.f32.mrb[0].mxu0
      %v3058 = vadd.f32 0.0, %v3057
      %v3059 = vpop.f32.mrb[0].mxu0
      %v3060 = vadd.f32 0.0, %v3059
      %v3061 = vpop.f32.mrb[0].mxu0
      %v3062 = vadd.f32 0.0, %v3061
      %3063 = vdwg.mxu0
      %v3064 = vadd.f32 %v2844, %v3026
      %v3065 = vadd.f32 %v2846, %v3028
      %v3066 = vadd.f32 %v2848, %v3030
      %v3067 = vadd.f32 %v2850, %v3032
      %v3068 = vadd.f32 %v2854, %v3036
      %v3069 = vadd.f32 %v2856, %v3038
      %v3070 = vadd.f32 %v2858, %v3040
      %v3071 = vadd.f32 %v2860, %v3042
      %v3072 = vadd.f32 %v2864, %v3046
      %v3073 = vadd.f32 %v2866, %v3048
      %v3074 = vadd.f32 %v2868, %v3050
      %v3075 = vadd.f32 %v2870, %v3052
      %v3076 = vadd.f32 %v2874, %v3056
      %v3077 = vadd.f32 %v2876, %v3058
      %v3078 = vadd.f32 %v2878, %v3060
      %v3079 = vadd.f32 %v2880, %v3062
      %v3080 = vld [vmem:[#allocation4 + $0x6] sm:$0xff]
      %v3081 = vld [vmem:[#allocation4 + $0xe] sm:$0xff]
      %v3082 = vld [vmem:[#allocation4 + $0x16] sm:$0xff]
      %v3083 = vld [vmem:[#allocation4 + $0x1e] sm:$0xff]
      %v3084 = vld [vmem:[#allocation4 + $0x26] sm:$0xff]
      %v3085 = vld [vmem:[#allocation4 + $0x2e] sm:$0xff]
      %v3086 = vld [vmem:[#allocation4 + $0x36] sm:$0xff]
      %v3087 = vld [vmem:[#allocation4 + $0x3e] sm:$0xff]
      %v3088 = vpack.c.bf16 %v3081, %v3080
      %v3089 = vpack.c.bf16 %v3083, %v3082
      %v3090 = vpack.c.bf16 %v3085, %v3084
      %v3091 = vpack.c.bf16 %v3087, %v3086
      %s3092 = scalar_lea.vmem %s5, 384
      %v3093 = vld [vmem:[%s3092] sm:$0xff]
      %v3094 = vld [vmem:[%s3092 + $0x8] sm:$0xff]
      %v3095 = vld [vmem:[%s3092 + $0x10] sm:$0xff]
      %v3096 = vld [vmem:[%s3092 + $0x18] sm:$0xff]
      %v3097 = vld [vmem:[%s3092 + $0x20] sm:$0xff]
      %v3098 = vld [vmem:[%s3092 + $0x28] sm:$0xff]
      %v3099 = vld [vmem:[%s3092 + $0x30] sm:$0xff]
      %v3100 = vld [vmem:[%s3092 + $0x38] sm:$0xff]
      %v3101 = vld [vmem:[%s3092 + $0x40] sm:$0xff]
      %v3102 = vld [vmem:[%s3092 + $0x48] sm:$0xff]
      %v3103 = vld [vmem:[%s3092 + $0x50] sm:$0xff]
      %v3104 = vld [vmem:[%s3092 + $0x58] sm:$0xff]
      %v3105 = vld [vmem:[%s3092 + $0x60] sm:$0xff]
      %v3106 = vld [vmem:[%s3092 + $0x68] sm:$0xff]
      %v3107 = vld [vmem:[%s3092 + $0x70] sm:$0xff]
      %v3108 = vld [vmem:[%s3092 + $0x78] sm:$0xff]
      %v3125 = vunpack.c.l.b16 %v3093
      %v3126 = vunpack.c.h.b16 %v3093
      %v3127 = vunpack.c.l.b16 %v3094
      %v3128 = vunpack.c.h.b16 %v3094
      %v3129 = vunpack.c.l.b16 %v3095
      %v3130 = vunpack.c.h.b16 %v3095
      %v3131 = vunpack.c.l.b16 %v3096
      %v3132 = vunpack.c.h.b16 %v3096
      %v3133 = vunpack.c.l.b16 %v3097
      %v3134 = vunpack.c.h.b16 %v3097
      %v3135 = vunpack.c.l.b16 %v3098
      %v3136 = vunpack.c.h.b16 %v3098
      %v3137 = vunpack.c.l.b16 %v3099
      %v3138 = vunpack.c.h.b16 %v3099
      %v3139 = vunpack.c.l.b16 %v3100
      %v3140 = vunpack.c.h.b16 %v3100
      %v3141 = vunpack.c.l.b16 %v3101
      %v3142 = vunpack.c.h.b16 %v3101
      %v3143 = vunpack.c.l.b16 %v3102
      %v3144 = vunpack.c.h.b16 %v3102
      %v3145 = vunpack.c.l.b16 %v3103
      %v3146 = vunpack.c.h.b16 %v3103
      %v3147 = vunpack.c.l.b16 %v3104
      %v3148 = vunpack.c.h.b16 %v3104
      %v3149 = vunpack.c.l.b16 %v3105
      %v3150 = vunpack.c.h.b16 %v3105
      %v3151 = vunpack.c.l.b16 %v3106
      %v3152 = vunpack.c.h.b16 %v3106
      %v3153 = vunpack.c.l.b16 %v3107
      %v3154 = vunpack.c.h.b16 %v3107
      %v3155 = vunpack.c.l.b16 %v3108
      %v3156 = vunpack.c.h.b16 %v3108
      %v3157 = vpack.c.b16 %v3127, %v3125
      %v3158 = vpack.c.b16 %v3128, %v3126
      %v3159 = vpack.c.b16 %v3131, %v3129
      %v3160 = vpack.c.b16 %v3132, %v3130
      %v3161 = vpack.c.b16 %v3135, %v3133
      %v3162 = vpack.c.b16 %v3136, %v3134
      %v3163 = vpack.c.b16 %v3139, %v3137
      %v3164 = vpack.c.b16 %v3140, %v3138
      %v3165 = vpack.c.b16 %v3143, %v3141
      %v3166 = vpack.c.b16 %v3144, %v3142
      %v3167 = vpack.c.b16 %v3147, %v3145
      %v3168 = vpack.c.b16 %v3148, %v3146
      %v3169 = vpack.c.b16 %v3151, %v3149
      %v3170 = vpack.c.b16 %v3152, %v3150
      %v3171 = vpack.c.b16 %v3155, %v3153
      %v3172 = vpack.c.b16 %v3156, %v3154
      %3189 = vmatprep.subr.bf16.mxu0 %v3158
      %3190 = vmatpush1.bf16.msra.mxu0 %v3157
      %3191 = vmatprep.subr.bf16.mxu0 %v3160
      %3192 = vmatpush1.bf16.msra.mxu0 %v3159
      %3193 = vmatprep.subr.bf16.mxu0 %v3162
      %3194 = vmatpush1.bf16.msra.mxu0 %v3161
      %3195 = vmatprep.subr.bf16.mxu0 %v3164
      %3196 = vmatpush1.bf16.msra.mxu0 %v3163
      %3197 = vmatprep.subr.bf16.mxu0 %v3166
      %3198 = vmatpush1.bf16.msra.mxu0 %v3165
      %3199 = vmatprep.subr.bf16.mxu0 %v3168
      %3200 = vmatpush1.bf16.msra.mxu0 %v3167
      %3201 = vmatprep.subr.bf16.mxu0 %v3170
      %3202 = vmatpush1.bf16.msra.mxu0 %v3169
      %3203 = vmatprep.subr.bf16.mxu0 %v3172
      %3204 = vmatpush1.bf16.msra.mxu0 %v3171
      %3205 = vmatprep.subr.bf16.mxu0 0
      %3206 = vmatpush1.bf16.msra.mxu0 0
      %3207 = vmatprep.subr.bf16.mxu0 0
      %3208 = vmatpush1.bf16.msra.mxu0 0
      %3209 = vmatprep.subr.bf16.mxu0 0
      %3210 = vmatpush1.bf16.msra.mxu0 0
      %3211 = vmatprep.subr.bf16.mxu0 0
      %3212 = vmatpush1.bf16.msra.mxu0 0
      %3213 = vmatprep.subr.bf16.mxu0 0
      %3214 = vmatpush1.bf16.msra.mxu0 0
      %3215 = vmatprep.subr.bf16.mxu0 0
      %3216 = vmatpush1.bf16.msra.mxu0 0
      %3217 = vmatprep.subr.bf16.mxu0 0
      %3218 = vmatpush1.bf16.msra.mxu0 0
      %3219 = vmatprep.subr.bf16.mxu0 0
      %3220 = vmatpush1.bf16.msra.mxu0 0
      %3221 = vmatprep.mubr.bf16.mxu0 0
      %3222 = vmatmul.mubr.bf16.gmra.mrb[0].mxu0 %v3088
      %v3223 = vpop.f32.mrb[0].mxu0
      %v3224 = vadd.f32 0.0, %v3223
      %v3225 = vpop.f32.mrb[0].mxu0
      %v3226 = vadd.f32 0.0, %v3225
      %v3227 = vpop.f32.mrb[0].mxu0
      %v3228 = vadd.f32 0.0, %v3227
      %v3229 = vpop.f32.mrb[0].mxu0
      %v3230 = vadd.f32 0.0, %v3229
      %3231 = vmatprep.mubr.bf16.mxu0 0
      %3232 = vmatmul.mubr.bf16.gmra.mrb[0].mxu0 %v3089
      %v3233 = vpop.f32.mrb[0].mxu0
      %v3234 = vadd.f32 0.0, %v3233
      %v3235 = vpop.f32.mrb[0].mxu0
      %v3236 = vadd.f32 0.0, %v3235
      %v3237 = vpop.f32.mrb[0].mxu0
      %v3238 = vadd.f32 0.0, %v3237
      %v3239 = vpop.f32.mrb[0].mxu0
      %v3240 = vadd.f32 0.0, %v3239
      %3241 = vmatprep.mubr.bf16.mxu0 0
      %3242 = vmatmul.mubr.bf16.gmra.mrb[0].mxu0 %v3090
      %v3243 = vpop.f32.mrb[0].mxu0
      %v3244 = vadd.f32 0.0, %v3243
      %v3245 = vpop.f32.mrb[0].mxu0
      %v3246 = vadd.f32 0.0, %v3245
      %v3247 = vpop.f32.mrb[0].mxu0
      %v3248 = vadd.f32 0.0, %v3247
      %v3249 = vpop.f32.mrb[0].mxu0
      %v3250 = vadd.f32 0.0, %v3249
      %3251 = vmatprep.mubr.bf16.mxu0 0
      %3252 = vmatmul.mubr.bf16.gmra.mrb[0].mxu0 %v3091
      %v3253 = vpop.f32.mrb[0].mxu0
      %v3254 = vadd.f32 0.0, %v3253
      %v3255 = vpop.f32.mrb[0].mxu0
      %v3256 = vadd.f32 0.0, %v3255
      %v3257 = vpop.f32.mrb[0].mxu0
      %v3258 = vadd.f32 0.0, %v3257
      %v3259 = vpop.f32.mrb[0].mxu0
      %v3260 = vadd.f32 0.0, %v3259
      %3261 = vdwg.mxu0
      %v3262 = vadd.f32 %v3064, %v3224
      %v3263 = vadd.f32 %v3065, %v3226
      %v3264 = vadd.f32 %v3066, %v3228
      %v3265 = vadd.f32 %v3067, %v3230
      %v3266 = vadd.f32 %v3068, %v3234
      %v3267 = vadd.f32 %v3069, %v3236
      %v3268 = vadd.f32 %v3070, %v3238
      %v3269 = vadd.f32 %v3071, %v3240
      %v3270 = vadd.f32 %v3072, %v3244
      %v3271 = vadd.f32 %v3073, %v3246
      %v3272 = vadd.f32 %v3074, %v3248
      %v3273 = vadd.f32 %v3075, %v3250
      %v3274 = vadd.f32 %v3076, %v3254
      %v3275 = vadd.f32 %v3077, %v3256
      %v3276 = vadd.f32 %v3078, %v3258
      %v3277 = vadd.f32 %v3079, %v3260
      %v3278 = vld [vmem:[#allocation4 + $0x8] sm:$0xff]
      %v3279 = vld [vmem:[#allocation4 + $0x10] sm:$0xff]
      %v3280 = vld [vmem:[#allocation4 + $0x18] sm:$0xff]
      %v3281 = vld [vmem:[#allocation4 + $0x20] sm:$0xff]
      %v3282 = vld [vmem:[#allocation4 + $0x28] sm:$0xff]
      %v3283 = vld [vmem:[#allocation4 + $0x30] sm:$0xff]
      %v3284 = vld [vmem:[#allocation4 + $0x38] sm:$0xff]
      %v3285 = vld [vmem:[#allocation4 + $0x40] sm:$0xff]
      %v3286 = vpack.c.bf16 %v3279, %v3278
      %v3287 = vpack.c.bf16 %v3281, %v3280
      %v3288 = vpack.c.bf16 %v3283, %v3282
      %v3289 = vpack.c.bf16 %v3285, %v3284
      %s3290 = scalar_lea.vmem %s5, 512
      %v3291 = vld [vmem:[%s3290] sm:$0xff]
      %v3292 = vld [vmem:[%s3290 + $0x8] sm:$0xff]
      %v3293 = vld [vmem:[%s3290 + $0x10] sm:$0xff]
      %v3294 = vld [vmem:[%s3290 + $0x18] sm:$0xff]
      %v3295 = vld [vmem:[%s3290 + $0x20] sm:$0xff]
      %v3296 = vld [vmem:[%s3290 + $0x28] sm:$0xff]
      %v3297 = vld [vmem:[%s3290 + $0x30] sm:$0xff]
      %v3298 = vld [vmem:[%s3290 + $0x38] sm:$0xff]
      %v3299 = vld [vmem:[%s3290 + $0x40] sm:$0xff]
      %v3300 = vld [vmem:[%s3290 + $0x48] sm:$0xff]
      %v3301 = vld [vmem:[%s3290 + $0x50] sm:$0xff]
      %v3302 = vld [vmem:[%s3290 + $0x58] sm:$0xff]
      %v3303 = vld [vmem:[%s3290 + $0x60] sm:$0xff]
      %v3304 = vld [vmem:[%s3290 + $0x68] sm:$0xff]
      %v3305 = vld [vmem:[%s3290 + $0x70] sm:$0xff]
      %v3306 = vld [vmem:[%s3290 + $0x78] sm:$0xff]
      %v3323 = vunpack.c.l.b16 %v3291
      %v3324 = vunpack.c.h.b16 %v3291
      %v3325 = vunpack.c.l.b16 %v3292
      %v3326 = vunpack.c.h.b16 %v3292
      %v3327 = vunpack.c.l.b16 %v3293
      %v3328 = vunpack.c.h.b16 %v3293
      %v3329 = vunpack.c.l.b16 %v3294
      %v3330 = vunpack.c.h.b16 %v3294
      %v3331 = vunpack.c.l.b16 %v3295
      %v3332 = vunpack.c.h.b16 %v3295
      %v3333 = vunpack.c.l.b16 %v3296
      %v3334 = vunpack.c.h.b16 %v3296
      %v3335 = vunpack.c.l.b16 %v3297
      %v3336 = vunpack.c.h.b16 %v3297
      %v3337 = vunpack.c.l.b16 %v3298
      %v3338 = vunpack.c.h.b16 %v3298
      %v3339 = vunpack.c.l.b16 %v3299
      %v3340 = vunpack.c.h.b16 %v3299
      %v3341 = vunpack.c.l.b16 %v3300
      %v3342 = vunpack.c.h.b16 %v3300
      %v3343 = vunpack.c.l.b16 %v3301
      %v3344 = vunpack.c.h.b16 %v3301
      %v3345 = vunpack.c.l.b16 %v3302
      %v3346 = vunpack.c.h.b16 %v3302
      %v3347 = vunpack.c.l.b16 %v3303
      %v3348 = vunpack.c.h.b16 %v3303
      %v3349 = vunpack.c.l.b16 %v3304
      %v3350 = vunpack.c.h.b16 %v3304
      %v3351 = vunpack.c.l.b16 %v3305
      %v3352 = vunpack.c.h.b16 %v3305
      %v3353 = vunpack.c.l.b16 %v3306
      %v3354 = vunpack.c.h.b16 %v3306
      %v3355 = vpack.c.b16 %v3325, %v3323
      %v3356 = vpack.c.b16 %v3326, %v3324
      %v3357 = vpack.c.b16 %v3329, %v3327
      %v3358 = vpack.c.b16 %v3330, %v3328
      %v3359 = vpack.c.b16 %v3333, %v3331
      %v3360 = vpack.c.b16 %v3334, %v3332
      %v3361 = vpack.c.b16 %v3337, %v3335
      %v3362 = vpack.c.b16 %v3338, %v3336
      %v3363 = vpack.c.b16 %v3341, %v3339
      %v3364 = vpack.c.b16 %v3342, %v3340
      %v3365 = vpack.c.b16 %v3345, %v3343
      %v3366 = vpack.c.b16 %v3346, %v3344
      %v3367 = vpack.c.b16 %v3349, %v3347
      %v3368 = vpack.c.b16 %v3350, %v3348
      %v3369 = vpack.c.b16 %v3353, %v3351
      %v3370 = vpack.c.b16 %v3354, %v3352
      %3387 = vmatprep.subr.bf16.mxu0 %v3356
      %3388 = vmatpush1.bf16.msra.mxu0 %v3355
      %3389 = vmatprep.subr.bf16.mxu0 %v3358
      %3390 = vmatpush1.bf16.msra.mxu0 %v3357
      %3391 = vmatprep.subr.bf16.mxu0 %v3360
      %3392 = vmatpush1.bf16.msra.mxu0 %v3359
      %3393 = vmatprep.subr.bf16.mxu0 %v3362
      %3394 = vmatpush1.bf16.msra.mxu0 %v3361
      %3395 = vmatprep.subr.bf16.mxu0 %v3364
      %3396 = vmatpush1.bf16.msra.mxu0 %v3363
      %3397 = vmatprep.subr.bf16.mxu0 %v3366
      %3398 = vmatpush1.bf16.msra.mxu0 %v3365
      %3399 = vmatprep.subr.bf16.mxu0 %v3368
      %3400 = vmatpush1.bf16.msra.mxu0 %v3367
      %3401 = vmatprep.subr.bf16.mxu0 %v3370
      %3402 = vmatpush1.bf16.msra.mxu0 %v3369
      %3403 = vmatprep.subr.bf16.mxu0 0
      %3404 = vmatpush1.bf16.msra.mxu0 0
      %3405 = vmatprep.subr.bf16.mxu0 0
      %3406 = vmatpush1.bf16.msra.mxu0 0
      %3407 = vmatprep.subr.bf16.mxu0 0
      %3408 = vmatpush1.bf16.msra.mxu0 0
      %3409 = vmatprep.subr.bf16.mxu0 0
      %3410 = vmatpush1.bf16.msra.mxu0 0
      %3411 = vmatprep.subr.bf16.mxu0 0
      %3412 = vmatpush1.bf16.msra.mxu0 0
      %3413 = vmatprep.subr.bf16.mxu0 0
      %3414 = vmatpush1.bf16.msra.mxu0 0
      %3415 = vmatprep.subr.bf16.mxu0 0
      %3416 = vmatpush1.bf16.msra.mxu0 0
      %3417 = vmatprep.subr.bf16.mxu0 0
      %3418 = vmatpush1.bf16.msra.mxu0 0
      %3419 = vmatprep.mubr.bf16.mxu0 0
      %3420 = vmatmul.mubr.bf16.gmra.mrb[0].mxu0 %v3286
      %v3421 = vpop.f32.mrb[0].mxu0
      %v3422 = vadd.f32 0.0, %v3421
      %v3423 = vpop.f32.mrb[0].mxu0
      %v3424 = vadd.f32 0.0, %v3423
      %v3425 = vpop.f32.mrb[0].mxu0
      %v3426 = vadd.f32 0.0, %v3425
      %v3427 = vpop.f32.mrb[0].mxu0
      %v3428 = vadd.f32 0.0, %v3427
      %3429 = vmatprep.mubr.bf16.mxu0 0
      %3430 = vmatmul.mubr.bf16.gmra.mrb[0].mxu0 %v3287
      %v3431 = vpop.f32.mrb[0].mxu0
      %v3432 = vadd.f32 0.0, %v3431
      %v3433 = vpop.f32.mrb[0].mxu0
      %v3434 = vadd.f32 0.0, %v3433
      %v3435 = vpop.f32.mrb[0].mxu0
      %v3436 = vadd.f32 0.0, %v3435
      %v3437 = vpop.f32.mrb[0].mxu0
      %v3438 = vadd.f32 0.0, %v3437
      %3439 = vmatprep.mubr.bf16.mxu0 0
      %3440 = vmatmul.mubr.bf16.gmra.mrb[0].mxu0 %v3288
      %v3441 = vpop.f32.mrb[0].mxu0
      %v3442 = vadd.f32 0.0, %v3441
      %v3443 = vpop.f32.mrb[0].mxu0
      %v3444 = vadd.f32 0.0, %v3443
      %v3445 = vpop.f32.mrb[0].mxu0
      %v3446 = vadd.f32 0.0, %v3445
      %v3447 = vpop.f32.mrb[0].mxu0
      %v3448 = vadd.f32 0.0, %v3447
      %3449 = vmatprep.mubr.bf16.mxu0 0
      %3450 = vmatmul.mubr.bf16.gmra.mrb[0].mxu0 %v3289
      %v3451 = vpop.f32.mrb[0].mxu0
      %v3452 = vadd.f32 0.0, %v3451
      %v3453 = vpop.f32.mrb[0].mxu0
      %v3454 = vadd.f32 0.0, %v3453
      %v3455 = vpop.f32.mrb[0].mxu0
      %v3456 = vadd.f32 0.0, %v3455
      %v3457 = vpop.f32.mrb[0].mxu0
      %v3458 = vadd.f32 0.0, %v3457
      %3459 = vdwg.mxu0
      %v3460 = vadd.f32 %v3262, %v3422
      %v3461 = vadd.f32 %v3263, %v3424
      %v3462 = vadd.f32 %v3264, %v3426
      %v3463 = vadd.f32 %v3265, %v3428
      %v3464 = vadd.f32 %v3266, %v3432
      %v3465 = vadd.f32 %v3267, %v3434
      %v3466 = vadd.f32 %v3268, %v3436
      %v3467 = vadd.f32 %v3269, %v3438
      %v3468 = vadd.f32 %v3270, %v3442
      %v3469 = vadd.f32 %v3271, %v3444
      %v3470 = vadd.f32 %v3272, %v3446
      %v3471 = vadd.f32 %v3273, %v3448
      %v3472 = vadd.f32 %v3274, %v3452
      %v3473 = vadd.f32 %v3275, %v3454
      %v3474 = vadd.f32 %v3276, %v3456
      %v3475 = vadd.f32 %v3277, %v3458
      %v3476 = vld [vmem:[%s6] sm:$0x3]
      %v3478 = vlaneseq
      %v3479 = vshrl.u32 %v3478, 7
      %v3480 = vsub.s32 0, %v3479
      %v3481 = vrot.slane %v3476, %v3480
      %v3482 = vlaneseq
      %v3483 = vshrl.u32 %v3482, 7
      %v3484 = vsub.s32 1, %v3483
      %v3485 = vrot.slane %v3476, %v3484
      %v3488 = vadd.f32 %v3460, %v3481
      %v3489 = vadd.f32 %v3461, %v3485
      %v3490 = vadd.f32 %v3462, %v3481
      %v3491 = vadd.f32 %v3463, %v3485
      %v3492 = vadd.f32 %v3464, %v3481
      %v3493 = vadd.f32 %v3465, %v3485
      %v3494 = vadd.f32 %v3466, %v3481
      %v3495 = vadd.f32 %v3467, %v3485
      %v3496 = vadd.f32 %v3468, %v3481
      %v3497 = vadd.f32 %v3469, %v3485
      %v3498 = vadd.f32 %v3470, %v3481
      %v3499 = vadd.f32 %v3471, %v3485
      %v3500 = vadd.f32 %v3472, %v3481
      %v3501 = vadd.f32 %v3473, %v3485
      %v3502 = vadd.f32 %v3474, %v3481
      %v3503 = vadd.f32 %v3475, %v3485
      %v3504 = vmax.f32 %v3488, 0.0
      %v3505 = vmax.f32 %v3489, 0.0
      %v3506 = vmax.f32 %v3490, 0.0
      %v3507 = vmax.f32 %v3491, 0.0
      %v3508 = vmax.f32 %v3492, 0.0
      %v3509 = vmax.f32 %v3493, 0.0
      %v3510 = vmax.f32 %v3494, 0.0
      %v3511 = vmax.f32 %v3495, 0.0
      %v3512 = vmax.f32 %v3496, 0.0
      %v3513 = vmax.f32 %v3497, 0.0
      %v3514 = vmax.f32 %v3498, 0.0
      %v3515 = vmax.f32 %v3499, 0.0
      %v3516 = vmax.f32 %v3500, 0.0
      %v3517 = vmax.f32 %v3501, 0.0
      %v3518 = vmax.f32 %v3502, 0.0
      %v3519 = vmax.f32 %v3503, 0.0
      %3520 = vst [vmem:[#allocation5] sm:$0xff] %v3504
      %3521 = vst [vmem:[#allocation5 + $0x8] sm:$0xff] %v3505
      %3522 = vst [vmem:[#allocation5 + $0x10] sm:$0xff] %v3506
      %3523 = vst [vmem:[#allocation5 + $0x18] sm:$0xff] %v3507
      %3524 = vst [vmem:[#allocation5 + $0x20] sm:$0xff] %v3508
      %3525 = vst [vmem:[#allocation5 + $0x28] sm:$0xff] %v3509
      %3526 = vst [vmem:[#allocation5 + $0x30] sm:$0xff] %v3510
      %3527 = vst [vmem:[#allocation5 + $0x38] sm:$0xff] %v3511
      %3528 = vst [vmem:[#allocation5 + $0x40] sm:$0xff] %v3512
      %3529 = vst [vmem:[#allocation5 + $0x48] sm:$0xff] %v3513
      %3530 = vst [vmem:[#allocation5 + $0x50] sm:$0xff] %v3514
      %3531 = vst [vmem:[#allocation5 + $0x58] sm:$0xff] %v3515
      %3532 = vst [vmem:[#allocation5 + $0x60] sm:$0xff] %v3516
      %3533 = vst [vmem:[#allocation5 + $0x68] sm:$0xff] %v3517
      %3534 = vst [vmem:[#allocation5 + $0x70] sm:$0xff] %v3518
      %3535 = vst [vmem:[#allocation5 + $0x78] sm:$0xff] %v3519
      %3536 = vst [vmem:[#allocation5 + $0x80] sm:$0xff] 0.0
      %3537 = vst [vmem:[#allocation5 + $0x88] sm:$0xff] 0.0
      %v3538 = vld [vmem:[#allocation5] sm:$0xff]
      %v3539 = vld [vmem:[#allocation5 + $0x8] sm:$0xff]
      %v3540 = vld [vmem:[#allocation5 + $0x10] sm:$0xff]
      %v3541 = vld [vmem:[#allocation5 + $0x18] sm:$0xff]
      %v3542 = vld [vmem:[#allocation5 + $0x20] sm:$0xff]
      %v3543 = vld [vmem:[#allocation5 + $0x28] sm:$0xff]
      %v3544 = vld [vmem:[#allocation5 + $0x30] sm:$0xff]
      %v3545 = vld [vmem:[#allocation5 + $0x38] sm:$0xff]
      %v3546 = vld [vmem:[#allocation5 + $0x40] sm:$0xff]
      %v3547 = vld [vmem:[#allocation5 + $0x48] sm:$0xff]
      %v3548 = vld [vmem:[#allocation5 + $0x50] sm:$0xff]
      %v3549 = vld [vmem:[#allocation5 + $0x58] sm:$0xff]
      %v3550 = vld [vmem:[#allocation5 + $0x60] sm:$0xff]
      %v3551 = vld [vmem:[#allocation5 + $0x68] sm:$0xff]
      %v3552 = vld [vmem:[#allocation5 + $0x70] sm:$0xff]
      %v3553 = vld [vmem:[#allocation5 + $0x78] sm:$0xff]
      %v3554 = vpack.c.bf16 %v3540, %v3538
      %v3555 = vpack.c.bf16 %v3541, %v3539
      %v3556 = vpack.c.bf16 %v3544, %v3542
      %v3557 = vpack.c.bf16 %v3545, %v3543
      %v3558 = vpack.c.bf16 %v3548, %v3546
      %v3559 = vpack.c.bf16 %v3549, %v3547
      %v3560 = vpack.c.bf16 %v3552, %v3550
      %v3561 = vpack.c.bf16 %v3553, %v3551
      %v3562 = vld [vmem:[%s7] sm:$0xf]
      %v3563 = vld [vmem:[%s7 + $0x4] sm:$0xf]
      %v3564 = vld [vmem:[%s7 + $0x8] sm:$0xf]
      %v3565 = vld [vmem:[%s7 + $0xc] sm:$0xf]
      %v3566 = vld [vmem:[%s7 + $0x10] sm:$0xf]
      %v3567 = vld [vmem:[%s7 + $0x14] sm:$0xf]
      %v3568 = vld [vmem:[%s7 + $0x18] sm:$0xf]
      %v3569 = vld [vmem:[%s7 + $0x1c] sm:$0xf]
      %v3570 = vld [vmem:[%s7 + $0x20] sm:$0xf]
      %v3571 = vld [vmem:[%s7 + $0x24] sm:$0xf]
      %v3572 = vld [vmem:[%s7 + $0x28] sm:$0xf]
      %v3573 = vld [vmem:[%s7 + $0x2c] sm:$0xf]
      %v3574 = vld [vmem:[%s7 + $0x30] sm:$0xf]
      %v3575 = vld [vmem:[%s7 + $0x34] sm:$0xf]
      %v3576 = vld [vmem:[%s7 + $0x38] sm:$0xf]
      %v3577 = vld [vmem:[%s7 + $0x3c] sm:$0xf]
      %v3578 = vld [vmem:[%s7 + $0x40] sm:$0xf]
      %v3579 = vld [vmem:[%s7 + $0x44] sm:$0xf]
      %v3580 = vld [vmem:[%s7 + $0x48] sm:$0xf]
      %v3581 = vld [vmem:[%s7 + $0x4c] sm:$0xf]
      %v3582 = vld [vmem:[%s7 + $0x50] sm:$0xf]
      %v3583 = vld [vmem:[%s7 + $0x54] sm:$0xf]
      %v3584 = vld [vmem:[%s7 + $0x58] sm:$0xf]
      %v3585 = vld [vmem:[%s7 + $0x5c] sm:$0xf]
      %v3586 = vld [vmem:[%s7 + $0x60] sm:$0xf]
      %v3587 = vld [vmem:[%s7 + $0x64] sm:$0xf]
      %v3588 = vld [vmem:[%s7 + $0x68] sm:$0xf]
      %v3589 = vld [vmem:[%s7 + $0x6c] sm:$0xf]
      %v3590 = vld [vmem:[%s7 + $0x70] sm:$0xf]
      %v3591 = vld [vmem:[%s7 + $0x74] sm:$0xf]
      %v3592 = vld [vmem:[%s7 + $0x78] sm:$0xf]
      %v3593 = vld [vmem:[%s7 + $0x7c] sm:$0xf]
      %v3594 = vld [vmem:[#allocation5] sm:$0xfc]
      %v3595 = vld [vmem:[#allocation5 + $0x8] sm:$0xfc]
      %v3596 = vld [vmem:[#allocation5 + $0x10] sm:$0xff]
      %v3597 = vld [vmem:[#allocation5 + $0x18] sm:$0xff]
      %v3598 = vld [vmem:[#allocation5 + $0x20] sm:$0xff]
      %v3599 = vld [vmem:[#allocation5 + $0x28] sm:$0xff]
      %v3600 = vld [vmem:[#allocation5 + $0x30] sm:$0xff]
      %v3601 = vld [vmem:[#allocation5 + $0x38] sm:$0xff]
      %v3602 = vld [vmem:[#allocation5 + $0x40] sm:$0xff]
      %v3603 = vld [vmem:[#allocation5 + $0x48] sm:$0xff]
      %v3604 = vld [vmem:[#allocation5 + $0x50] sm:$0xff]
      %v3605 = vld [vmem:[#allocation5 + $0x58] sm:$0xff]
      %v3606 = vld [vmem:[#allocation5 + $0x60] sm:$0xff]
      %v3607 = vld [vmem:[#allocation5 + $0x68] sm:$0xff]
      %v3608 = vld [vmem:[#allocation5 + $0x70] sm:$0xff]
      %v3609 = vld [vmem:[#allocation5 + $0x78] sm:$0xff]
      %v3610 = vld [vmem:[#allocation5 + $0x80] sm:$0x3]
      %v3611 = vld [vmem:[#allocation5 + $0x88] sm:$0x3]
      %v3612 = vpack.c.bf16 %v3596, %v3594
      %v3613 = vpack.c.bf16 %v3597, %v3595
      %v3614 = vpack.c.bf16 %v3600, %v3598
      %v3615 = vpack.c.bf16 %v3601, %v3599
      %v3616 = vpack.c.bf16 %v3604, %v3602
      %v3617 = vpack.c.bf16 %v3605, %v3603
      %v3618 = vpack.c.bf16 %v3608, %v3606
      %v3619 = vpack.c.bf16 %v3609, %v3607
      %v3620 = vpack.c.bf16 %v3610, %v3610
      %v3621 = vpack.c.bf16 %v3611, %v3611
      %s3622 = scalar_lea.vmem %s7, 128
      %v3623 = vld [vmem:[%s3622] sm:$0xf]
      %v3624 = vld [vmem:[%s3622 + $0x4] sm:$0xf]
      %v3625 = vld [vmem:[%s3622 + $0x8] sm:$0xf]
      %v3626 = vld [vmem:[%s3622 + $0xc] sm:$0xf]
      %v3627 = vld [vmem:[%s3622 + $0x10] sm:$0xf]
      %v3628 = vld [vmem:[%s3622 + $0x14] sm:$0xf]
      %v3629 = vld [vmem:[%s3622 + $0x18] sm:$0xf]
      %v3630 = vld [vmem:[%s3622 + $0x1c] sm:$0xf]
      %v3631 = vld [vmem:[%s3622 + $0x20] sm:$0xf]
      %v3632 = vld [vmem:[%s3622 + $0x24] sm:$0xf]
      %v3633 = vld [vmem:[%s3622 + $0x28] sm:$0xf]
      %v3634 = vld [vmem:[%s3622 + $0x2c] sm:$0xf]
      %v3635 = vld [vmem:[%s3622 + $0x30] sm:$0xf]
      %v3636 = vld [vmem:[%s3622 + $0x34] sm:$0xf]
      %v3637 = vld [vmem:[%s3622 + $0x38] sm:$0xf]
      %v3638 = vld [vmem:[%s3622 + $0x3c] sm:$0xf]
      %v3639 = vld [vmem:[%s3622 + $0x40] sm:$0xf]
      %v3640 = vld [vmem:[%s3622 + $0x44] sm:$0xf]
      %v3641 = vld [vmem:[%s3622 + $0x48] sm:$0xf]
      %v3642 = vld [vmem:[%s3622 + $0x4c] sm:$0xf]
      %v3643 = vld [vmem:[%s3622 + $0x50] sm:$0xf]
      %v3644 = vld [vmem:[%s3622 + $0x54] sm:$0xf]
      %v3645 = vld [vmem:[%s3622 + $0x58] sm:$0xf]
      %v3646 = vld [vmem:[%s3622 + $0x5c] sm:$0xf]
      %v3647 = vld [vmem:[%s3622 + $0x60] sm:$0xf]
      %v3648 = vld [vmem:[%s3622 + $0x64] sm:$0xf]
      %v3649 = vld [vmem:[%s3622 + $0x68] sm:$0xf]
      %v3650 = vld [vmem:[%s3622 + $0x6c] sm:$0xf]
      %v3651 = vld [vmem:[%s3622 + $0x70] sm:$0xf]
      %v3652 = vld [vmem:[%s3622 + $0x74] sm:$0xf]
      %v3653 = vld [vmem:[%s3622 + $0x78] sm:$0xf]
      %v3654 = vld [vmem:[%s3622 + $0x7c] sm:$0xf]
      %vm3665 = vcmask 1046528
      %v3666 = vrot.slane %v3612, 1
      %v3667 = vrot.slane %v3614, 1
      %v3668 = vsel %vm3665, %v3666, %v3667
      %v3669 = vrot.slane %v3613, 1
      %v3670 = vrot.slane %v3615, 1
      %v3671 = vsel %vm3665, %v3669, %v3670
      %v3672 = vrot.slane %v3616, 1
      %v3673 = vsel %vm3665, %v3667, %v3672
      %v3674 = vrot.slane %v3617, 1
      %v3675 = vsel %vm3665, %v3670, %v3674
      %v3676 = vrot.slane %v3618, 1
      %v3677 = vsel %vm3665, %v3672, %v3676
      %v3678 = vrot.slane %v3619, 1
      %v3679 = vsel %vm3665, %v3674, %v3678
      %v3680 = vrot.slane %v3620, 1
      %v3681 = vsel %vm3665, %v3676, %v3680
      %v3682 = vrot.slane %v3621, 1
      %v3683 = vsel %vm3665, %v3678, %v3682
      %v3724 = vunpack.c.l.b16 %v3623
      %v3725 = vunpack.c.l.b16 %v3624
      %v3726 = vunpack.c.l.b16 %v3625
      %v3727 = vunpack.c.l.b16 %v3626
      %v3728 = vunpack.c.l.b16 %v3627
      %v3729 = vunpack.c.l.b16 %v3628
      %v3730 = vunpack.c.l.b16 %v3629
      %v3731 = vunpack.c.l.b16 %v3630
      %v3732 = vunpack.c.l.b16 %v3631
      %v3733 = vunpack.c.l.b16 %v3632
      %v3734 = vunpack.c.l.b16 %v3633
      %v3735 = vunpack.c.l.b16 %v3634
      %v3736 = vunpack.c.l.b16 %v3635
      %v3737 = vunpack.c.l.b16 %v3636
      %v3738 = vunpack.c.l.b16 %v3637
      %v3739 = vunpack.c.l.b16 %v3638
      %v3740 = vunpack.c.l.b16 %v3639
      %v3741 = vunpack.c.l.b16 %v3640
      %v3742 = vunpack.c.l.b16 %v3641
      %v3743 = vunpack.c.l.b16 %v3642
      %v3744 = vunpack.c.l.b16 %v3643
      %v3745 = vunpack.c.l.b16 %v3644
      %v3746 = vunpack.c.l.b16 %v3645
      %v3747 = vunpack.c.l.b16 %v3646
      %v3748 = vunpack.c.l.b16 %v3647
      %v3749 = vunpack.c.l.b16 %v3648
      %v3750 = vunpack.c.l.b16 %v3649
      %v3751 = vunpack.c.l.b16 %v3650
      %v3752 = vunpack.c.l.b16 %v3651
      %v3753 = vunpack.c.l.b16 %v3652
      %v3754 = vunpack.c.l.b16 %v3653
      %v3755 = vunpack.c.l.b16 %v3654
      %v3756 = vpack.c.b16 %v3725, %v3724
      %v3757 = vpack.c.b16 %v3727, %v3726
      %v3758 = vpack.c.b16 %v3729, %v3728
      %v3759 = vpack.c.b16 %v3731, %v3730
      %v3760 = vpack.c.b16 %v3733, %v3732
      %v3761 = vpack.c.b16 %v3735, %v3734
      %v3762 = vpack.c.b16 %v3737, %v3736
      %v3763 = vpack.c.b16 %v3739, %v3738
      %v3764 = vpack.c.b16 %v3741, %v3740
      %v3765 = vpack.c.b16 %v3743, %v3742
      %v3766 = vpack.c.b16 %v3745, %v3744
      %v3767 = vpack.c.b16 %v3747, %v3746
      %v3768 = vpack.c.b16 %v3749, %v3748
      %v3769 = vpack.c.b16 %v3751, %v3750
      %v3770 = vpack.c.b16 %v3753, %v3752
      %v3771 = vpack.c.b16 %v3755, %v3754
      %3788 = vmatprep.subr.bf16.mxu0 0
      %3789 = vmatpush1.bf16.msra.mxu0 %v3756
      %3790 = vmatprep.subr.bf16.mxu0 0
      %3791 = vmatpush1.bf16.msra.mxu0 %v3757
      %3792 = vmatprep.subr.bf16.mxu0 0
      %3793 = vmatpush1.bf16.msra.mxu0 %v3758
      %3794 = vmatprep.subr.bf16.mxu0 0
      %3795 = vmatpush1.bf16.msra.mxu0 %v3759
      %3796 = vmatprep.subr.bf16.mxu0 0
      %3797 = vmatpush1.bf16.msra.mxu0 %v3760
      %3798 = vmatprep.subr.bf16.mxu0 0
      %3799 = vmatpush1.bf16.msra.mxu0 %v3761
      %3800 = vmatprep.subr.bf16.mxu0 0
      %3801 = vmatpush1.bf16.msra.mxu0 %v3762
      %3802 = vmatprep.subr.bf16.mxu0 0
      %3803 = vmatpush1.bf16.msra.mxu0 %v3763
      %3804 = vmatprep.subr.bf16.mxu0 0
      %3805 = vmatpush1.bf16.msra.mxu0 %v3764
      %3806 = vmatprep.subr.bf16.mxu0 0
      %3807 = vmatpush1.bf16.msra.mxu0 %v3765
      %3808 = vmatprep.subr.bf16.mxu0 0
      %3809 = vmatpush1.bf16.msra.mxu0 %v3766
      %3810 = vmatprep.subr.bf16.mxu0 0
      %3811 = vmatpush1.bf16.msra.mxu0 %v3767
      %3812 = vmatprep.subr.bf16.mxu0 0
      %3813 = vmatpush1.bf16.msra.mxu0 %v3768
      %3814 = vmatprep.subr.bf16.mxu0 0
      %3815 = vmatpush1.bf16.msra.mxu0 %v3769
      %3816 = vmatprep.subr.bf16.mxu0 0
      %3817 = vmatpush1.bf16.msra.mxu0 %v3770
      %3818 = vmatprep.subr.bf16.mxu0 0
      %3819 = vmatpush1.bf16.msra.mxu0 %v3771
      %3820 = vmatprep.mubr.bf16.mxu0 %v3671
      %3821 = vmatmul.mubr.bf16.gmra.mrb[0].mxu0 %v3668
      %v3822 = vpop.f32.mrb[0].mxu0
      %v3823 = vadd.f32 0.0, %v3822
      %v3824 = vpop.f32.mrb[0].mxu0
      %v3825 = vpop.f32.mrb[0].mxu0
      %v3826 = vadd.f32 0.0, %v3825
      %v3827 = vpop.f32.mrb[0].mxu0
      %3828 = vmatprep.mubr.bf16.mxu0 %v3675
      %3829 = vmatmul.mubr.bf16.gmra.mrb[0].mxu0 %v3673
      %v3830 = vpop.f32.mrb[0].mxu0
      %v3831 = vadd.f32 0.0, %v3830
      %v3832 = vpop.f32.mrb[0].mxu0
      %v3833 = vpop.f32.mrb[0].mxu0
      %v3834 = vadd.f32 0.0, %v3833
      %v3835 = vpop.f32.mrb[0].mxu0
      %3836 = vmatprep.mubr.bf16.mxu0 %v3679
      %3837 = vmatmul.mubr.bf16.gmra.mrb[0].mxu0 %v3677
      %v3838 = vpop.f32.mrb[0].mxu0
      %v3839 = vadd.f32 0.0, %v3838
      %v3840 = vpop.f32.mrb[0].mxu0
      %v3841 = vpop.f32.mrb[0].mxu0
      %v3842 = vadd.f32 0.0, %v3841
      %v3843 = vpop.f32.mrb[0].mxu0
      %3844 = vmatprep.mubr.bf16.mxu0 %v3683
      %3845 = vmatmul.mubr.bf16.gmra.mrb[0].mxu0 %v3681
      %v3846 = vpop.f32.mrb[0].mxu0
      %v3847 = vadd.f32 0.0, %v3846
      %v3848 = vpop.f32.mrb[0].mxu0
      %v3849 = vpop.f32.mrb[0].mxu0
      %v3850 = vadd.f32 0.0, %v3849
      %v3851 = vpop.f32.mrb[0].mxu0
      %3852 = vdwg.mxu0
      %v3885 = vunpack.c.l.b16 %v3562
      %v3886 = vunpack.c.l.b16 %v3563
      %v3887 = vunpack.c.l.b16 %v3564
      %v3888 = vunpack.c.l.b16 %v3565
      %v3889 = vunpack.c.l.b16 %v3566
      %v3890 = vunpack.c.l.b16 %v3567
      %v3891 = vunpack.c.l.b16 %v3568
      %v3892 = vunpack.c.l.b16 %v3569
      %v3893 = vunpack.c.l.b16 %v3570
      %v3894 = vunpack.c.l.b16 %v3571
      %v3895 = vunpack.c.l.b16 %v3572
      %v3896 = vunpack.c.l.b16 %v3573
      %v3897 = vunpack.c.l.b16 %v3574
      %v3898 = vunpack.c.l.b16 %v3575
      %v3899 = vunpack.c.l.b16 %v3576
      %v3900 = vunpack.c.l.b16 %v3577
      %v3901 = vunpack.c.l.b16 %v3578
      %v3902 = vunpack.c.l.b16 %v3579
      %v3903 = vunpack.c.l.b16 %v3580
      %v3904 = vunpack.c.l.b16 %v3581
      %v3905 = vunpack.c.l.b16 %v3582
      %v3906 = vunpack.c.l.b16 %v3583
      %v3907 = vunpack.c.l.b16 %v3584
      %v3908 = vunpack.c.l.b16 %v3585
      %v3909 = vunpack.c.l.b16 %v3586
      %v3910 = vunpack.c.l.b16 %v3587
      %v3911 = vunpack.c.l.b16 %v3588
      %v3912 = vunpack.c.l.b16 %v3589
      %v3913 = vunpack.c.l.b16 %v3590
      %v3914 = vunpack.c.l.b16 %v3591
      %v3915 = vunpack.c.l.b16 %v3592
      %v3916 = vunpack.c.l.b16 %v3593
      %v3917 = vpack.c.b16 %v3886, %v3885
      %v3918 = vpack.c.b16 %v3888, %v3887
      %v3919 = vpack.c.b16 %v3890, %v3889
      %v3920 = vpack.c.b16 %v3892, %v3891
      %v3921 = vpack.c.b16 %v3894, %v3893
      %v3922 = vpack.c.b16 %v3896, %v3895
      %v3923 = vpack.c.b16 %v3898, %v3897
      %v3924 = vpack.c.b16 %v3900, %v3899
      %v3925 = vpack.c.b16 %v3902, %v3901
      %v3926 = vpack.c.b16 %v3904, %v3903
      %v3927 = vpack.c.b16 %v3906, %v3905
      %v3928 = vpack.c.b16 %v3908, %v3907
      %v3929 = vpack.c.b16 %v3910, %v3909
      %v3930 = vpack.c.b16 %v3912, %v3911
      %v3931 = vpack.c.b16 %v3914, %v3913
      %v3932 = vpack.c.b16 %v3916, %v3915
      %3949 = vmatprep.subr.bf16.mxu0 0
      %3950 = vmatpush1.bf16.msra.mxu0 %v3917
      %3951 = vmatprep.subr.bf16.mxu0 0
      %3952 = vmatpush1.bf16.msra.mxu0 %v3918
      %3953 = vmatprep.subr.bf16.mxu0 0
      %3954 = vmatpush1.bf16.msra.mxu0 %v3919
      %3955 = vmatprep.subr.bf16.mxu0 0
      %3956 = vmatpush1.bf16.msra.mxu0 %v3920
      %3957 = vmatprep.subr.bf16.mxu0 0
      %3958 = vmatpush1.bf16.msra.mxu0 %v3921
      %3959 = vmatprep.subr.bf16.mxu0 0
      %3960 = vmatpush1.bf16.msra.mxu0 %v3922
      %3961 = vmatprep.subr.bf16.mxu0 0
      %3962 = vmatpush1.bf16.msra.mxu0 %v3923
      %3963 = vmatprep.subr.bf16.mxu0 0
      %3964 = vmatpush1.bf16.msra.mxu0 %v3924
      %3965 = vmatprep.subr.bf16.mxu0 0
      %3966 = vmatpush1.bf16.msra.mxu0 %v3925
      %3967 = vmatprep.subr.bf16.mxu0 0
      %3968 = vmatpush1.bf16.msra.mxu0 %v3926
      %3969 = vmatprep.subr.bf16.mxu0 0
      %3970 = vmatpush1.bf16.msra.mxu0 %v3927
      %3971 = vmatprep.subr.bf16.mxu0 0
      %3972 = vmatpush1.bf16.msra.mxu0 %v3928
      %3973 = vmatprep.subr.bf16.mxu0 0
      %3974 = vmatpush1.bf16.msra.mxu0 %v3929
      %3975 = vmatprep.subr.bf16.mxu0 0
      %3976 = vmatpush1.bf16.msra.mxu0 %v3930
      %3977 = vmatprep.subr.bf16.mxu0 0
      %3978 = vmatpush1.bf16.msra.mxu0 %v3931
      %3979 = vmatprep.subr.bf16.mxu0 0
      %3980 = vmatpush1.bf16.msra.mxu0 %v3932
      %3981 = vmatprep.mubr.bf16.mxu0 %v3555
      %3982 = vmatmul.mubr.bf16.gmra.mrb[0].mxu0 %v3554
      %v3983 = vpop.f32.mrb[0].mxu0
      %v3984 = vadd.f32 %v3823, %v3983
      %v3985 = vpop.f32.mrb[0].mxu0
      %v3986 = vpop.f32.mrb[0].mxu0
      %v3987 = vadd.f32 %v3826, %v3986
      %v3988 = vpop.f32.mrb[0].mxu0
      %3989 = vmatprep.mubr.bf16.mxu0 %v3557
      %3990 = vmatmul.mubr.bf16.gmra.mrb[0].mxu0 %v3556
      %v3991 = vpop.f32.mrb[0].mxu0
      %v3992 = vadd.f32 %v3831, %v3991
      %v3993 = vpop.f32.mrb[0].mxu0
      %v3994 = vpop.f32.mrb[0].mxu0
      %v3995 = vadd.f32 %v3834, %v3994
      %v3996 = vpop.f32.mrb[0].mxu0
      %3997 = vmatprep.mubr.bf16.mxu0 %v3559
      %3998 = vmatmul.mubr.bf16.gmra.mrb[0].mxu0 %v3558
      %v3999 = vpop.f32.mrb[0].mxu0
      %v4000 = vadd.f32 %v3839, %v3999
      %v4001 = vpop.f32.mrb[0].mxu0
      %v4002 = vpop.f32.mrb[0].mxu0
      %v4003 = vadd.f32 %v3842, %v4002
      %v4004 = vpop.f32.mrb[0].mxu0
      %4005 = vmatprep.mubr.bf16.mxu0 %v3561
      %4006 = vmatmul.mubr.bf16.gmra.mrb[0].mxu0 %v3560
      %v4007 = vpop.f32.mrb[0].mxu0
      %v4008 = vadd.f32 %v3847, %v4007
      %v4009 = vpop.f32.mrb[0].mxu0
      %v4010 = vpop.f32.mrb[0].mxu0
      %v4011 = vadd.f32 %v3850, %v4010
      %v4012 = vpop.f32.mrb[0].mxu0
      %4013 = vdwg.mxu0
      %v4014 = vld [vmem:[%s8] sm:$0x1]
      %v4016 = vlaneseq
      %v4017 = vshrl.u32 %v4016, 7
      %v4018 = vsub.s32 0, %v4017
      %v4019 = vrot.slane %v4014, %v4018
      %v4021 = vadd.f32 %v3984, %v4019
      %v4022 = vadd.f32 %v3987, %v4019
      %v4023 = vadd.f32 %v3992, %v4019
      %v4024 = vadd.f32 %v3995, %v4019
      %v4025 = vadd.f32 %v4000, %v4019
      %v4026 = vadd.f32 %v4003, %v4019
      %v4027 = vadd.f32 %v4008, %v4019
      %v4028 = vadd.f32 %v4011, %v4019
      %v4029 = vmax.f32 %v4021, 0.0
      %v4030 = vmax.f32 %v4022, 0.0
      %v4031 = vmax.f32 %v4023, 0.0
      %v4032 = vmax.f32 %v4024, 0.0
      %v4033 = vmax.f32 %v4025, 0.0
      %v4034 = vmax.f32 %v4026, 0.0
      %v4035 = vmax.f32 %v4027, 0.0
      %v4036 = vmax.f32 %v4028, 0.0
      %v4037 = vpack.c.bf16 %v4030, %v4029
      %v4038 = vpack.c.bf16 %v4032, %v4031
      %v4039 = vpack.c.bf16 %v4034, %v4033
      %v4040 = vpack.c.bf16 %v4036, %v4035
      %v4041 = vld [vmem:[%s9] sm:$0xf]
      %v4042 = vld [vmem:[%s9 + $0x4] sm:$0xf]
      %v4043 = vld [vmem:[%s9 + $0x8] sm:$0xf]
      %v4044 = vld [vmem:[%s9 + $0xc] sm:$0xf]
      %v4045 = vld [vmem:[%s9 + $0x10] sm:$0xf]
      %v4046 = vld [vmem:[%s9 + $0x14] sm:$0xf]
      %v4047 = vld [vmem:[%s9 + $0x18] sm:$0xf]
      %v4048 = vld [vmem:[%s9 + $0x1c] sm:$0xf]
      %v4049 = vld [vmem:[%s9 + $0x20] sm:$0xf]
      %v4050 = vld [vmem:[%s9 + $0x24] sm:$0xf]
      %v4051 = vld [vmem:[%s9 + $0x28] sm:$0xf]
      %v4052 = vld [vmem:[%s9 + $0x2c] sm:$0xf]
      %v4053 = vld [vmem:[%s9 + $0x30] sm:$0xf]
      %v4054 = vld [vmem:[%s9 + $0x34] sm:$0xf]
      %v4055 = vld [vmem:[%s9 + $0x38] sm:$0xf]
      %v4056 = vld [vmem:[%s9 + $0x3c] sm:$0xf]
      %v4057 = vld [vmem:[%s10] sm:$0x1]
      %v4059 = vlaneseq
      %v4060 = vshrl.u32 %v4059, 7
      %v4061 = vsub.s32 0, %v4060
      %v4062 = vrot.slane %v4057, %v4061
      %v4080 = vunpack.c.l.b16 %v4041
      %v4081 = vunpack.c.l.b16 %v4042
      %v4082 = vunpack.c.l.b16 %v4043
      %v4083 = vunpack.c.l.b16 %v4044
      %v4084 = vunpack.c.l.b16 %v4045
      %v4085 = vunpack.c.l.b16 %v4046
      %v4086 = vunpack.c.l.b16 %v4047
      %v4087 = vunpack.c.l.b16 %v4048
      %v4088 = vunpack.c.l.b16 %v4049
      %v4089 = vunpack.c.l.b16 %v4050
      %v4090 = vunpack.c.l.b16 %v4051
      %v4091 = vunpack.c.l.b16 %v4052
      %v4092 = vunpack.c.l.b16 %v4053
      %v4093 = vunpack.c.l.b16 %v4054
      %v4094 = vunpack.c.l.b16 %v4055
      %v4095 = vunpack.c.l.b16 %v4056
      %v4096 = vpack.c.b16 %v4081, %v4080
      %v4097 = vpack.c.b16 %v4083, %v4082
      %v4098 = vpack.c.b16 %v4085, %v4084
      %v4099 = vpack.c.b16 %v4087, %v4086
      %v4100 = vpack.c.b16 %v4089, %v4088
      %v4101 = vpack.c.b16 %v4091, %v4090
      %v4102 = vpack.c.b16 %v4093, %v4092
      %v4103 = vpack.c.b16 %v4095, %v4094
      %4112 = vmatprep.subr.bf16.mxu0 0
      %4113 = vmatpush1.bf16.msra.mxu0 %v4096
      %4114 = vmatprep.subr.bf16.mxu0 0
      %4115 = vmatpush1.bf16.msra.mxu0 %v4097
      %4116 = vmatprep.subr.bf16.mxu0 0
      %4117 = vmatpush1.bf16.msra.mxu0 %v4098
      %4118 = vmatprep.subr.bf16.mxu0 0
      %4119 = vmatpush1.bf16.msra.mxu0 %v4099
      %4120 = vmatprep.subr.bf16.mxu0 0
      %4121 = vmatpush1.bf16.msra.mxu0 %v4100
      %4122 = vmatprep.subr.bf16.mxu0 0
      %4123 = vmatpush1.bf16.msra.mxu0 %v4101
      %4124 = vmatprep.subr.bf16.mxu0 0
      %4125 = vmatpush1.bf16.msra.mxu0 %v4102
      %4126 = vmatprep.subr.bf16.mxu0 0
      %4127 = vmatpush1.bf16.msra.mxu0 %v4103
      %4128 = vmatprep.subr.bf16.mxu0 0
      %4129 = vmatpush1.bf16.msra.mxu0 0
      %4130 = vmatprep.subr.bf16.mxu0 0
      %4131 = vmatpush1.bf16.msra.mxu0 0
      %4132 = vmatprep.subr.bf16.mxu0 0
      %4133 = vmatpush1.bf16.msra.mxu0 0
      %4134 = vmatprep.subr.bf16.mxu0 0
      %4135 = vmatpush1.bf16.msra.mxu0 0
      %4136 = vmatprep.subr.bf16.mxu0 0
      %4137 = vmatpush1.bf16.msra.mxu0 0
      %4138 = vmatprep.subr.bf16.mxu0 0
      %4139 = vmatpush1.bf16.msra.mxu0 0
      %4140 = vmatprep.subr.bf16.mxu0 0
      %4141 = vmatpush1.bf16.msra.mxu0 0
      %4142 = vmatprep.subr.bf16.mxu0 0
      %4143 = vmatpush1.bf16.msra.mxu0 0
      %4144 = vmatprep.mubr.bf16.mxu0 0
      %4145 = vmatmul.mubr.bf16.gmra.mrb[0].mxu0 %v4037
      %v4146 = vpop.f32.mrb[0].mxu0
      %v4147 = vadd.f32 %v4062, %v4146
      %v4148 = vpop.f32.mrb[0].mxu0
      %v4149 = vpop.f32.mrb[0].mxu0
      %v4150 = vpop.f32.mrb[0].mxu0
      %4151 = vmatprep.mubr.bf16.mxu0 0
      %4152 = vmatmul.mubr.bf16.gmra.mrb[0].mxu0 %v4038
      %v4153 = vpop.f32.mrb[0].mxu0
      %v4154 = vadd.f32 %v4062, %v4153
      %v4155 = vpop.f32.mrb[0].mxu0
      %v4156 = vpop.f32.mrb[0].mxu0
      %v4157 = vpop.f32.mrb[0].mxu0
      %4158 = vmatprep.mubr.bf16.mxu0 0
      %4159 = vmatmul.mubr.bf16.gmra.mrb[0].mxu0 %v4039
      %v4160 = vpop.f32.mrb[0].mxu0
      %v4161 = vadd.f32 %v4062, %v4160
      %v4162 = vpop.f32.mrb[0].mxu0
      %v4163 = vpop.f32.mrb[0].mxu0
      %v4164 = vpop.f32.mrb[0].mxu0
      %4165 = vmatprep.mubr.bf16.mxu0 0
      %4166 = vmatmul.mubr.bf16.gmra.mrb[0].mxu0 %v4040
      %v4167 = vpop.f32.mrb[0].mxu0
      %v4168 = vadd.f32 %v4062, %v4167
      %v4169 = vpop.f32.mrb[0].mxu0
      %v4170 = vpop.f32.mrb[0].mxu0
      %v4171 = vpop.f32.mrb[0].mxu0
      %4172 = vdwg.mxu0
      %4173 = vst [vmem:[%s389] sm:$0x1] %v4147
      %4174 = vst [vmem:[%s389 + $0x1] sm:$0x1] %v4154
      %4175 = vst [vmem:[%s389 + $0x2] sm:$0x1] %v4161
      %4176 = vst [vmem:[%s389 + $0x3] sm:$0x1] %v4168
      %s4177 = smul.u32 4, %s22
      %p4178 = scmp.lt.s32.totalorder %s4177, 7
      %s4179 = scalar_select %p4178, %s4177, 7
      %s4180 = scalar_lea.vmem %s11, %s4179
      // Predicated region
      $region65: #{lenet5_32_forward.1} parent=63 // pred_check
        %p4181 = pneg %p276
      $region66: #{lenet5_32_forward.1} parent=63 // pred_check_branch
        %4183 = sbr.rel (%p4181) target = $region68
      $region67: #{lenet5_32_forward.1} parent=63 // pred_region
        %s4184 = smul.u32 4, %s22
      $region68: #{lenet5_32_forward.1} parent=63 // pred_fallthru
        _
    $region64: #{lenet5_32_forward.1} parent=5 // pred_fallthru
      _
    %p4185 = scmp.le.s32.totalorder 2, %s17
    // Predicated region
    $region69: #{lenet5_32_forward.1} parent=5 // pred_check
      %p4186 = pneg %p4185
    $region70: #{lenet5_32_forward.1} parent=5 // pred_check_branch
      %4188 = sbr.rel (%p4186) target = $region72
    $region71: #{lenet5_32_forward.1} parent=5 // pred_region
      %s4189 = ssub.s32 %s17, 2
      // Predicated region
      $region73: #{lenet5_32_forward.1} parent=71 // pred_check
        %p4190 = pneg %p282
      $region74: #{lenet5_32_forward.1} parent=71 // pred_check_branch
        %4192 = sbr.rel (%p4190) target = $region76
      $region75: #{lenet5_32_forward.1} parent=71 // pred_region
        %s4193 = smul.u32 4, %s23
        %p4194 = scmp.lt.s32.totalorder %s4193, 7
        %s4195 = scalar_select %p4194, %s4193, 7
        %s4196 = scalar_lea.vmem %s11, %s4195
      $region76: #{lenet5_32_forward.1} parent=71 // pred_fallthru
        _
    $region72: #{lenet5_32_forward.1} parent=5 // pred_fallthru
      _
  $region6: #{lenet5_32_forward.1} parent=0 // loop_footer
    %s21 = sadd.s32 1, %s17
  $region7: #{lenet5_32_forward.1} parent=0 // loop_footer_branch
    %16 = sbr.rel target = $region3
  $region8: #{lenet5_32_forward.1} parent=0 // loop_exit
    _

</llo_original>
